<compile_context>
chip_gen: v7x
topology: tpu7x:2x2x1
jax: 0.10.0
libtpu: 0.0.40
codegen_flags: <defaults>
</compile_context>

<pallas_src>
import functools
import math

import jax
import jax.numpy as jnp
from jax.experimental import pallas as pl
from jax.experimental.pallas import tpu as pltpu


CFG = dict(vocab=100, max_pos=64, hidden=32, heads=4, layers=2, intermediate=64)
OUT_LANES = 128  # lane-dense output width for the regression result


# ------------------------- fused forward Pallas kernel ---------------------- #

def _fused_forward_kernel(h0_ref, mask_ref, eg_ref, eb_ref,
                          wqkv_ref, bqkv_ref, wo_ref, bo_ref,
                          g1_ref, be1_ref, w1_ref, b1_ref,
                          w2_ref, b2_ref, g2_ref, be2_ref,
                          rw_ref, rb_ref,
                          o_ref, ctx_ref,
                          *, B, S, nH, dH, n_layers, eps):
    H = nH * dH

    def layernorm(x, g, b):
        mu = jnp.mean(x, axis=-1, keepdims=True)
        var = jnp.mean((x - mu) * (x - mu), axis=-1, keepdims=True)
        return (x - mu) * jax.lax.rsqrt(var + eps) * g + b

    def gelu(x):
        # tanh-approx GELU (see TODO at top of file re: erf GELU)
        return 0.5 * x * (1.0 + jnp.tanh(0.7978845608028654 * (x + 0.044715 * x * x * x)))

    # Embedding LayerNorm
    x = layernorm(h0_ref[...].astype(jnp.float32), eg_ref[...], eb_ref[...])

    # Encoder layers (statically unrolled; all activations stay in VMEM/vregs)
    for l in range(n_layers):
        # Fused QKV projection: (B*S, H) @ (H, 3H); attention scale pre-folded into wq/bq.
        qkv = jnp.dot(x, wqkv_ref[l], preferred_element_type=jnp.float32) + bqkv_ref[l]
        q = qkv[:, 0 * H:1 * H]
        k = qkv[:, 1 * H:2 * H]
        v = qkv[:, 2 * H:3 * H]

        # Full self-attention, all (batch, head) pairs inside this one kernel call.
        for b in range(B):
            m_b = mask_ref[b:b + 1, :]                      # (1, S) additive mask
            r0, r1 = b * S, (b + 1) * S
            for h in range(nH):
                c0, c1 = h * dH, (h + 1) * dH
                q_bh = q[r0:r1, c0:c1]                      # (S, dH)
                k_bh = k[r0:r1, c0:c1]
                v_bh = v[r0:r1, c0:c1]
                s = jnp.einsum("qd,kd->qk", q_bh, k_bh,
                               preferred_element_type=jnp.float32) + m_b
                s = s - jnp.max(s, axis=-1, keepdims=True)
                p = jnp.exp(s)
                p = p * pl.reciprocal(jnp.sum(p, axis=-1, keepdims=True), approx=True)
                ctx_ref[r0:r1, c0:c1] = jnp.dot(
                    p, v_bh, preferred_element_type=jnp.float32)

        # Output projection + residual folded into LN1
        attn_out = jnp.dot(ctx_ref[...], wo_ref[l],
                           preferred_element_type=jnp.float32) + bo_ref[l]
        x = layernorm(x + attn_out, g1_ref[l], be1_ref[l])

        # FFN + residual folded into LN2
        ff = gelu(jnp.dot(x, w1_ref[l], preferred_element_type=jnp.float32) + b1_ref[l])
        ff = jnp.dot(ff, w2_ref[l], preferred_element_type=jnp.float32) + b2_ref[l]
        x = layernorm(x + ff, g2_ref[l], be2_ref[l])

    # CLS regression head (row b*S is the CLS token of batch b); lane-dense output.
    rw = rw_ref[...]                                         # (1, H)
    rb = rb_ref[...]                                         # (1, 1)
    for b in range(B):
        cls_b = x[b * S:b * S + 1, :]                        # (1, H)
        y_b = jnp.sum(cls_b * rw, axis=-1, keepdims=True) + rb
        o_ref[b:b + 1, :] = jnp.broadcast_to(y_b, (1, OUT_LANES))


def fused_forward(h0, add_mask, pk, *, B, S, nH, dH, n_layers, eps=1e-5):
    BS, H = h0.shape
    args = (h0, add_mask, pk["emb_ln_g"], pk["emb_ln_b"],
            pk["wqkv"], pk["bqkv"], pk["wo"], pk["bo"],
            pk["ln1_g"], pk["ln1_b"], pk["w1"], pk["b1"],
            pk["w2"], pk["b2"], pk["ln2_g"], pk["ln2_b"],
            pk["reg_w"], pk["reg_b"])

    def full_spec(a):
        nd = a.ndim
        return pl.BlockSpec(a.shape, lambda *_: (0,) * nd)

    out = pl.pallas_call(
        functools.partial(_fused_forward_kernel, B=B, S=S, nH=nH, dH=dH,
                          n_layers=n_layers, eps=eps),
        out_shape=jax.ShapeDtypeStruct((B, OUT_LANES), jnp.float32),
        grid=(1,),
        in_specs=[full_spec(a) for a in args],
        out_specs=pl.BlockSpec((B, OUT_LANES), lambda i: (0, 0)),
        scratch_shapes=[pltpu.VMEM((BS, H), jnp.float32)],   # attention ctx assembly
    )(*args)
    return out


# ----------------------------- params & glue -------------------------------- #

def init_params(key, cfg):
    H, I = cfg["hidden"], cfg["intermediate"]
    std = 0.02

    def nrm(k, shape):
        return jax.random.normal(k, shape, jnp.float32) * std

    keys = iter(jax.random.split(key, 8 + cfg["layers"] * 16))
    p = {
        "word_emb": nrm(next(keys), (cfg["vocab"], H)),
        "pos_emb": nrm(next(keys), (cfg["max_pos"], H)),
        "type_emb": nrm(next(keys), (2, H)),
        "emb_ln_g": jnp.ones((H,), jnp.float32),
        "emb_ln_b": jnp.zeros((H,), jnp.float32),
        "reg_w": nrm(next(keys), (H, 1)),
        "reg_b": jnp.zeros((1,), jnp.float32),
        "layers": [],
    }
    for _ in range(cfg["layers"]):
        layer = {
            "wq": nrm(next(keys), (H, H)), "bq": jnp.zeros((H,), jnp.float32),
            "wk": nrm(next(keys), (H, H)), "bk": jnp.zeros((H,), jnp.float32),
            "wv": nrm(next(keys), (H, H)), "bv": jnp.zeros((H,), jnp.float32),
            "wo": nrm(next(keys), (H, H)), "bo": jnp.zeros((H,), jnp.float32),
            "ln1_g": jnp.ones((H,), jnp.float32), "ln1_b": jnp.zeros((H,), jnp.float32),
            "w1": nrm(next(keys), (H, I)), "b1": jnp.zeros((I,), jnp.float32),
            "w2": nrm(next(keys), (I, H)), "b2": jnp.zeros((H,), jnp.float32),
            "ln2_g": jnp.ones((H,), jnp.float32), "ln2_b": jnp.zeros((H,), jnp.float32),
        }
        p["layers"].append(layer)
    return p


def pack_params(p, cfg):
    """Stack per-layer weights and fold the attention scale into wq/bq (done once)."""
    H = cfg["hidden"]
    dH = H // cfg["heads"]
    scale = 1.0 / math.sqrt(dH)
    ls = p["layers"]
    return {
        "word_emb": p["word_emb"],
        "pos_emb": p["pos_emb"],
        "type_emb": p["type_emb"],
        "emb_ln_g": p["emb_ln_g"].reshape(1, H),
        "emb_ln_b": p["emb_ln_b"].reshape(1, H),
        "wqkv": jnp.stack([jnp.concatenate([l["wq"] * scale, l["wk"], l["wv"]], axis=1)
                           for l in ls]),
        "bqkv": jnp.stack([jnp.concatenate([l["bq"] * scale, l["bk"], l["bv"]])[None, :]
                           for l in ls]),
        "wo": jnp.stack([l["wo"] for l in ls]),
        "bo": jnp.stack([l["bo"][None, :] for l in ls]),
        "ln1_g": jnp.stack([l["ln1_g"][None, :] for l in ls]),
        "ln1_b": jnp.stack([l["ln1_b"][None, :] for l in ls]),
        "w1": jnp.stack([l["w1"] for l in ls]),
        "b1": jnp.stack([l["b1"][None, :] for l in ls]),
        "w2": jnp.stack([l["w2"] for l in ls]),
        "b2": jnp.stack([l["b2"][None, :] for l in ls]),
        "ln2_g": jnp.stack([l["ln2_g"][None, :] for l in ls]),
        "ln2_b": jnp.stack([l["ln2_b"][None, :] for l in ls]),
        "reg_w": p["reg_w"].reshape(1, H),
        "reg_b": p["reg_b"].reshape(1, 1),
    }


def tilt_regression_forward(pk, input_ids, attention_mask, cfg=CFG):
    B, S = input_ids.shape
    H, nH, L = cfg["hidden"], cfg["heads"], cfg["layers"]
    dH = H // nH

    # Embedding gathers are JAX glue; everything downstream is one Pallas kernel.
    word = pk["word_emb"][input_ids]                               # (B, S, H)
    pos = pk["pos_emb"][jnp.arange(S)][None, :, :]                 # (1, S, H)
    tok = pk["type_emb"][0][None, None, :]                         # (1, 1, H)
    h0 = (word + pos + tok).reshape(B * S, H).astype(jnp.float32)

    # Additive attention mask: 0 where attended, -1e9 where padded  (B, S)
    add_mask = (1.0 - attention_mask.astype(jnp.float32)) * -1e9

    out = fused_forward(h0, add_mask, pk, B=B, S=S, nH=nH, dH=dH, n_layers=L)
    return out[:, 0]                                               # (B,)


# --------------------------------- main ------------------------------------- #

if __name__ == "__main__":
    B, S = 2, 8
    key = jax.random.PRNGKey(0)
    k_param, k_ids = jax.random.split(key)

    params = init_params(k_param, CFG)
    packed = pack_params(params, CFG)

    input_ids = jax.random.randint(k_ids, (B, S), 0, CFG["vocab"], dtype=jnp.int32)
    attention_mask = jnp.ones((B, S), dtype=jnp.int32).at[1, S - 2:].set(0)  # some padding

    fwd = jax.jit(lambda ids, mask: tilt_regression_forward(packed, ids, mask))
    out = fwd(input_ids, attention_mask)
    jax.block_until_ready(out)
    assert out.shape == (B,) and out.dtype == jnp.float32
    print("KERNEL_OK")
</pallas_src>

<mosaic_0001>
module attributes {stable_mosaic.version = 11 : i64} {
  func.func @_fused_forward_kernel(%arg0: i32, %arg1: memref<16x32xf32, #tpu.memory_space<vmem>>, %arg2: memref<2x8xf32, #tpu.memory_space<vmem>>, %arg3: memref<1x32xf32, #tpu.memory_space<vmem>>, %arg4: memref<1x32xf32, #tpu.memory_space<vmem>>, %arg5: memref<2x32x96xf32, #tpu.memory_space<vmem>>, %arg6: memref<2x1x96xf32, #tpu.memory_space<vmem>>, %arg7: memref<2x32x32xf32, #tpu.memory_space<vmem>>, %arg8: memref<2x1x32xf32, #tpu.memory_space<vmem>>, %arg9: memref<2x1x32xf32, #tpu.memory_space<vmem>>, %arg10: memref<2x1x32xf32, #tpu.memory_space<vmem>>, %arg11: memref<2x32x64xf32, #tpu.memory_space<vmem>>, %arg12: memref<2x1x64xf32, #tpu.memory_space<vmem>>, %arg13: memref<2x64x32xf32, #tpu.memory_space<vmem>>, %arg14: memref<2x1x32xf32, #tpu.memory_space<vmem>>, %arg15: memref<2x1x32xf32, #tpu.memory_space<vmem>>, %arg16: memref<2x1x32xf32, #tpu.memory_space<vmem>>, %arg17: memref<1x32xf32, #tpu.memory_space<vmem>>, %arg18: memref<1x1xf32, #tpu.memory_space<vmem>>, %arg19: memref<2x128xf32, #tpu.memory_space<vmem>>, %arg20: memref<16x32xf32, #tpu.memory_space<vmem>>) attributes {dimension_semantics = [#tpu.dimension_semantics<arbitrary>], iteration_bounds = array<i64: 1>, scalar_prefetch = 0 : i64, scratch_operands = 1 : i64, tpu.core_type = #tpu.core_type<tc>, window_params = [{pipeline_mode = #tpu.pipeline_mode<synchronous>, transform_indices = @transform_0, window_bounds = array<i64: 16, 32>}, {pipeline_mode = #tpu.pipeline_mode<synchronous>, transform_indices = @transform_1, window_bounds = array<i64: 2, 8>}, {pipeline_mode = #tpu.pipeline_mode<synchronous>, transform_indices = @transform_2, window_bounds = array<i64: 1, 32>}, {pipeline_mode = #tpu.pipeline_mode<synchronous>, transform_indices = @transform_3, window_bounds = array<i64: 1, 32>}, {pipeline_mode = #tpu.pipeline_mode<synchronous>, transform_indices = @transform_4, window_bounds = array<i64: 2, 32, 96>}, {pipeline_mode = #tpu.pipeline_mode<synchronous>, transform_indices = @transform_5, window_bounds = array<i64: 2, 1, 96>}, {pipeline_mode = #tpu.pipeline_mode<synchronous>, transform_indices = @transform_6, window_bounds = array<i64: 2, 32, 32>}, {pipeline_mode = #tpu.pipeline_mode<synchronous>, transform_indices = @transform_7, window_bounds = array<i64: 2, 1, 32>}, {pipeline_mode = #tpu.pipeline_mode<synchronous>, transform_indices = @transform_8, window_bounds = array<i64: 2, 1, 32>}, {pipeline_mode = #tpu.pipeline_mode<synchronous>, transform_indices = @transform_9, window_bounds = array<i64: 2, 1, 32>}, {pipeline_mode = #tpu.pipeline_mode<synchronous>, transform_indices = @transform_10, window_bounds = array<i64: 2, 32, 64>}, {pipeline_mode = #tpu.pipeline_mode<synchronous>, transform_indices = @transform_11, window_bounds = array<i64: 2, 1, 64>}, {pipeline_mode = #tpu.pipeline_mode<synchronous>, transform_indices = @transform_12, window_bounds = array<i64: 2, 64, 32>}, {pipeline_mode = #tpu.pipeline_mode<synchronous>, transform_indices = @transform_13, window_bounds = array<i64: 2, 1, 32>}, {pipeline_mode = #tpu.pipeline_mode<synchronous>, transform_indices = @transform_14, window_bounds = array<i64: 2, 1, 32>}, {pipeline_mode = #tpu.pipeline_mode<synchronous>, transform_indices = @transform_15, window_bounds = array<i64: 2, 1, 32>}, {pipeline_mode = #tpu.pipeline_mode<synchronous>, transform_indices = @transform_16, window_bounds = array<i64: 1, 32>}, {pipeline_mode = #tpu.pipeline_mode<synchronous>, transform_indices = @transform_17, window_bounds = array<i64: 1, 1>}, {pipeline_mode = #tpu.pipeline_mode<synchronous>, transform_indices = @transform_18, window_bounds = array<i64: 2, 128>}]} {
    %c0 = arith.constant 0 : index
    %c0_0 = arith.constant 0 : index
    %0 = vector.load %arg1[%c0, %c0_0] : memref<16x32xf32, #tpu.memory_space<vmem>>, vector<16x32xf32>
    %c0_1 = arith.constant 0 : index
    %c0_2 = arith.constant 0 : index
    %1 = vector.load %arg3[%c0_1, %c0_2] : memref<1x32xf32, #tpu.memory_space<vmem>>, vector<1x32xf32>
    %c0_3 = arith.constant 0 : index
    %c0_4 = arith.constant 0 : index
    %2 = vector.load %arg4[%c0_3, %c0_4] : memref<1x32xf32, #tpu.memory_space<vmem>>, vector<1x32xf32>
    %cst = arith.constant dense<0.000000e+00> : vector<16xf32>
    %3 = vector.multi_reduction <add>, %0, %cst [1] : vector<16x32xf32> to vector<16xf32>
    %4 = vector.shape_cast %3 : vector<16xf32> to vector<16x1xf32>
    %cst_5 = arith.constant 3.200000e+01 : f32
    %5 = vector.broadcast %cst_5 : f32 to vector<16x1xf32>
    %6 = arith.divf %4, %5 : vector<16x1xf32>
    %7 = vector.broadcast %6 : vector<16x1xf32> to vector<16x32xf32>
    %8 = arith.subf %0, %7 : vector<16x32xf32>
    %9 = vector.broadcast %6 : vector<16x1xf32> to vector<16x32xf32>
    %10 = arith.subf %0, %9 : vector<16x32xf32>
    %11 = arith.mulf %8, %10 : vector<16x32xf32>
    %cst_6 = arith.constant dense<0.000000e+00> : vector<16xf32>
    %12 = vector.multi_reduction <add>, %11, %cst_6 [1] : vector<16x32xf32> to vector<16xf32>
    %13 = vector.shape_cast %12 : vector<16xf32> to vector<16x1xf32>
    %cst_7 = arith.constant 3.200000e+01 : f32
    %14 = vector.broadcast %cst_7 : f32 to vector<16x1xf32>
    %15 = arith.divf %13, %14 : vector<16x1xf32>
    %16 = vector.broadcast %6 : vector<16x1xf32> to vector<16x32xf32>
    %17 = arith.subf %0, %16 : vector<16x32xf32>
    %cst_8 = arith.constant 9.99999974E-6 : f32
    %18 = vector.broadcast %cst_8 : f32 to vector<16x1xf32>
    %19 = arith.addf %15, %18 : vector<16x1xf32>
    %20 = math.rsqrt %19 : vector<16x1xf32>
    %21 = vector.broadcast %20 : vector<16x1xf32> to vector<16x32xf32>
    %22 = arith.mulf %17, %21 : vector<16x32xf32>
    %23 = vector.broadcast %1 : vector<1x32xf32> to vector<16x32xf32>
    %24 = arith.mulf %22, %23 : vector<16x32xf32>
    %25 = vector.broadcast %2 : vector<1x32xf32> to vector<16x32xf32>
    %26 = arith.addf %24, %25 : vector<16x32xf32>
    %c0_9 = arith.constant 0 : index
    %c0_10 = arith.constant 0 : index
    %c0_11 = arith.constant 0 : index
    %27 = vector.load %arg5[%c0_9, %c0_10, %c0_11] : memref<2x32x96xf32, #tpu.memory_space<vmem>>, vector<1x32x96xf32>
    %28 = vector.shape_cast %27 : vector<1x32x96xf32> to vector<32x96xf32>
    %cst_12 = arith.constant dense<0.000000e+00> : vector<16x96xf32>
    %29 = tpu.matmul %26, %28, %cst_12 {dimension_numbers = #tpu.dot_dimension_numbers<[1], [0], [0], [1], [0, 0, 1, 1], [], []>} : vector<16x32xf32>, vector<32x96xf32>, vector<16x96xf32> -> vector<16x96xf32>
    %c0_13 = arith.constant 0 : index
    %c0_14 = arith.constant 0 : index
    %c0_15 = arith.constant 0 : index
    %30 = vector.load %arg6[%c0_13, %c0_14, %c0_15] : memref<2x1x96xf32, #tpu.memory_space<vmem>>, vector<1x1x96xf32>
    %31 = vector.shape_cast %30 : vector<1x1x96xf32> to vector<1x96xf32>
    %32 = vector.broadcast %31 : vector<1x96xf32> to vector<16x96xf32>
    %33 = arith.addf %29, %32 : vector<16x96xf32>
    %34 = vector.extract_strided_slice %33 {offsets = [0, 0], sizes = [16, 32], strides = [1, 1]} : vector<16x96xf32> to vector<16x32xf32>
    %35 = vector.extract_strided_slice %33 {offsets = [0, 32], sizes = [16, 32], strides = [1, 1]} : vector<16x96xf32> to vector<16x32xf32>
    %36 = vector.extract_strided_slice %33 {offsets = [0, 64], sizes = [16, 32], strides = [1, 1]} : vector<16x96xf32> to vector<16x32xf32>
    %c0_16 = arith.constant 0 : index
    %c0_17 = arith.constant 0 : index
    %37 = vector.load %arg2[%c0_16, %c0_17] : memref<2x8xf32, #tpu.memory_space<vmem>>, vector<1x8xf32>
    %38 = vector.extract_strided_slice %34 {offsets = [0, 0], sizes = [8, 8], strides = [1, 1]} : vector<16x32xf32> to vector<8x8xf32>
    %39 = vector.extract_strided_slice %35 {offsets = [0, 0], sizes = [8, 8], strides = [1, 1]} : vector<16x32xf32> to vector<8x8xf32>
    %40 = vector.extract_strided_slice %36 {offsets = [0, 0], sizes = [8, 8], strides = [1, 1]} : vector<16x32xf32> to vector<8x8xf32>
    "tpu.trace_start"() <{level = 10 : i32, message = "qd,kd->qk"}> : () -> ()
    %cst_18 = arith.constant dense<0.000000e+00> : vector<8x8xf32>
    %41 = tpu.matmul %38, %39, %cst_18 {dimension_numbers = #tpu.dot_dimension_numbers<[1], [1], [0], [0], [0, 0, 1, 0], [], []>} : vector<8x8xf32>, vector<8x8xf32>, vector<8x8xf32> -> vector<8x8xf32>
    "tpu.trace_stop"() : () -> ()
    %42 = vector.broadcast %37 : vector<1x8xf32> to vector<8x8xf32>
    %43 = arith.addf %41, %42 : vector<8x8xf32>
    %cst_19 = arith.constant dense<0xFF800000> : vector<8xf32>
    %44 = vector.multi_reduction <maximumf>, %43, %cst_19 [1] : vector<8x8xf32> to vector<8xf32>
    %45 = vector.shape_cast %44 : vector<8xf32> to vector<8x1xf32>
    %46 = vector.broadcast %45 : vector<8x1xf32> to vector<8x8xf32>
    %47 = arith.subf %43, %46 : vector<8x8xf32>
    %48 = math.exp %47 : vector<8x8xf32>
    %cst_20 = arith.constant dense<0.000000e+00> : vector<8xf32>
    %49 = vector.multi_reduction <add>, %48, %cst_20 [1] : vector<8x8xf32> to vector<8xf32>
    %50 = vector.shape_cast %49 : vector<8xf32> to vector<8x1xf32>
    %51 = tpu.reciprocal %50 {approx = true} : vector<8x1xf32> -> vector<8x1xf32>
    %52 = vector.broadcast %51 : vector<8x1xf32> to vector<8x8xf32>
    %53 = arith.mulf %48, %52 : vector<8x8xf32>
    %cst_21 = arith.constant dense<0.000000e+00> : vector<8x8xf32>
    %54 = tpu.matmul %53, %40, %cst_21 {dimension_numbers = #tpu.dot_dimension_numbers<[1], [0], [0], [1], [0, 0, 1, 1], [], []>} : vector<8x8xf32>, vector<8x8xf32>, vector<8x8xf32> -> vector<8x8xf32>
    %c0_22 = arith.constant 0 : index
    %c0_23 = arith.constant 0 : index
    %55 = vector.load %arg20[%c0_22, %c0_23] : memref<16x32xf32, #tpu.memory_space<vmem>>, vector<8x8xf32>
    tpu.vector_store %arg20[%c0_22, %c0_23], %54 {strides = array<i32>} : memref<16x32xf32, #tpu.memory_space<vmem>>, vector<8x8xf32>,
    %56 = vector.extract_strided_slice %34 {offsets = [0, 8], sizes = [8, 8], strides = [1, 1]} : vector<16x32xf32> to vector<8x8xf32>
    %57 = vector.extract_strided_slice %35 {offsets = [0, 8], sizes = [8, 8], strides = [1, 1]} : vector<16x32xf32> to vector<8x8xf32>
    %58 = vector.extract_strided_slice %36 {offsets = [0, 8], sizes = [8, 8], strides = [1, 1]} : vector<16x32xf32> to vector<8x8xf32>
    "tpu.trace_start"() <{level = 10 : i32, message = "qd,kd->qk"}> : () -> ()
    %cst_24 = arith.constant dense<0.000000e+00> : vector<8x8xf32>
    %59 = tpu.matmul %56, %57, %cst_24 {dimension_numbers = #tpu.dot_dimension_numbers<[1], [1], [0], [0], [0, 0, 1, 0], [], []>} : vector<8x8xf32>, vector<8x8xf32>, vector<8x8xf32> -> vector<8x8xf32>
    "tpu.trace_stop"() : () -> ()
    %60 = vector.broadcast %37 : vector<1x8xf32> to vector<8x8xf32>
    %61 = arith.addf %59, %60 : vector<8x8xf32>
    %cst_25 = arith.constant dense<0xFF800000> : vector<8xf32>
    %62 = vector.multi_reduction <maximumf>, %61, %cst_25 [1] : vector<8x8xf32> to vector<8xf32>
    %63 = vector.shape_cast %62 : vector<8xf32> to vector<8x1xf32>
    %64 = vector.broadcast %63 : vector<8x1xf32> to vector<8x8xf32>
    %65 = arith.subf %61, %64 : vector<8x8xf32>
    %66 = math.exp %65 : vector<8x8xf32>
    %cst_26 = arith.constant dense<0.000000e+00> : vector<8xf32>
    %67 = vector.multi_reduction <add>, %66, %cst_26 [1] : vector<8x8xf32> to vector<8xf32>
    %68 = vector.shape_cast %67 : vector<8xf32> to vector<8x1xf32>
    %69 = tpu.reciprocal %68 {approx = true} : vector<8x1xf32> -> vector<8x1xf32>
    %70 = vector.broadcast %69 : vector<8x1xf32> to vector<8x8xf32>
    %71 = arith.mulf %66, %70 : vector<8x8xf32>
    %cst_27 = arith.constant dense<0.000000e+00> : vector<8x8xf32>
    %72 = tpu.matmul %71, %58, %cst_27 {dimension_numbers = #tpu.dot_dimension_numbers<[1], [0], [0], [1], [0, 0, 1, 1], [], []>} : vector<8x8xf32>, vector<8x8xf32>, vector<8x8xf32> -> vector<8x8xf32>
    %c0_28 = arith.constant 0 : index
    %c8 = arith.constant 8 : index
    %73 = vector.load %arg20[%c0_28, %c8] : memref<16x32xf32, #tpu.memory_space<vmem>>, vector<8x8xf32>
    tpu.vector_store %arg20[%c0_28, %c8], %72 {strides = array<i32>} : memref<16x32xf32, #tpu.memory_space<vmem>>, vector<8x8xf32>,
    %74 = vector.extract_strided_slice %34 {offsets = [0, 16], sizes = [8, 8], strides = [1, 1]} : vector<16x32xf32> to vector<8x8xf32>
    %75 = vector.extract_strided_slice %35 {offsets = [0, 16], sizes = [8, 8], strides = [1, 1]} : vector<16x32xf32> to vector<8x8xf32>
    %76 = vector.extract_strided_slice %36 {offsets = [0, 16], sizes = [8, 8], strides = [1, 1]} : vector<16x32xf32> to vector<8x8xf32>
    "tpu.trace_start"() <{level = 10 : i32, message = "qd,kd->qk"}> : () -> ()
    %cst_29 = arith.constant dense<0.000000e+00> : vector<8x8xf32>
    %77 = tpu.matmul %74, %75, %cst_29 {dimension_numbers = #tpu.dot_dimension_numbers<[1], [1], [0], [0], [0, 0, 1, 0], [], []>} : vector<8x8xf32>, vector<8x8xf32>, vector<8x8xf32> -> vector<8x8xf32>
    "tpu.trace_stop"() : () -> ()
    %78 = vector.broadcast %37 : vector<1x8xf32> to vector<8x8xf32>
    %79 = arith.addf %77, %78 : vector<8x8xf32>
    %cst_30 = arith.constant dense<0xFF800000> : vector<8xf32>
    %80 = vector.multi_reduction <maximumf>, %79, %cst_30 [1] : vector<8x8xf32> to vector<8xf32>
    %81 = vector.shape_cast %80 : vector<8xf32> to vector<8x1xf32>
    %82 = vector.broadcast %81 : vector<8x1xf32> to vector<8x8xf32>
    %83 = arith.subf %79, %82 : vector<8x8xf32>
    %84 = math.exp %83 : vector<8x8xf32>
    %cst_31 = arith.constant dense<0.000000e+00> : vector<8xf32>
    %85 = vector.multi_reduction <add>, %84, %cst_31 [1] : vector<8x8xf32> to vector<8xf32>
    %86 = vector.shape_cast %85 : vector<8xf32> to vector<8x1xf32>
    %87 = tpu.reciprocal %86 {approx = true} : vector<8x1xf32> -> vector<8x1xf32>
    %88 = vector.broadcast %87 : vector<8x1xf32> to vector<8x8xf32>
    %89 = arith.mulf %84, %88 : vector<8x8xf32>
    %cst_32 = arith.constant dense<0.000000e+00> : vector<8x8xf32>
    %90 = tpu.matmul %89, %76, %cst_32 {dimension_numbers = #tpu.dot_dimension_numbers<[1], [0], [0], [1], [0, 0, 1, 1], [], []>} : vector<8x8xf32>, vector<8x8xf32>, vector<8x8xf32> -> vector<8x8xf32>
    %c0_33 = arith.constant 0 : index
    %c16 = arith.constant 16 : index
    %91 = vector.load %arg20[%c0_33, %c16] : memref<16x32xf32, #tpu.memory_space<vmem>>, vector<8x8xf32>
    tpu.vector_store %arg20[%c0_33, %c16], %90 {strides = array<i32>} : memref<16x32xf32, #tpu.memory_space<vmem>>, vector<8x8xf32>,
    %92 = vector.extract_strided_slice %34 {offsets = [0, 24], sizes = [8, 8], strides = [1, 1]} : vector<16x32xf32> to vector<8x8xf32>
    %93 = vector.extract_strided_slice %35 {offsets = [0, 24], sizes = [8, 8], strides = [1, 1]} : vector<16x32xf32> to vector<8x8xf32>
    %94 = vector.extract_strided_slice %36 {offsets = [0, 24], sizes = [8, 8], strides = [1, 1]} : vector<16x32xf32> to vector<8x8xf32>
    "tpu.trace_start"() <{level = 10 : i32, message = "qd,kd->qk"}> : () -> ()
    %cst_34 = arith.constant dense<0.000000e+00> : vector<8x8xf32>
    %95 = tpu.matmul %92, %93, %cst_34 {dimension_numbers = #tpu.dot_dimension_numbers<[1], [1], [0], [0], [0, 0, 1, 0], [], []>} : vector<8x8xf32>, vector<8x8xf32>, vector<8x8xf32> -> vector<8x8xf32>
    "tpu.trace_stop"() : () -> ()
    %96 = vector.broadcast %37 : vector<1x8xf32> to vector<8x8xf32>
    %97 = arith.addf %95, %96 : vector<8x8xf32>
    %cst_35 = arith.constant dense<0xFF800000> : vector<8xf32>
    %98 = vector.multi_reduction <maximumf>, %97, %cst_35 [1] : vector<8x8xf32> to vector<8xf32>
    %99 = vector.shape_cast %98 : vector<8xf32> to vector<8x1xf32>
    %100 = vector.broadcast %99 : vector<8x1xf32> to vector<8x8xf32>
    %101 = arith.subf %97, %100 : vector<8x8xf32>
    %102 = math.exp %101 : vector<8x8xf32>
    %cst_36 = arith.constant dense<0.000000e+00> : vector<8xf32>
    %103 = vector.multi_reduction <add>, %102, %cst_36 [1] : vector<8x8xf32> to vector<8xf32>
    %104 = vector.shape_cast %103 : vector<8xf32> to vector<8x1xf32>
    %105 = tpu.reciprocal %104 {approx = true} : vector<8x1xf32> -> vector<8x1xf32>
    %106 = vector.broadcast %105 : vector<8x1xf32> to vector<8x8xf32>
    %107 = arith.mulf %102, %106 : vector<8x8xf32>
    %cst_37 = arith.constant dense<0.000000e+00> : vector<8x8xf32>
    %108 = tpu.matmul %107, %94, %cst_37 {dimension_numbers = #tpu.dot_dimension_numbers<[1], [0], [0], [1], [0, 0, 1, 1], [], []>} : vector<8x8xf32>, vector<8x8xf32>, vector<8x8xf32> -> vector<8x8xf32>
    %c0_38 = arith.constant 0 : index
    %c24 = arith.constant 24 : index
    %109 = vector.load %arg20[%c0_38, %c24] : memref<16x32xf32, #tpu.memory_space<vmem>>, vector<8x8xf32>
    tpu.vector_store %arg20[%c0_38, %c24], %108 {strides = array<i32>} : memref<16x32xf32, #tpu.memory_space<vmem>>, vector<8x8xf32>,
    %c1 = arith.constant 1 : index
    %c0_39 = arith.constant 0 : index
    %110 = vector.load %arg2[%c1, %c0_39] : memref<2x8xf32, #tpu.memory_space<vmem>>, vector<1x8xf32>
    %111 = vector.extract_strided_slice %34 {offsets = [8, 0], sizes = [8, 8], strides = [1, 1]} : vector<16x32xf32> to vector<8x8xf32>
    %112 = vector.extract_strided_slice %35 {offsets = [8, 0], sizes = [8, 8], strides = [1, 1]} : vector<16x32xf32> to vector<8x8xf32>
    %113 = vector.extract_strided_slice %36 {offsets = [8, 0], sizes = [8, 8], strides = [1, 1]} : vector<16x32xf32> to vector<8x8xf32>
    "tpu.trace_start"() <{level = 10 : i32, message = "qd,kd->qk"}> : () -> ()
    %cst_40 = arith.constant dense<0.000000e+00> : vector<8x8xf32>
    %114 = tpu.matmul %111, %112, %cst_40 {dimension_numbers = #tpu.dot_dimension_numbers<[1], [1], [0], [0], [0, 0, 1, 0], [], []>} : vector<8x8xf32>, vector<8x8xf32>, vector<8x8xf32> -> vector<8x8xf32>
    "tpu.trace_stop"() : () -> ()
    %115 = vector.broadcast %110 : vector<1x8xf32> to vector<8x8xf32>
    %116 = arith.addf %114, %115 : vector<8x8xf32>
    %cst_41 = arith.constant dense<0xFF800000> : vector<8xf32>
    %117 = vector.multi_reduction <maximumf>, %116, %cst_41 [1] : vector<8x8xf32> to vector<8xf32>
    %118 = vector.shape_cast %117 : vector<8xf32> to vector<8x1xf32>
    %119 = vector.broadcast %118 : vector<8x1xf32> to vector<8x8xf32>
    %120 = arith.subf %116, %119 : vector<8x8xf32>
    %121 = math.exp %120 : vector<8x8xf32>
    %cst_42 = arith.constant dense<0.000000e+00> : vector<8xf32>
    %122 = vector.multi_reduction <add>, %121, %cst_42 [1] : vector<8x8xf32> to vector<8xf32>
    %123 = vector.shape_cast %122 : vector<8xf32> to vector<8x1xf32>
    %124 = tpu.reciprocal %123 {approx = true} : vector<8x1xf32> -> vector<8x1xf32>
    %125 = vector.broadcast %124 : vector<8x1xf32> to vector<8x8xf32>
    %126 = arith.mulf %121, %125 : vector<8x8xf32>
    %cst_43 = arith.constant dense<0.000000e+00> : vector<8x8xf32>
    %127 = tpu.matmul %126, %113, %cst_43 {dimension_numbers = #tpu.dot_dimension_numbers<[1], [0], [0], [1], [0, 0, 1, 1], [], []>} : vector<8x8xf32>, vector<8x8xf32>, vector<8x8xf32> -> vector<8x8xf32>
    %c8_44 = arith.constant 8 : index
    %c0_45 = arith.constant 0 : index
    %128 = vector.load %arg20[%c8_44, %c0_45] : memref<16x32xf32, #tpu.memory_space<vmem>>, vector<8x8xf32>
    tpu.vector_store %arg20[%c8_44, %c0_45], %127 {strides = array<i32>} : memref<16x32xf32, #tpu.memory_space<vmem>>, vector<8x8xf32>,
    %129 = vector.extract_strided_slice %34 {offsets = [8, 8], sizes = [8, 8], strides = [1, 1]} : vector<16x32xf32> to vector<8x8xf32>
    %130 = vector.extract_strided_slice %35 {offsets = [8, 8], sizes = [8, 8], strides = [1, 1]} : vector<16x32xf32> to vector<8x8xf32>
    %131 = vector.extract_strided_slice %36 {offsets = [8, 8], sizes = [8, 8], strides = [1, 1]} : vector<16x32xf32> to vector<8x8xf32>
    "tpu.trace_start"() <{level = 10 : i32, message = "qd,kd->qk"}> : () -> ()
    %cst_46 = arith.constant dense<0.000000e+00> : vector<8x8xf32>
    %132 = tpu.matmul %129, %130, %cst_46 {dimension_numbers = #tpu.dot_dimension_numbers<[1], [1], [0], [0], [0, 0, 1, 0], [], []>} : vector<8x8xf32>, vector<8x8xf32>, vector<8x8xf32> -> vector<8x8xf32>
    "tpu.trace_stop"() : () -> ()
    %133 = vector.broadcast %110 : vector<1x8xf32> to vector<8x8xf32>
    %134 = arith.addf %132, %133 : vector<8x8xf32>
    %cst_47 = arith.constant dense<0xFF800000> : vector<8xf32>
    %135 = vector.multi_reduction <maximumf>, %134, %cst_47 [1] : vector<8x8xf32> to vector<8xf32>
    %136 = vector.shape_cast %135 : vector<8xf32> to vector<8x1xf32>
    %137 = vector.broadcast %136 : vector<8x1xf32> to vector<8x8xf32>
    %138 = arith.subf %134, %137 : vector<8x8xf32>
    %139 = math.exp %138 : vector<8x8xf32>
    %cst_48 = arith.constant dense<0.000000e+00> : vector<8xf32>
    %140 = vector.multi_reduction <add>, %139, %cst_48 [1] : vector<8x8xf32> to vector<8xf32>
    %141 = vector.shape_cast %140 : vector<8xf32> to vector<8x1xf32>
    %142 = tpu.reciprocal %141 {approx = true} : vector<8x1xf32> -> vector<8x1xf32>
    %143 = vector.broadcast %142 : vector<8x1xf32> to vector<8x8xf32>
    %144 = arith.mulf %139, %143 : vector<8x8xf32>
    %cst_49 = arith.constant dense<0.000000e+00> : vector<8x8xf32>
    %145 = tpu.matmul %144, %131, %cst_49 {dimension_numbers = #tpu.dot_dimension_numbers<[1], [0], [0], [1], [0, 0, 1, 1], [], []>} : vector<8x8xf32>, vector<8x8xf32>, vector<8x8xf32> -> vector<8x8xf32>
    %c8_50 = arith.constant 8 : index
    %c8_51 = arith.constant 8 : index
    %146 = vector.load %arg20[%c8_50, %c8_51] : memref<16x32xf32, #tpu.memory_space<vmem>>, vector<8x8xf32>
    tpu.vector_store %arg20[%c8_50, %c8_51], %145 {strides = array<i32>} : memref<16x32xf32, #tpu.memory_space<vmem>>, vector<8x8xf32>,
    %147 = vector.extract_strided_slice %34 {offsets = [8, 16], sizes = [8, 8], strides = [1, 1]} : vector<16x32xf32> to vector<8x8xf32>
    %148 = vector.extract_strided_slice %35 {offsets = [8, 16], sizes = [8, 8], strides = [1, 1]} : vector<16x32xf32> to vector<8x8xf32>
    %149 = vector.extract_strided_slice %36 {offsets = [8, 16], sizes = [8, 8], strides = [1, 1]} : vector<16x32xf32> to vector<8x8xf32>
    "tpu.trace_start"() <{level = 10 : i32, message = "qd,kd->qk"}> : () -> ()
    %cst_52 = arith.constant dense<0.000000e+00> : vector<8x8xf32>
    %150 = tpu.matmul %147, %148, %cst_52 {dimension_numbers = #tpu.dot_dimension_numbers<[1], [1], [0], [0], [0, 0, 1, 0], [], []>} : vector<8x8xf32>, vector<8x8xf32>, vector<8x8xf32> -> vector<8x8xf32>
    "tpu.trace_stop"() : () -> ()
    %151 = vector.broadcast %110 : vector<1x8xf32> to vector<8x8xf32>
    %152 = arith.addf %150, %151 : vector<8x8xf32>
    %cst_53 = arith.constant dense<0xFF800000> : vector<8xf32>
    %153 = vector.multi_reduction <maximumf>, %152, %cst_53 [1] : vector<8x8xf32> to vector<8xf32>
    %154 = vector.shape_cast %153 : vector<8xf32> to vector<8x1xf32>
    %155 = vector.broadcast %154 : vector<8x1xf32> to vector<8x8xf32>
    %156 = arith.subf %152, %155 : vector<8x8xf32>
    %157 = math.exp %156 : vector<8x8xf32>
    %cst_54 = arith.constant dense<0.000000e+00> : vector<8xf32>
    %158 = vector.multi_reduction <add>, %157, %cst_54 [1] : vector<8x8xf32> to vector<8xf32>
    %159 = vector.shape_cast %158 : vector<8xf32> to vector<8x1xf32>
    %160 = tpu.reciprocal %159 {approx = true} : vector<8x1xf32> -> vector<8x1xf32>
    %161 = vector.broadcast %160 : vector<8x1xf32> to vector<8x8xf32>
    %162 = arith.mulf %157, %161 : vector<8x8xf32>
    %cst_55 = arith.constant dense<0.000000e+00> : vector<8x8xf32>
    %163 = tpu.matmul %162, %149, %cst_55 {dimension_numbers = #tpu.dot_dimension_numbers<[1], [0], [0], [1], [0, 0, 1, 1], [], []>} : vector<8x8xf32>, vector<8x8xf32>, vector<8x8xf32> -> vector<8x8xf32>
    %c8_56 = arith.constant 8 : index
    %c16_57 = arith.constant 16 : index
    %164 = vector.load %arg20[%c8_56, %c16_57] : memref<16x32xf32, #tpu.memory_space<vmem>>, vector<8x8xf32>
    tpu.vector_store %arg20[%c8_56, %c16_57], %163 {strides = array<i32>} : memref<16x32xf32, #tpu.memory_space<vmem>>, vector<8x8xf32>,
    %165 = vector.extract_strided_slice %34 {offsets = [8, 24], sizes = [8, 8], strides = [1, 1]} : vector<16x32xf32> to vector<8x8xf32>
    %166 = vector.extract_strided_slice %35 {offsets = [8, 24], sizes = [8, 8], strides = [1, 1]} : vector<16x32xf32> to vector<8x8xf32>
    %167 = vector.extract_strided_slice %36 {offsets = [8, 24], sizes = [8, 8], strides = [1, 1]} : vector<16x32xf32> to vector<8x8xf32>
    "tpu.trace_start"() <{level = 10 : i32, message = "qd,kd->qk"}> : () -> ()
    %cst_58 = arith.constant dense<0.000000e+00> : vector<8x8xf32>
    %168 = tpu.matmul %165, %166, %cst_58 {dimension_numbers = #tpu.dot_dimension_numbers<[1], [1], [0], [0], [0, 0, 1, 0], [], []>} : vector<8x8xf32>, vector<8x8xf32>, vector<8x8xf32> -> vector<8x8xf32>
    "tpu.trace_stop"() : () -> ()
    %169 = vector.broadcast %110 : vector<1x8xf32> to vector<8x8xf32>
    %170 = arith.addf %168, %169 : vector<8x8xf32>
    %cst_59 = arith.constant dense<0xFF800000> : vector<8xf32>
    %171 = vector.multi_reduction <maximumf>, %170, %cst_59 [1] : vector<8x8xf32> to vector<8xf32>
    %172 = vector.shape_cast %171 : vector<8xf32> to vector<8x1xf32>
    %173 = vector.broadcast %172 : vector<8x1xf32> to vector<8x8xf32>
    %174 = arith.subf %170, %173 : vector<8x8xf32>
    %175 = math.exp %174 : vector<8x8xf32>
    %cst_60 = arith.constant dense<0.000000e+00> : vector<8xf32>
    %176 = vector.multi_reduction <add>, %175, %cst_60 [1] : vector<8x8xf32> to vector<8xf32>
    %177 = vector.shape_cast %176 : vector<8xf32> to vector<8x1xf32>
    %178 = tpu.reciprocal %177 {approx = true} : vector<8x1xf32> -> vector<8x1xf32>
    %179 = vector.broadcast %178 : vector<8x1xf32> to vector<8x8xf32>
    %180 = arith.mulf %175, %179 : vector<8x8xf32>
    %cst_61 = arith.constant dense<0.000000e+00> : vector<8x8xf32>
    %181 = tpu.matmul %180, %167, %cst_61 {dimension_numbers = #tpu.dot_dimension_numbers<[1], [0], [0], [1], [0, 0, 1, 1], [], []>} : vector<8x8xf32>, vector<8x8xf32>, vector<8x8xf32> -> vector<8x8xf32>
    %c8_62 = arith.constant 8 : index
    %c24_63 = arith.constant 24 : index
    %182 = vector.load %arg20[%c8_62, %c24_63] : memref<16x32xf32, #tpu.memory_space<vmem>>, vector<8x8xf32>
    tpu.vector_store %arg20[%c8_62, %c24_63], %181 {strides = array<i32>} : memref<16x32xf32, #tpu.memory_space<vmem>>, vector<8x8xf32>,
    %c0_64 = arith.constant 0 : index
    %c0_65 = arith.constant 0 : index
    %183 = vector.load %arg20[%c0_64, %c0_65] : memref<16x32xf32, #tpu.memory_space<vmem>>, vector<16x32xf32>
    %c0_66 = arith.constant 0 : index
    %c0_67 = arith.constant 0 : index
    %c0_68 = arith.constant 0 : index
    %184 = vector.load %arg7[%c0_66, %c0_67, %c0_68] : memref<2x32x32xf32, #tpu.memory_space<vmem>>, vector<1x32x32xf32>
    %185 = vector.shape_cast %184 : vector<1x32x32xf32> to vector<32x32xf32>
    %cst_69 = arith.constant dense<0.000000e+00> : vector<16x32xf32>
    %186 = tpu.matmul %183, %185, %cst_69 {dimension_numbers = #tpu.dot_dimension_numbers<[1], [0], [0], [1], [0, 0, 1, 1], [], []>} : vector<16x32xf32>, vector<32x32xf32>, vector<16x32xf32> -> vector<16x32xf32>
    %c0_70 = arith.constant 0 : index
    %c0_71 = arith.constant 0 : index
    %c0_72 = arith.constant 0 : index
    %187 = vector.load %arg8[%c0_70, %c0_71, %c0_72] : memref<2x1x32xf32, #tpu.memory_space<vmem>>, vector<1x1x32xf32>
    %188 = vector.shape_cast %187 : vector<1x1x32xf32> to vector<1x32xf32>
    %189 = vector.broadcast %188 : vector<1x32xf32> to vector<16x32xf32>
    %190 = arith.addf %186, %189 : vector<16x32xf32>
    %191 = arith.addf %26, %190 : vector<16x32xf32>
    %c0_73 = arith.constant 0 : index
    %c0_74 = arith.constant 0 : index
    %c0_75 = arith.constant 0 : index
    %192 = vector.load %arg9[%c0_73, %c0_74, %c0_75] : memref<2x1x32xf32, #tpu.memory_space<vmem>>, vector<1x1x32xf32>
    %193 = vector.shape_cast %192 : vector<1x1x32xf32> to vector<1x32xf32>
    %c0_76 = arith.constant 0 : index
    %c0_77 = arith.constant 0 : index
    %c0_78 = arith.constant 0 : index
    %194 = vector.load %arg10[%c0_76, %c0_77, %c0_78] : memref<2x1x32xf32, #tpu.memory_space<vmem>>, vector<1x1x32xf32>
    %195 = vector.shape_cast %194 : vector<1x1x32xf32> to vector<1x32xf32>
    %cst_79 = arith.constant dense<0.000000e+00> : vector<16xf32>
    %196 = vector.multi_reduction <add>, %191, %cst_79 [1] : vector<16x32xf32> to vector<16xf32>
    %197 = vector.shape_cast %196 : vector<16xf32> to vector<16x1xf32>
    %cst_80 = arith.constant 3.200000e+01 : f32
    %198 = vector.broadcast %cst_80 : f32 to vector<16x1xf32>
    %199 = arith.divf %197, %198 : vector<16x1xf32>
    %200 = vector.broadcast %199 : vector<16x1xf32> to vector<16x32xf32>
    %201 = arith.subf %191, %200 : vector<16x32xf32>
    %202 = vector.broadcast %199 : vector<16x1xf32> to vector<16x32xf32>
    %203 = arith.subf %191, %202 : vector<16x32xf32>
    %204 = arith.mulf %201, %203 : vector<16x32xf32>
    %cst_81 = arith.constant dense<0.000000e+00> : vector<16xf32>
    %205 = vector.multi_reduction <add>, %204, %cst_81 [1] : vector<16x32xf32> to vector<16xf32>
    %206 = vector.shape_cast %205 : vector<16xf32> to vector<16x1xf32>
    %cst_82 = arith.constant 3.200000e+01 : f32
    %207 = vector.broadcast %cst_82 : f32 to vector<16x1xf32>
    %208 = arith.divf %206, %207 : vector<16x1xf32>
    %209 = vector.broadcast %199 : vector<16x1xf32> to vector<16x32xf32>
    %210 = arith.subf %191, %209 : vector<16x32xf32>
    %cst_83 = arith.constant 9.99999974E-6 : f32
    %211 = vector.broadcast %cst_83 : f32 to vector<16x1xf32>
    %212 = arith.addf %208, %211 : vector<16x1xf32>
    %213 = math.rsqrt %212 : vector<16x1xf32>
    %214 = vector.broadcast %213 : vector<16x1xf32> to vector<16x32xf32>
    %215 = arith.mulf %210, %214 : vector<16x32xf32>
    %216 = vector.broadcast %193 : vector<1x32xf32> to vector<16x32xf32>
    %217 = arith.mulf %215, %216 : vector<16x32xf32>
    %218 = vector.broadcast %195 : vector<1x32xf32> to vector<16x32xf32>
    %219 = arith.addf %217, %218 : vector<16x32xf32>
    %c0_84 = arith.constant 0 : index
    %c0_85 = arith.constant 0 : index
    %c0_86 = arith.constant 0 : index
    %220 = vector.load %arg11[%c0_84, %c0_85, %c0_86] : memref<2x32x64xf32, #tpu.memory_space<vmem>>, vector<1x32x64xf32>
    %221 = vector.shape_cast %220 : vector<1x32x64xf32> to vector<32x64xf32>
    %cst_87 = arith.constant dense<0.000000e+00> : vector<16x64xf32>
    %222 = tpu.matmul %219, %221, %cst_87 {dimension_numbers = #tpu.dot_dimension_numbers<[1], [0], [0], [1], [0, 0, 1, 1], [], []>} : vector<16x32xf32>, vector<32x64xf32>, vector<16x64xf32> -> vector<16x64xf32>
    %c0_88 = arith.constant 0 : index
    %c0_89 = arith.constant 0 : index
    %c0_90 = arith.constant 0 : index
    %223 = vector.load %arg12[%c0_88, %c0_89, %c0_90] : memref<2x1x64xf32, #tpu.memory_space<vmem>>, vector<1x1x64xf32>
    %224 = vector.shape_cast %223 : vector<1x1x64xf32> to vector<1x64xf32>
    %225 = vector.broadcast %224 : vector<1x64xf32> to vector<16x64xf32>
    %226 = arith.addf %222, %225 : vector<16x64xf32>
    %cst_91 = arith.constant 5.000000e-01 : f32
    %227 = vector.broadcast %cst_91 : f32 to vector<16x64xf32>
    %228 = arith.mulf %227, %226 : vector<16x64xf32>
    %cst_92 = arith.constant 4.471500e-02 : f32
    %229 = vector.broadcast %cst_92 : f32 to vector<16x64xf32>
    %230 = arith.mulf %229, %226 : vector<16x64xf32>
    %231 = arith.mulf %230, %226 : vector<16x64xf32>
    %232 = arith.mulf %231, %226 : vector<16x64xf32>
    %233 = arith.addf %226, %232 : vector<16x64xf32>
    %cst_93 = arith.constant 0.797884583 : f32
    %234 = vector.broadcast %cst_93 : f32 to vector<16x64xf32>
    %235 = arith.mulf %234, %233 : vector<16x64xf32>
    %236 = math.tanh %235 : vector<16x64xf32>
    %cst_94 = arith.constant 1.000000e+00 : f32
    %237 = vector.broadcast %cst_94 : f32 to vector<16x64xf32>
    %238 = arith.addf %237, %236 : vector<16x64xf32>
    %239 = arith.mulf %228, %238 : vector<16x64xf32>
    %c0_95 = arith.constant 0 : index
    %c0_96 = arith.constant 0 : index
    %c0_97 = arith.constant 0 : index
    %240 = vector.load %arg13[%c0_95, %c0_96, %c0_97] : memref<2x64x32xf32, #tpu.memory_space<vmem>>, vector<1x64x32xf32>
    %241 = vector.shape_cast %240 : vector<1x64x32xf32> to vector<64x32xf32>
    %cst_98 = arith.constant dense<0.000000e+00> : vector<16x32xf32>
    %242 = tpu.matmul %239, %241, %cst_98 {dimension_numbers = #tpu.dot_dimension_numbers<[1], [0], [0], [1], [0, 0, 1, 1], [], []>} : vector<16x64xf32>, vector<64x32xf32>, vector<16x32xf32> -> vector<16x32xf32>
    %c0_99 = arith.constant 0 : index
    %c0_100 = arith.constant 0 : index
    %c0_101 = arith.constant 0 : index
    %243 = vector.load %arg14[%c0_99, %c0_100, %c0_101] : memref<2x1x32xf32, #tpu.memory_space<vmem>>, vector<1x1x32xf32>
    %244 = vector.shape_cast %243 : vector<1x1x32xf32> to vector<1x32xf32>
    %245 = vector.broadcast %244 : vector<1x32xf32> to vector<16x32xf32>
    %246 = arith.addf %242, %245 : vector<16x32xf32>
    %247 = arith.addf %219, %246 : vector<16x32xf32>
    %c0_102 = arith.constant 0 : index
    %c0_103 = arith.constant 0 : index
    %c0_104 = arith.constant 0 : index
    %248 = vector.load %arg15[%c0_102, %c0_103, %c0_104] : memref<2x1x32xf32, #tpu.memory_space<vmem>>, vector<1x1x32xf32>
    %249 = vector.shape_cast %248 : vector<1x1x32xf32> to vector<1x32xf32>
    %c0_105 = arith.constant 0 : index
    %c0_106 = arith.constant 0 : index
    %c0_107 = arith.constant 0 : index
    %250 = vector.load %arg16[%c0_105, %c0_106, %c0_107] : memref<2x1x32xf32, #tpu.memory_space<vmem>>, vector<1x1x32xf32>
    %251 = vector.shape_cast %250 : vector<1x1x32xf32> to vector<1x32xf32>
    %cst_108 = arith.constant dense<0.000000e+00> : vector<16xf32>
    %252 = vector.multi_reduction <add>, %247, %cst_108 [1] : vector<16x32xf32> to vector<16xf32>
    %253 = vector.shape_cast %252 : vector<16xf32> to vector<16x1xf32>
    %cst_109 = arith.constant 3.200000e+01 : f32
    %254 = vector.broadcast %cst_109 : f32 to vector<16x1xf32>
    %255 = arith.divf %253, %254 : vector<16x1xf32>
    %256 = vector.broadcast %255 : vector<16x1xf32> to vector<16x32xf32>
    %257 = arith.subf %247, %256 : vector<16x32xf32>
    %258 = vector.broadcast %255 : vector<16x1xf32> to vector<16x32xf32>
    %259 = arith.subf %247, %258 : vector<16x32xf32>
    %260 = arith.mulf %257, %259 : vector<16x32xf32>
    %cst_110 = arith.constant dense<0.000000e+00> : vector<16xf32>
    %261 = vector.multi_reduction <add>, %260, %cst_110 [1] : vector<16x32xf32> to vector<16xf32>
    %262 = vector.shape_cast %261 : vector<16xf32> to vector<16x1xf32>
    %cst_111 = arith.constant 3.200000e+01 : f32
    %263 = vector.broadcast %cst_111 : f32 to vector<16x1xf32>
    %264 = arith.divf %262, %263 : vector<16x1xf32>
    %265 = vector.broadcast %255 : vector<16x1xf32> to vector<16x32xf32>
    %266 = arith.subf %247, %265 : vector<16x32xf32>
    %cst_112 = arith.constant 9.99999974E-6 : f32
    %267 = vector.broadcast %cst_112 : f32 to vector<16x1xf32>
    %268 = arith.addf %264, %267 : vector<16x1xf32>
    %269 = math.rsqrt %268 : vector<16x1xf32>
    %270 = vector.broadcast %269 : vector<16x1xf32> to vector<16x32xf32>
    %271 = arith.mulf %266, %270 : vector<16x32xf32>
    %272 = vector.broadcast %249 : vector<1x32xf32> to vector<16x32xf32>
    %273 = arith.mulf %271, %272 : vector<16x32xf32>
    %274 = vector.broadcast %251 : vector<1x32xf32> to vector<16x32xf32>
    %275 = arith.addf %273, %274 : vector<16x32xf32>
    %c1_113 = arith.constant 1 : index
    %c0_114 = arith.constant 0 : index
    %c0_115 = arith.constant 0 : index
    %276 = vector.load %arg5[%c1_113, %c0_114, %c0_115] : memref<2x32x96xf32, #tpu.memory_space<vmem>>, vector<1x32x96xf32>
    %277 = vector.shape_cast %276 : vector<1x32x96xf32> to vector<32x96xf32>
    %cst_116 = arith.constant dense<0.000000e+00> : vector<16x96xf32>
    %278 = tpu.matmul %275, %277, %cst_116 {dimension_numbers = #tpu.dot_dimension_numbers<[1], [0], [0], [1], [0, 0, 1, 1], [], []>} : vector<16x32xf32>, vector<32x96xf32>, vector<16x96xf32> -> vector<16x96xf32>
    %c1_117 = arith.constant 1 : index
    %c0_118 = arith.constant 0 : index
    %c0_119 = arith.constant 0 : index
    %279 = vector.load %arg6[%c1_117, %c0_118, %c0_119] : memref<2x1x96xf32, #tpu.memory_space<vmem>>, vector<1x1x96xf32>
    %280 = vector.shape_cast %279 : vector<1x1x96xf32> to vector<1x96xf32>
    %281 = vector.broadcast %280 : vector<1x96xf32> to vector<16x96xf32>
    %282 = arith.addf %278, %281 : vector<16x96xf32>
    %283 = vector.extract_strided_slice %282 {offsets = [0, 0], sizes = [16, 32], strides = [1, 1]} : vector<16x96xf32> to vector<16x32xf32>
    %284 = vector.extract_strided_slice %282 {offsets = [0, 32], sizes = [16, 32], strides = [1, 1]} : vector<16x96xf32> to vector<16x32xf32>
    %285 = vector.extract_strided_slice %282 {offsets = [0, 64], sizes = [16, 32], strides = [1, 1]} : vector<16x96xf32> to vector<16x32xf32>
    %c0_120 = arith.constant 0 : index
    %c0_121 = arith.constant 0 : index
    %286 = vector.load %arg2[%c0_120, %c0_121] : memref<2x8xf32, #tpu.memory_space<vmem>>, vector<1x8xf32>
    %287 = vector.extract_strided_slice %283 {offsets = [0, 0], sizes = [8, 8], strides = [1, 1]} : vector<16x32xf32> to vector<8x8xf32>
    %288 = vector.extract_strided_slice %284 {offsets = [0, 0], sizes = [8, 8], strides = [1, 1]} : vector<16x32xf32> to vector<8x8xf32>
    %289 = vector.extract_strided_slice %285 {offsets = [0, 0], sizes = [8, 8], strides = [1, 1]} : vector<16x32xf32> to vector<8x8xf32>
    "tpu.trace_start"() <{level = 10 : i32, message = "qd,kd->qk"}> : () -> ()
    %cst_122 = arith.constant dense<0.000000e+00> : vector<8x8xf32>
    %290 = tpu.matmul %287, %288, %cst_122 {dimension_numbers = #tpu.dot_dimension_numbers<[1], [1], [0], [0], [0, 0, 1, 0], [], []>} : vector<8x8xf32>, vector<8x8xf32>, vector<8x8xf32> -> vector<8x8xf32>
    "tpu.trace_stop"() : () -> ()
    %291 = vector.broadcast %286 : vector<1x8xf32> to vector<8x8xf32>
    %292 = arith.addf %290, %291 : vector<8x8xf32>
    %cst_123 = arith.constant dense<0xFF800000> : vector<8xf32>
    %293 = vector.multi_reduction <maximumf>, %292, %cst_123 [1] : vector<8x8xf32> to vector<8xf32>
    %294 = vector.shape_cast %293 : vector<8xf32> to vector<8x1xf32>
    %295 = vector.broadcast %294 : vector<8x1xf32> to vector<8x8xf32>
    %296 = arith.subf %292, %295 : vector<8x8xf32>
    %297 = math.exp %296 : vector<8x8xf32>
    %cst_124 = arith.constant dense<0.000000e+00> : vector<8xf32>
    %298 = vector.multi_reduction <add>, %297, %cst_124 [1] : vector<8x8xf32> to vector<8xf32>
    %299 = vector.shape_cast %298 : vector<8xf32> to vector<8x1xf32>
    %300 = tpu.reciprocal %299 {approx = true} : vector<8x1xf32> -> vector<8x1xf32>
    %301 = vector.broadcast %300 : vector<8x1xf32> to vector<8x8xf32>
    %302 = arith.mulf %297, %301 : vector<8x8xf32>
    %cst_125 = arith.constant dense<0.000000e+00> : vector<8x8xf32>
    %303 = tpu.matmul %302, %289, %cst_125 {dimension_numbers = #tpu.dot_dimension_numbers<[1], [0], [0], [1], [0, 0, 1, 1], [], []>} : vector<8x8xf32>, vector<8x8xf32>, vector<8x8xf32> -> vector<8x8xf32>
    %c0_126 = arith.constant 0 : index
    %c0_127 = arith.constant 0 : index
    %304 = vector.load %arg20[%c0_126, %c0_127] : memref<16x32xf32, #tpu.memory_space<vmem>>, vector<8x8xf32>
    tpu.vector_store %arg20[%c0_126, %c0_127], %303 {strides = array<i32>} : memref<16x32xf32, #tpu.memory_space<vmem>>, vector<8x8xf32>,
    %305 = vector.extract_strided_slice %283 {offsets = [0, 8], sizes = [8, 8], strides = [1, 1]} : vector<16x32xf32> to vector<8x8xf32>
    %306 = vector.extract_strided_slice %284 {offsets = [0, 8], sizes = [8, 8], strides = [1, 1]} : vector<16x32xf32> to vector<8x8xf32>
    %307 = vector.extract_strided_slice %285 {offsets = [0, 8], sizes = [8, 8], strides = [1, 1]} : vector<16x32xf32> to vector<8x8xf32>
    "tpu.trace_start"() <{level = 10 : i32, message = "qd,kd->qk"}> : () -> ()
    %cst_128 = arith.constant dense<0.000000e+00> : vector<8x8xf32>
    %308 = tpu.matmul %305, %306, %cst_128 {dimension_numbers = #tpu.dot_dimension_numbers<[1], [1], [0], [0], [0, 0, 1, 0], [], []>} : vector<8x8xf32>, vector<8x8xf32>, vector<8x8xf32> -> vector<8x8xf32>
    "tpu.trace_stop"() : () -> ()
    %309 = vector.broadcast %286 : vector<1x8xf32> to vector<8x8xf32>
    %310 = arith.addf %308, %309 : vector<8x8xf32>
    %cst_129 = arith.constant dense<0xFF800000> : vector<8xf32>
    %311 = vector.multi_reduction <maximumf>, %310, %cst_129 [1] : vector<8x8xf32> to vector<8xf32>
    %312 = vector.shape_cast %311 : vector<8xf32> to vector<8x1xf32>
    %313 = vector.broadcast %312 : vector<8x1xf32> to vector<8x8xf32>
    %314 = arith.subf %310, %313 : vector<8x8xf32>
    %315 = math.exp %314 : vector<8x8xf32>
    %cst_130 = arith.constant dense<0.000000e+00> : vector<8xf32>
    %316 = vector.multi_reduction <add>, %315, %cst_130 [1] : vector<8x8xf32> to vector<8xf32>
    %317 = vector.shape_cast %316 : vector<8xf32> to vector<8x1xf32>
    %318 = tpu.reciprocal %317 {approx = true} : vector<8x1xf32> -> vector<8x1xf32>
    %319 = vector.broadcast %318 : vector<8x1xf32> to vector<8x8xf32>
    %320 = arith.mulf %315, %319 : vector<8x8xf32>
    %cst_131 = arith.constant dense<0.000000e+00> : vector<8x8xf32>
    %321 = tpu.matmul %320, %307, %cst_131 {dimension_numbers = #tpu.dot_dimension_numbers<[1], [0], [0], [1], [0, 0, 1, 1], [], []>} : vector<8x8xf32>, vector<8x8xf32>, vector<8x8xf32> -> vector<8x8xf32>
    %c0_132 = arith.constant 0 : index
    %c8_133 = arith.constant 8 : index
    %322 = vector.load %arg20[%c0_132, %c8_133] : memref<16x32xf32, #tpu.memory_space<vmem>>, vector<8x8xf32>
    tpu.vector_store %arg20[%c0_132, %c8_133], %321 {strides = array<i32>} : memref<16x32xf32, #tpu.memory_space<vmem>>, vector<8x8xf32>,
    %323 = vector.extract_strided_slice %283 {offsets = [0, 16], sizes = [8, 8], strides = [1, 1]} : vector<16x32xf32> to vector<8x8xf32>
    %324 = vector.extract_strided_slice %284 {offsets = [0, 16], sizes = [8, 8], strides = [1, 1]} : vector<16x32xf32> to vector<8x8xf32>
    %325 = vector.extract_strided_slice %285 {offsets = [0, 16], sizes = [8, 8], strides = [1, 1]} : vector<16x32xf32> to vector<8x8xf32>
    "tpu.trace_start"() <{level = 10 : i32, message = "qd,kd->qk"}> : () -> ()
    %cst_134 = arith.constant dense<0.000000e+00> : vector<8x8xf32>
    %326 = tpu.matmul %323, %324, %cst_134 {dimension_numbers = #tpu.dot_dimension_numbers<[1], [1], [0], [0], [0, 0, 1, 0], [], []>} : vector<8x8xf32>, vector<8x8xf32>, vector<8x8xf32> -> vector<8x8xf32>
    "tpu.trace_stop"() : () -> ()
    %327 = vector.broadcast %286 : vector<1x8xf32> to vector<8x8xf32>
    %328 = arith.addf %326, %327 : vector<8x8xf32>
    %cst_135 = arith.constant dense<0xFF800000> : vector<8xf32>
    %329 = vector.multi_reduction <maximumf>, %328, %cst_135 [1] : vector<8x8xf32> to vector<8xf32>
    %330 = vector.shape_cast %329 : vector<8xf32> to vector<8x1xf32>
    %331 = vector.broadcast %330 : vector<8x1xf32> to vector<8x8xf32>
    %332 = arith.subf %328, %331 : vector<8x8xf32>
    %333 = math.exp %332 : vector<8x8xf32>
    %cst_136 = arith.constant dense<0.000000e+00> : vector<8xf32>
    %334 = vector.multi_reduction <add>, %333, %cst_136 [1] : vector<8x8xf32> to vector<8xf32>
    %335 = vector.shape_cast %334 : vector<8xf32> to vector<8x1xf32>
    %336 = tpu.reciprocal %335 {approx = true} : vector<8x1xf32> -> vector<8x1xf32>
    %337 = vector.broadcast %336 : vector<8x1xf32> to vector<8x8xf32>
    %338 = arith.mulf %333, %337 : vector<8x8xf32>
    %cst_137 = arith.constant dense<0.000000e+00> : vector<8x8xf32>
    %339 = tpu.matmul %338, %325, %cst_137 {dimension_numbers = #tpu.dot_dimension_numbers<[1], [0], [0], [1], [0, 0, 1, 1], [], []>} : vector<8x8xf32>, vector<8x8xf32>, vector<8x8xf32> -> vector<8x8xf32>
    %c0_138 = arith.constant 0 : index
    %c16_139 = arith.constant 16 : index
    %340 = vector.load %arg20[%c0_138, %c16_139] : memref<16x32xf32, #tpu.memory_space<vmem>>, vector<8x8xf32>
    tpu.vector_store %arg20[%c0_138, %c16_139], %339 {strides = array<i32>} : memref<16x32xf32, #tpu.memory_space<vmem>>, vector<8x8xf32>,
    %341 = vector.extract_strided_slice %283 {offsets = [0, 24], sizes = [8, 8], strides = [1, 1]} : vector<16x32xf32> to vector<8x8xf32>
    %342 = vector.extract_strided_slice %284 {offsets = [0, 24], sizes = [8, 8], strides = [1, 1]} : vector<16x32xf32> to vector<8x8xf32>
    %343 = vector.extract_strided_slice %285 {offsets = [0, 24], sizes = [8, 8], strides = [1, 1]} : vector<16x32xf32> to vector<8x8xf32>
    "tpu.trace_start"() <{level = 10 : i32, message = "qd,kd->qk"}> : () -> ()
    %cst_140 = arith.constant dense<0.000000e+00> : vector<8x8xf32>
    %344 = tpu.matmul %341, %342, %cst_140 {dimension_numbers = #tpu.dot_dimension_numbers<[1], [1], [0], [0], [0, 0, 1, 0], [], []>} : vector<8x8xf32>, vector<8x8xf32>, vector<8x8xf32> -> vector<8x8xf32>
    "tpu.trace_stop"() : () -> ()
    %345 = vector.broadcast %286 : vector<1x8xf32> to vector<8x8xf32>
    %346 = arith.addf %344, %345 : vector<8x8xf32>
    %cst_141 = arith.constant dense<0xFF800000> : vector<8xf32>
    %347 = vector.multi_reduction <maximumf>, %346, %cst_141 [1] : vector<8x8xf32> to vector<8xf32>
    %348 = vector.shape_cast %347 : vector<8xf32> to vector<8x1xf32>
    %349 = vector.broadcast %348 : vector<8x1xf32> to vector<8x8xf32>
    %350 = arith.subf %346, %349 : vector<8x8xf32>
    %351 = math.exp %350 : vector<8x8xf32>
    %cst_142 = arith.constant dense<0.000000e+00> : vector<8xf32>
    %352 = vector.multi_reduction <add>, %351, %cst_142 [1] : vector<8x8xf32> to vector<8xf32>
    %353 = vector.shape_cast %352 : vector<8xf32> to vector<8x1xf32>
    %354 = tpu.reciprocal %353 {approx = true} : vector<8x1xf32> -> vector<8x1xf32>
    %355 = vector.broadcast %354 : vector<8x1xf32> to vector<8x8xf32>
    %356 = arith.mulf %351, %355 : vector<8x8xf32>
    %cst_143 = arith.constant dense<0.000000e+00> : vector<8x8xf32>
    %357 = tpu.matmul %356, %343, %cst_143 {dimension_numbers = #tpu.dot_dimension_numbers<[1], [0], [0], [1], [0, 0, 1, 1], [], []>} : vector<8x8xf32>, vector<8x8xf32>, vector<8x8xf32> -> vector<8x8xf32>
    %c0_144 = arith.constant 0 : index
    %c24_145 = arith.constant 24 : index
    %358 = vector.load %arg20[%c0_144, %c24_145] : memref<16x32xf32, #tpu.memory_space<vmem>>, vector<8x8xf32>
    tpu.vector_store %arg20[%c0_144, %c24_145], %357 {strides = array<i32>} : memref<16x32xf32, #tpu.memory_space<vmem>>, vector<8x8xf32>,
    %c1_146 = arith.constant 1 : index
    %c0_147 = arith.constant 0 : index
    %359 = vector.load %arg2[%c1_146, %c0_147] : memref<2x8xf32, #tpu.memory_space<vmem>>, vector<1x8xf32>
    %360 = vector.extract_strided_slice %283 {offsets = [8, 0], sizes = [8, 8], strides = [1, 1]} : vector<16x32xf32> to vector<8x8xf32>
    %361 = vector.extract_strided_slice %284 {offsets = [8, 0], sizes = [8, 8], strides = [1, 1]} : vector<16x32xf32> to vector<8x8xf32>
    %362 = vector.extract_strided_slice %285 {offsets = [8, 0], sizes = [8, 8], strides = [1, 1]} : vector<16x32xf32> to vector<8x8xf32>
    "tpu.trace_start"() <{level = 10 : i32, message = "qd,kd->qk"}> : () -> ()
    %cst_148 = arith.constant dense<0.000000e+00> : vector<8x8xf32>
    %363 = tpu.matmul %360, %361, %cst_148 {dimension_numbers = #tpu.dot_dimension_numbers<[1], [1], [0], [0], [0, 0, 1, 0], [], []>} : vector<8x8xf32>, vector<8x8xf32>, vector<8x8xf32> -> vector<8x8xf32>
    "tpu.trace_stop"() : () -> ()
    %364 = vector.broadcast %359 : vector<1x8xf32> to vector<8x8xf32>
    %365 = arith.addf %363, %364 : vector<8x8xf32>
    %cst_149 = arith.constant dense<0xFF800000> : vector<8xf32>
    %366 = vector.multi_reduction <maximumf>, %365, %cst_149 [1] : vector<8x8xf32> to vector<8xf32>
    %367 = vector.shape_cast %366 : vector<8xf32> to vector<8x1xf32>
    %368 = vector.broadcast %367 : vector<8x1xf32> to vector<8x8xf32>
    %369 = arith.subf %365, %368 : vector<8x8xf32>
    %370 = math.exp %369 : vector<8x8xf32>
    %cst_150 = arith.constant dense<0.000000e+00> : vector<8xf32>
    %371 = vector.multi_reduction <add>, %370, %cst_150 [1] : vector<8x8xf32> to vector<8xf32>
    %372 = vector.shape_cast %371 : vector<8xf32> to vector<8x1xf32>
    %373 = tpu.reciprocal %372 {approx = true} : vector<8x1xf32> -> vector<8x1xf32>
    %374 = vector.broadcast %373 : vector<8x1xf32> to vector<8x8xf32>
    %375 = arith.mulf %370, %374 : vector<8x8xf32>
    %cst_151 = arith.constant dense<0.000000e+00> : vector<8x8xf32>
    %376 = tpu.matmul %375, %362, %cst_151 {dimension_numbers = #tpu.dot_dimension_numbers<[1], [0], [0], [1], [0, 0, 1, 1], [], []>} : vector<8x8xf32>, vector<8x8xf32>, vector<8x8xf32> -> vector<8x8xf32>
    %c8_152 = arith.constant 8 : index
    %c0_153 = arith.constant 0 : index
    %377 = vector.load %arg20[%c8_152, %c0_153] : memref<16x32xf32, #tpu.memory_space<vmem>>, vector<8x8xf32>
    tpu.vector_store %arg20[%c8_152, %c0_153], %376 {strides = array<i32>} : memref<16x32xf32, #tpu.memory_space<vmem>>, vector<8x8xf32>,
    %378 = vector.extract_strided_slice %283 {offsets = [8, 8], sizes = [8, 8], strides = [1, 1]} : vector<16x32xf32> to vector<8x8xf32>
    %379 = vector.extract_strided_slice %284 {offsets = [8, 8], sizes = [8, 8], strides = [1, 1]} : vector<16x32xf32> to vector<8x8xf32>
    %380 = vector.extract_strided_slice %285 {offsets = [8, 8], sizes = [8, 8], strides = [1, 1]} : vector<16x32xf32> to vector<8x8xf32>
    "tpu.trace_start"() <{level = 10 : i32, message = "qd,kd->qk"}> : () -> ()
    %cst_154 = arith.constant dense<0.000000e+00> : vector<8x8xf32>
    %381 = tpu.matmul %378, %379, %cst_154 {dimension_numbers = #tpu.dot_dimension_numbers<[1], [1], [0], [0], [0, 0, 1, 0], [], []>} : vector<8x8xf32>, vector<8x8xf32>, vector<8x8xf32> -> vector<8x8xf32>
    "tpu.trace_stop"() : () -> ()
    %382 = vector.broadcast %359 : vector<1x8xf32> to vector<8x8xf32>
    %383 = arith.addf %381, %382 : vector<8x8xf32>
    %cst_155 = arith.constant dense<0xFF800000> : vector<8xf32>
    %384 = vector.multi_reduction <maximumf>, %383, %cst_155 [1] : vector<8x8xf32> to vector<8xf32>
    %385 = vector.shape_cast %384 : vector<8xf32> to vector<8x1xf32>
    %386 = vector.broadcast %385 : vector<8x1xf32> to vector<8x8xf32>
    %387 = arith.subf %383, %386 : vector<8x8xf32>
    %388 = math.exp %387 : vector<8x8xf32>
    %cst_156 = arith.constant dense<0.000000e+00> : vector<8xf32>
    %389 = vector.multi_reduction <add>, %388, %cst_156 [1] : vector<8x8xf32> to vector<8xf32>
    %390 = vector.shape_cast %389 : vector<8xf32> to vector<8x1xf32>
    %391 = tpu.reciprocal %390 {approx = true} : vector<8x1xf32> -> vector<8x1xf32>
    %392 = vector.broadcast %391 : vector<8x1xf32> to vector<8x8xf32>
    %393 = arith.mulf %388, %392 : vector<8x8xf32>
    %cst_157 = arith.constant dense<0.000000e+00> : vector<8x8xf32>
    %394 = tpu.matmul %393, %380, %cst_157 {dimension_numbers = #tpu.dot_dimension_numbers<[1], [0], [0], [1], [0, 0, 1, 1], [], []>} : vector<8x8xf32>, vector<8x8xf32>, vector<8x8xf32> -> vector<8x8xf32>
    %c8_158 = arith.constant 8 : index
    %c8_159 = arith.constant 8 : index
    %395 = vector.load %arg20[%c8_158, %c8_159] : memref<16x32xf32, #tpu.memory_space<vmem>>, vector<8x8xf32>
    tpu.vector_store %arg20[%c8_158, %c8_159], %394 {strides = array<i32>} : memref<16x32xf32, #tpu.memory_space<vmem>>, vector<8x8xf32>,
    %396 = vector.extract_strided_slice %283 {offsets = [8, 16], sizes = [8, 8], strides = [1, 1]} : vector<16x32xf32> to vector<8x8xf32>
    %397 = vector.extract_strided_slice %284 {offsets = [8, 16], sizes = [8, 8], strides = [1, 1]} : vector<16x32xf32> to vector<8x8xf32>
    %398 = vector.extract_strided_slice %285 {offsets = [8, 16], sizes = [8, 8], strides = [1, 1]} : vector<16x32xf32> to vector<8x8xf32>
    "tpu.trace_start"() <{level = 10 : i32, message = "qd,kd->qk"}> : () -> ()
    %cst_160 = arith.constant dense<0.000000e+00> : vector<8x8xf32>
    %399 = tpu.matmul %396, %397, %cst_160 {dimension_numbers = #tpu.dot_dimension_numbers<[1], [1], [0], [0], [0, 0, 1, 0], [], []>} : vector<8x8xf32>, vector<8x8xf32>, vector<8x8xf32> -> vector<8x8xf32>
    "tpu.trace_stop"() : () -> ()
    %400 = vector.broadcast %359 : vector<1x8xf32> to vector<8x8xf32>
    %401 = arith.addf %399, %400 : vector<8x8xf32>
    %cst_161 = arith.constant dense<0xFF800000> : vector<8xf32>
    %402 = vector.multi_reduction <maximumf>, %401, %cst_161 [1] : vector<8x8xf32> to vector<8xf32>
    %403 = vector.shape_cast %402 : vector<8xf32> to vector<8x1xf32>
    %404 = vector.broadcast %403 : vector<8x1xf32> to vector<8x8xf32>
    %405 = arith.subf %401, %404 : vector<8x8xf32>
    %406 = math.exp %405 : vector<8x8xf32>
    %cst_162 = arith.constant dense<0.000000e+00> : vector<8xf32>
    %407 = vector.multi_reduction <add>, %406, %cst_162 [1] : vector<8x8xf32> to vector<8xf32>
    %408 = vector.shape_cast %407 : vector<8xf32> to vector<8x1xf32>
    %409 = tpu.reciprocal %408 {approx = true} : vector<8x1xf32> -> vector<8x1xf32>
    %410 = vector.broadcast %409 : vector<8x1xf32> to vector<8x8xf32>
    %411 = arith.mulf %406, %410 : vector<8x8xf32>
    %cst_163 = arith.constant dense<0.000000e+00> : vector<8x8xf32>
    %412 = tpu.matmul %411, %398, %cst_163 {dimension_numbers = #tpu.dot_dimension_numbers<[1], [0], [0], [1], [0, 0, 1, 1], [], []>} : vector<8x8xf32>, vector<8x8xf32>, vector<8x8xf32> -> vector<8x8xf32>
    %c8_164 = arith.constant 8 : index
    %c16_165 = arith.constant 16 : index
    %413 = vector.load %arg20[%c8_164, %c16_165] : memref<16x32xf32, #tpu.memory_space<vmem>>, vector<8x8xf32>
    tpu.vector_store %arg20[%c8_164, %c16_165], %412 {strides = array<i32>} : memref<16x32xf32, #tpu.memory_space<vmem>>, vector<8x8xf32>,
    %414 = vector.extract_strided_slice %283 {offsets = [8, 24], sizes = [8, 8], strides = [1, 1]} : vector<16x32xf32> to vector<8x8xf32>
    %415 = vector.extract_strided_slice %284 {offsets = [8, 24], sizes = [8, 8], strides = [1, 1]} : vector<16x32xf32> to vector<8x8xf32>
    %416 = vector.extract_strided_slice %285 {offsets = [8, 24], sizes = [8, 8], strides = [1, 1]} : vector<16x32xf32> to vector<8x8xf32>
    "tpu.trace_start"() <{level = 10 : i32, message = "qd,kd->qk"}> : () -> ()
    %cst_166 = arith.constant dense<0.000000e+00> : vector<8x8xf32>
    %417 = tpu.matmul %414, %415, %cst_166 {dimension_numbers = #tpu.dot_dimension_numbers<[1], [1], [0], [0], [0, 0, 1, 0], [], []>} : vector<8x8xf32>, vector<8x8xf32>, vector<8x8xf32> -> vector<8x8xf32>
    "tpu.trace_stop"() : () -> ()
    %418 = vector.broadcast %359 : vector<1x8xf32> to vector<8x8xf32>
    %419 = arith.addf %417, %418 : vector<8x8xf32>
    %cst_167 = arith.constant dense<0xFF800000> : vector<8xf32>
    %420 = vector.multi_reduction <maximumf>, %419, %cst_167 [1] : vector<8x8xf32> to vector<8xf32>
    %421 = vector.shape_cast %420 : vector<8xf32> to vector<8x1xf32>
    %422 = vector.broadcast %421 : vector<8x1xf32> to vector<8x8xf32>
    %423 = arith.subf %419, %422 : vector<8x8xf32>
    %424 = math.exp %423 : vector<8x8xf32>
    %cst_168 = arith.constant dense<0.000000e+00> : vector<8xf32>
    %425 = vector.multi_reduction <add>, %424, %cst_168 [1] : vector<8x8xf32> to vector<8xf32>
    %426 = vector.shape_cast %425 : vector<8xf32> to vector<8x1xf32>
    %427 = tpu.reciprocal %426 {approx = true} : vector<8x1xf32> -> vector<8x1xf32>
    %428 = vector.broadcast %427 : vector<8x1xf32> to vector<8x8xf32>
    %429 = arith.mulf %424, %428 : vector<8x8xf32>
    %cst_169 = arith.constant dense<0.000000e+00> : vector<8x8xf32>
    %430 = tpu.matmul %429, %416, %cst_169 {dimension_numbers = #tpu.dot_dimension_numbers<[1], [0], [0], [1], [0, 0, 1, 1], [], []>} : vector<8x8xf32>, vector<8x8xf32>, vector<8x8xf32> -> vector<8x8xf32>
    %c8_170 = arith.constant 8 : index
    %c24_171 = arith.constant 24 : index
    %431 = vector.load %arg20[%c8_170, %c24_171] : memref<16x32xf32, #tpu.memory_space<vmem>>, vector<8x8xf32>
    tpu.vector_store %arg20[%c8_170, %c24_171], %430 {strides = array<i32>} : memref<16x32xf32, #tpu.memory_space<vmem>>, vector<8x8xf32>,
    %c0_172 = arith.constant 0 : index
    %c0_173 = arith.constant 0 : index
    %432 = vector.load %arg20[%c0_172, %c0_173] : memref<16x32xf32, #tpu.memory_space<vmem>>, vector<16x32xf32>
    %c1_174 = arith.constant 1 : index
    %c0_175 = arith.constant 0 : index
    %c0_176 = arith.constant 0 : index
    %433 = vector.load %arg7[%c1_174, %c0_175, %c0_176] : memref<2x32x32xf32, #tpu.memory_space<vmem>>, vector<1x32x32xf32>
    %434 = vector.shape_cast %433 : vector<1x32x32xf32> to vector<32x32xf32>
    %cst_177 = arith.constant dense<0.000000e+00> : vector<16x32xf32>
    %435 = tpu.matmul %432, %434, %cst_177 {dimension_numbers = #tpu.dot_dimension_numbers<[1], [0], [0], [1], [0, 0, 1, 1], [], []>} : vector<16x32xf32>, vector<32x32xf32>, vector<16x32xf32> -> vector<16x32xf32>
    %c1_178 = arith.constant 1 : index
    %c0_179 = arith.constant 0 : index
    %c0_180 = arith.constant 0 : index
    %436 = vector.load %arg8[%c1_178, %c0_179, %c0_180] : memref<2x1x32xf32, #tpu.memory_space<vmem>>, vector<1x1x32xf32>
    %437 = vector.shape_cast %436 : vector<1x1x32xf32> to vector<1x32xf32>
    %438 = vector.broadcast %437 : vector<1x32xf32> to vector<16x32xf32>
    %439 = arith.addf %435, %438 : vector<16x32xf32>
    %440 = arith.addf %275, %439 : vector<16x32xf32>
    %c1_181 = arith.constant 1 : index
    %c0_182 = arith.constant 0 : index
    %c0_183 = arith.constant 0 : index
    %441 = vector.load %arg9[%c1_181, %c0_182, %c0_183] : memref<2x1x32xf32, #tpu.memory_space<vmem>>, vector<1x1x32xf32>
    %442 = vector.shape_cast %441 : vector<1x1x32xf32> to vector<1x32xf32>
    %c1_184 = arith.constant 1 : index
    %c0_185 = arith.constant 0 : index
    %c0_186 = arith.constant 0 : index
    %443 = vector.load %arg10[%c1_184, %c0_185, %c0_186] : memref<2x1x32xf32, #tpu.memory_space<vmem>>, vector<1x1x32xf32>
    %444 = vector.shape_cast %443 : vector<1x1x32xf32> to vector<1x32xf32>
    %cst_187 = arith.constant dense<0.000000e+00> : vector<16xf32>
    %445 = vector.multi_reduction <add>, %440, %cst_187 [1] : vector<16x32xf32> to vector<16xf32>
    %446 = vector.shape_cast %445 : vector<16xf32> to vector<16x1xf32>
    %cst_188 = arith.constant 3.200000e+01 : f32
    %447 = vector.broadcast %cst_188 : f32 to vector<16x1xf32>
    %448 = arith.divf %446, %447 : vector<16x1xf32>
    %449 = vector.broadcast %448 : vector<16x1xf32> to vector<16x32xf32>
    %450 = arith.subf %440, %449 : vector<16x32xf32>
    %451 = vector.broadcast %448 : vector<16x1xf32> to vector<16x32xf32>
    %452 = arith.subf %440, %451 : vector<16x32xf32>
    %453 = arith.mulf %450, %452 : vector<16x32xf32>
    %cst_189 = arith.constant dense<0.000000e+00> : vector<16xf32>
    %454 = vector.multi_reduction <add>, %453, %cst_189 [1] : vector<16x32xf32> to vector<16xf32>
    %455 = vector.shape_cast %454 : vector<16xf32> to vector<16x1xf32>
    %cst_190 = arith.constant 3.200000e+01 : f32
    %456 = vector.broadcast %cst_190 : f32 to vector<16x1xf32>
    %457 = arith.divf %455, %456 : vector<16x1xf32>
    %458 = vector.broadcast %448 : vector<16x1xf32> to vector<16x32xf32>
    %459 = arith.subf %440, %458 : vector<16x32xf32>
    %cst_191 = arith.constant 9.99999974E-6 : f32
    %460 = vector.broadcast %cst_191 : f32 to vector<16x1xf32>
    %461 = arith.addf %457, %460 : vector<16x1xf32>
    %462 = math.rsqrt %461 : vector<16x1xf32>
    %463 = vector.broadcast %462 : vector<16x1xf32> to vector<16x32xf32>
    %464 = arith.mulf %459, %463 : vector<16x32xf32>
    %465 = vector.broadcast %442 : vector<1x32xf32> to vector<16x32xf32>
    %466 = arith.mulf %464, %465 : vector<16x32xf32>
    %467 = vector.broadcast %444 : vector<1x32xf32> to vector<16x32xf32>
    %468 = arith.addf %466, %467 : vector<16x32xf32>
    %c1_192 = arith.constant 1 : index
    %c0_193 = arith.constant 0 : index
    %c0_194 = arith.constant 0 : index
    %469 = vector.load %arg11[%c1_192, %c0_193, %c0_194] : memref<2x32x64xf32, #tpu.memory_space<vmem>>, vector<1x32x64xf32>
    %470 = vector.shape_cast %469 : vector<1x32x64xf32> to vector<32x64xf32>
    %cst_195 = arith.constant dense<0.000000e+00> : vector<16x64xf32>
    %471 = tpu.matmul %468, %470, %cst_195 {dimension_numbers = #tpu.dot_dimension_numbers<[1], [0], [0], [1], [0, 0, 1, 1], [], []>} : vector<16x32xf32>, vector<32x64xf32>, vector<16x64xf32> -> vector<16x64xf32>
    %c1_196 = arith.constant 1 : index
    %c0_197 = arith.constant 0 : index
    %c0_198 = arith.constant 0 : index
    %472 = vector.load %arg12[%c1_196, %c0_197, %c0_198] : memref<2x1x64xf32, #tpu.memory_space<vmem>>, vector<1x1x64xf32>
    %473 = vector.shape_cast %472 : vector<1x1x64xf32> to vector<1x64xf32>
    %474 = vector.broadcast %473 : vector<1x64xf32> to vector<16x64xf32>
    %475 = arith.addf %471, %474 : vector<16x64xf32>
    %cst_199 = arith.constant 5.000000e-01 : f32
    %476 = vector.broadcast %cst_199 : f32 to vector<16x64xf32>
    %477 = arith.mulf %476, %475 : vector<16x64xf32>
    %cst_200 = arith.constant 4.471500e-02 : f32
    %478 = vector.broadcast %cst_200 : f32 to vector<16x64xf32>
    %479 = arith.mulf %478, %475 : vector<16x64xf32>
    %480 = arith.mulf %479, %475 : vector<16x64xf32>
    %481 = arith.mulf %480, %475 : vector<16x64xf32>
    %482 = arith.addf %475, %481 : vector<16x64xf32>
    %cst_201 = arith.constant 0.797884583 : f32
    %483 = vector.broadcast %cst_201 : f32 to vector<16x64xf32>
    %484 = arith.mulf %483, %482 : vector<16x64xf32>
    %485 = math.tanh %484 : vector<16x64xf32>
    %cst_202 = arith.constant 1.000000e+00 : f32
    %486 = vector.broadcast %cst_202 : f32 to vector<16x64xf32>
    %487 = arith.addf %486, %485 : vector<16x64xf32>
    %488 = arith.mulf %477, %487 : vector<16x64xf32>
    %c1_203 = arith.constant 1 : index
    %c0_204 = arith.constant 0 : index
    %c0_205 = arith.constant 0 : index
    %489 = vector.load %arg13[%c1_203, %c0_204, %c0_205] : memref<2x64x32xf32, #tpu.memory_space<vmem>>, vector<1x64x32xf32>
    %490 = vector.shape_cast %489 : vector<1x64x32xf32> to vector<64x32xf32>
    %cst_206 = arith.constant dense<0.000000e+00> : vector<16x32xf32>
    %491 = tpu.matmul %488, %490, %cst_206 {dimension_numbers = #tpu.dot_dimension_numbers<[1], [0], [0], [1], [0, 0, 1, 1], [], []>} : vector<16x64xf32>, vector<64x32xf32>, vector<16x32xf32> -> vector<16x32xf32>
    %c1_207 = arith.constant 1 : index
    %c0_208 = arith.constant 0 : index
    %c0_209 = arith.constant 0 : index
    %492 = vector.load %arg14[%c1_207, %c0_208, %c0_209] : memref<2x1x32xf32, #tpu.memory_space<vmem>>, vector<1x1x32xf32>
    %493 = vector.shape_cast %492 : vector<1x1x32xf32> to vector<1x32xf32>
    %494 = vector.broadcast %493 : vector<1x32xf32> to vector<16x32xf32>
    %495 = arith.addf %491, %494 : vector<16x32xf32>
    %496 = arith.addf %468, %495 : vector<16x32xf32>
    %c1_210 = arith.constant 1 : index
    %c0_211 = arith.constant 0 : index
    %c0_212 = arith.constant 0 : index
    %497 = vector.load %arg15[%c1_210, %c0_211, %c0_212] : memref<2x1x32xf32, #tpu.memory_space<vmem>>, vector<1x1x32xf32>
    %498 = vector.shape_cast %497 : vector<1x1x32xf32> to vector<1x32xf32>
    %c1_213 = arith.constant 1 : index
    %c0_214 = arith.constant 0 : index
    %c0_215 = arith.constant 0 : index
    %499 = vector.load %arg16[%c1_213, %c0_214, %c0_215] : memref<2x1x32xf32, #tpu.memory_space<vmem>>, vector<1x1x32xf32>
    %500 = vector.shape_cast %499 : vector<1x1x32xf32> to vector<1x32xf32>
    %cst_216 = arith.constant dense<0.000000e+00> : vector<16xf32>
    %501 = vector.multi_reduction <add>, %496, %cst_216 [1] : vector<16x32xf32> to vector<16xf32>
    %502 = vector.shape_cast %501 : vector<16xf32> to vector<16x1xf32>
    %cst_217 = arith.constant 3.200000e+01 : f32
    %503 = vector.broadcast %cst_217 : f32 to vector<16x1xf32>
    %504 = arith.divf %502, %503 : vector<16x1xf32>
    %505 = vector.broadcast %504 : vector<16x1xf32> to vector<16x32xf32>
    %506 = arith.subf %496, %505 : vector<16x32xf32>
    %507 = vector.broadcast %504 : vector<16x1xf32> to vector<16x32xf32>
    %508 = arith.subf %496, %507 : vector<16x32xf32>
    %509 = arith.mulf %506, %508 : vector<16x32xf32>
    %cst_218 = arith.constant dense<0.000000e+00> : vector<16xf32>
    %510 = vector.multi_reduction <add>, %509, %cst_218 [1] : vector<16x32xf32> to vector<16xf32>
    %511 = vector.shape_cast %510 : vector<16xf32> to vector<16x1xf32>
    %cst_219 = arith.constant 3.200000e+01 : f32
    %512 = vector.broadcast %cst_219 : f32 to vector<16x1xf32>
    %513 = arith.divf %511, %512 : vector<16x1xf32>
    %514 = vector.broadcast %504 : vector<16x1xf32> to vector<16x32xf32>
    %515 = arith.subf %496, %514 : vector<16x32xf32>
    %cst_220 = arith.constant 9.99999974E-6 : f32
    %516 = vector.broadcast %cst_220 : f32 to vector<16x1xf32>
    %517 = arith.addf %513, %516 : vector<16x1xf32>
    %518 = math.rsqrt %517 : vector<16x1xf32>
    %519 = vector.broadcast %518 : vector<16x1xf32> to vector<16x32xf32>
    %520 = arith.mulf %515, %519 : vector<16x32xf32>
    %521 = vector.broadcast %498 : vector<1x32xf32> to vector<16x32xf32>
    %522 = arith.mulf %520, %521 : vector<16x32xf32>
    %523 = vector.broadcast %500 : vector<1x32xf32> to vector<16x32xf32>
    %524 = arith.addf %522, %523 : vector<16x32xf32>
    %c0_221 = arith.constant 0 : index
    %c0_222 = arith.constant 0 : index
    %525 = vector.load %arg17[%c0_221, %c0_222] : memref<1x32xf32, #tpu.memory_space<vmem>>, vector<1x32xf32>
    %c0_223 = arith.constant 0 : index
    %c0_224 = arith.constant 0 : index
    %526 = vector.load %arg18[%c0_223, %c0_224] : memref<1x1xf32, #tpu.memory_space<vmem>>, vector<1x1xf32>
    %527 = vector.extract_strided_slice %524 {offsets = [0, 0], sizes = [1, 32], strides = [1, 1]} : vector<16x32xf32> to vector<1x32xf32>
    %528 = arith.mulf %527, %525 : vector<1x32xf32>
    %cst_225 = arith.constant dense<0.000000e+00> : vector<1xf32>
    %529 = vector.multi_reduction <add>, %528, %cst_225 [1] : vector<1x32xf32> to vector<1xf32>
    %530 = vector.shape_cast %529 : vector<1xf32> to vector<1x1xf32>
    %531 = arith.addf %530, %526 : vector<1x1xf32>
    %532 = vector.shape_cast %531 : vector<1x1xf32> to vector<1x1xf32>
    %533 = vector.broadcast %532 : vector<1x1xf32> to vector<1x128xf32>
    %c0_226 = arith.constant 0 : index
    %c0_227 = arith.constant 0 : index
    %534 = vector.load %arg19[%c0_226, %c0_227] : memref<2x128xf32, #tpu.memory_space<vmem>>, vector<1x128xf32>
    tpu.vector_store %arg19[%c0_226, %c0_227], %533 {strides = array<i32>} : memref<2x128xf32, #tpu.memory_space<vmem>>, vector<1x128xf32>,
    %535 = vector.extract_strided_slice %524 {offsets = [8, 0], sizes = [1, 32], strides = [1, 1]} : vector<16x32xf32> to vector<1x32xf32>
    %536 = arith.mulf %535, %525 : vector<1x32xf32>
    %cst_228 = arith.constant dense<0.000000e+00> : vector<1xf32>
    %537 = vector.multi_reduction <add>, %536, %cst_228 [1] : vector<1x32xf32> to vector<1xf32>
    %538 = vector.shape_cast %537 : vector<1xf32> to vector<1x1xf32>
    %539 = arith.addf %538, %526 : vector<1x1xf32>
    %540 = vector.shape_cast %539 : vector<1x1xf32> to vector<1x1xf32>
    %541 = vector.broadcast %540 : vector<1x1xf32> to vector<1x128xf32>
    %c1_229 = arith.constant 1 : index
    %c0_230 = arith.constant 0 : index
    %542 = vector.load %arg19[%c1_229, %c0_230] : memref<2x128xf32, #tpu.memory_space<vmem>>, vector<1x128xf32>
    tpu.vector_store %arg19[%c1_229, %c0_230], %541 {strides = array<i32>} : memref<2x128xf32, #tpu.memory_space<vmem>>, vector<1x128xf32>,
    return
  }
  func.func @transform_0(%arg0: i32) -> (i32, i32) {
    %c0_i32 = arith.constant 0 : i32
    %c0_i32_0 = arith.constant 0 : i32
    %c0_i32_1 = arith.constant 0 : i32
    return %c0_i32, %c0_i32_0 : i32, i32
  }
  func.func @transform_1(%arg0: i32) -> (i32, i32) {
    %c0_i32 = arith.constant 0 : i32
    %c0_i32_0 = arith.constant 0 : i32
    %c0_i32_1 = arith.constant 0 : i32
    return %c0_i32, %c0_i32_0 : i32, i32
  }
  func.func @transform_2(%arg0: i32) -> (i32, i32) {
    %c0_i32 = arith.constant 0 : i32
    %c0_i32_0 = arith.constant 0 : i32
    %c0_i32_1 = arith.constant 0 : i32
    return %c0_i32, %c0_i32_0 : i32, i32
  }
  func.func @transform_3(%arg0: i32) -> (i32, i32) {
    %c0_i32 = arith.constant 0 : i32
    %c0_i32_0 = arith.constant 0 : i32
    %c0_i32_1 = arith.constant 0 : i32
    return %c0_i32, %c0_i32_0 : i32, i32
  }
  func.func @transform_4(%arg0: i32) -> (i32, i32, i32) {
    %c0_i32 = arith.constant 0 : i32
    %c0_i32_0 = arith.constant 0 : i32
    %c0_i32_1 = arith.constant 0 : i32
    %c0_i32_2 = arith.constant 0 : i32
    return %c0_i32, %c0_i32_0, %c0_i32_1 : i32, i32, i32
  }
  func.func @transform_5(%arg0: i32) -> (i32, i32, i32) {
    %c0_i32 = arith.constant 0 : i32
    %c0_i32_0 = arith.constant 0 : i32
    %c0_i32_1 = arith.constant 0 : i32
    %c0_i32_2 = arith.constant 0 : i32
    return %c0_i32, %c0_i32_0, %c0_i32_1 : i32, i32, i32
  }
  func.func @transform_6(%arg0: i32) -> (i32, i32, i32) {
    %c0_i32 = arith.constant 0 : i32
    %c0_i32_0 = arith.constant 0 : i32
    %c0_i32_1 = arith.constant 0 : i32
    %c0_i32_2 = arith.constant 0 : i32
    return %c0_i32, %c0_i32_0, %c0_i32_1 : i32, i32, i32
  }
  func.func @transform_7(%arg0: i32) -> (i32, i32, i32) {
    %c0_i32 = arith.constant 0 : i32
    %c0_i32_0 = arith.constant 0 : i32
    %c0_i32_1 = arith.constant 0 : i32
    %c0_i32_2 = arith.constant 0 : i32
    return %c0_i32, %c0_i32_0, %c0_i32_1 : i32, i32, i32
  }
  func.func @transform_8(%arg0: i32) -> (i32, i32, i32) {
    %c0_i32 = arith.constant 0 : i32
    %c0_i32_0 = arith.constant 0 : i32
    %c0_i32_1 = arith.constant 0 : i32
    %c0_i32_2 = arith.constant 0 : i32
    return %c0_i32, %c0_i32_0, %c0_i32_1 : i32, i32, i32
  }
  func.func @transform_9(%arg0: i32) -> (i32, i32, i32) {
    %c0_i32 = arith.constant 0 : i32
    %c0_i32_0 = arith.constant 0 : i32
    %c0_i32_1 = arith.constant 0 : i32
    %c0_i32_2 = arith.constant 0 : i32
    return %c0_i32, %c0_i32_0, %c0_i32_1 : i32, i32, i32
  }
  func.func @transform_10(%arg0: i32) -> (i32, i32, i32) {
    %c0_i32 = arith.constant 0 : i32
    %c0_i32_0 = arith.constant 0 : i32
    %c0_i32_1 = arith.constant 0 : i32
    %c0_i32_2 = arith.constant 0 : i32
    return %c0_i32, %c0_i32_0, %c0_i32_1 : i32, i32, i32
  }
  func.func @transform_11(%arg0: i32) -> (i32, i32, i32) {
    %c0_i32 = arith.constant 0 : i32
    %c0_i32_0 = arith.constant 0 : i32
    %c0_i32_1 = arith.constant 0 : i32
    %c0_i32_2 = arith.constant 0 : i32
    return %c0_i32, %c0_i32_0, %c0_i32_1 : i32, i32, i32
  }
  func.func @transform_12(%arg0: i32) -> (i32, i32, i32) {
    %c0_i32 = arith.constant 0 : i32
    %c0_i32_0 = arith.constant 0 : i32
    %c0_i32_1 = arith.constant 0 : i32
    %c0_i32_2 = arith.constant 0 : i32
    return %c0_i32, %c0_i32_0, %c0_i32_1 : i32, i32, i32
  }
  func.func @transform_13(%arg0: i32) -> (i32, i32, i32) {
    %c0_i32 = arith.constant 0 : i32
    %c0_i32_0 = arith.constant 0 : i32
    %c0_i32_1 = arith.constant 0 : i32
    %c0_i32_2 = arith.constant 0 : i32
    return %c0_i32, %c0_i32_0, %c0_i32_1 : i32, i32, i32
  }
  func.func @transform_14(%arg0: i32) -> (i32, i32, i32) {
    %c0_i32 = arith.constant 0 : i32
    %c0_i32_0 = arith.constant 0 : i32
    %c0_i32_1 = arith.constant 0 : i32
    %c0_i32_2 = arith.constant 0 : i32
    return %c0_i32, %c0_i32_0, %c0_i32_1 : i32, i32, i32
  }
  func.func @transform_15(%arg0: i32) -> (i32, i32, i32) {
    %c0_i32 = arith.constant 0 : i32
    %c0_i32_0 = arith.constant 0 : i32
    %c0_i32_1 = arith.constant 0 : i32
    %c0_i32_2 = arith.constant 0 : i32
    return %c0_i32, %c0_i32_0, %c0_i32_1 : i32, i32, i32
  }
  func.func @transform_16(%arg0: i32) -> (i32, i32) {
    %c0_i32 = arith.constant 0 : i32
    %c0_i32_0 = arith.constant 0 : i32
    %c0_i32_1 = arith.constant 0 : i32
    return %c0_i32, %c0_i32_0 : i32, i32
  }
  func.func @transform_17(%arg0: i32) -> (i32, i32) {
    %c0_i32 = arith.constant 0 : i32
    %c0_i32_0 = arith.constant 0 : i32
    %c0_i32_1 = arith.constant 0 : i32
    return %c0_i32, %c0_i32_0 : i32, i32
  }
  func.func @transform_18(%arg0: i32) -> (i32, i32) {
    %c0_i32 = arith.constant 0 : i32
    %c0_i32_0 = arith.constant 0 : i32
    %c0_i32_1 = arith.constant 0 : i32
    return %c0_i32, %c0_i32_0 : i32, i32
  }
}

</mosaic_0001>

<llo_original>
// kernel: _lambda_.1
$region0: #{_lambda_.1}
  #allocation0 [shape = 'u32[]', space=smem, size = 0x4, offset = 0x4, fixed_abs, tag = 'smem constant byte address 0x4 - core index']
  #allocation1 [shape = 'u32[144,128]{1,0:T(1,128)}', space=vmem, size = 0x12000, scoped, tag = 'internal scratch']
  #allocation2 [shape = 'f32[16,32]{1,0:T(8,128)}', space=vmem, size = 0x2000, scoped, tag = 'scratch operand']
  #allocation3 [shape = 'f32[1,1]{1,0:T(1,128)S(1)}', space=vmem, size = 0x200, scoped, tag = 'scoped memory for _lambda_.1']
  %s0 = inlined_call_operand.vmem [shape: f32[16,32], index: 0, kind: input, shape index: {}]
  %s1 = inlined_call_operand.vmem [shape: f32[2,8], index: 1, kind: input, shape index: {}]
  %s2 = inlined_call_operand.vmem [shape: f32[1,32], index: 2, kind: input, shape index: {}]
  %s3 = inlined_call_operand.vmem [shape: f32[1,32], index: 3, kind: input, shape index: {}]
  %s4 = inlined_call_operand.vmem [shape: f32[2,32,96], index: 4, kind: input, shape index: {}]
  %s5 = inlined_call_operand.vmem [shape: f32[2,1,96], index: 5, kind: input, shape index: {}]
  %s6 = inlined_call_operand.hbm [shape: f32[2,32,32], index: 6, kind: input, shape index: {}]
  %s7 = inlined_call_operand.vmem [shape: f32[2,1,32], index: 7, kind: input, shape index: {}, may-alias: {7,9,13,15}]
  %s8 = inlined_call_operand.vmem [shape: f32[2,1,32], index: 8, kind: input, shape index: {}, may-alias: {8,14}]
  %s9 = inlined_call_operand.vmem [shape: f32[2,1,32], index: 9, kind: input, shape index: {}, may-alias: {7,9,13,15}]
  %s10 = inlined_call_operand.hbm [shape: f32[2,32,64], index: 10, kind: input, shape index: {}]
  %s11 = inlined_call_operand.vmem [shape: f32[2,1,64], index: 11, kind: input, shape index: {}]
  %s12 = inlined_call_operand.vmem [shape: f32[2,64,32], index: 12, kind: input, shape index: {}]
  %s13 = inlined_call_operand.vmem [shape: f32[2,1,32], index: 13, kind: input, shape index: {}, may-alias: {7,9,13,15}]
  %s14 = inlined_call_operand.vmem [shape: f32[2,1,32], index: 14, kind: input, shape index: {}, may-alias: {8,14}]
  %s15 = inlined_call_operand.vmem [shape: f32[2,1,32], index: 15, kind: input, shape index: {}, may-alias: {7,9,13,15}]
  %s16 = inlined_call_operand.vmem [shape: f32[1,32], index: 16, kind: input, shape index: {}]
  %s17 = inlined_call_operand.<no memory space> [shape: f32[1,1], index: 17, kind: input, shape index: {}]
  %s18 = inlined_call_operand.vmem [shape: f32[2,128], index: 18, kind: output, shape index: {}]
  %s19 = sld [smem:[#allocation0]]
  $region90: #{_lambda_.1} parent=0
    _
  %s21 = ssub.s32 1, %s19
  %s22 = scalar_select 0, %s21, %s19
  %v23 = vstv %s17
  %24 = vst [vmem:[#allocation3] sm:$0x1] %v23
  $region1: #{_lambda_.1} parent=0
    #allocation4 [shape = 'u8[32768]{0}', space=vmem, size = 0x8000, scoped, tag = 'input window, operand 6, single buffered']
    #allocation5 [shape = 's32[1]{0}', space=sflag, size = 0x4, scoped, tag = 'scoped memory for _lambda_.1']
    #allocation6 [shape = 'u8[32768]{0}', space=vmem, size = 0x8000, scoped, tag = 'input window, operand 10, single buffered']
    #allocation7 [shape = 's32[1]{0}', space=sflag, size = 0x4, scoped, tag = 'scoped memory for _lambda_.1']
    %25 = vsyncpa [#allocation5], 0
    %26 = vsyncpa [#allocation7], 0
    // Predicated region
    $region2: #{_lambda_.1} parent=1 // pred_check
      _
    $region3: #{_lambda_.1} parent=1 // pred_check_branch
      %28 = sbr.rel (0) target = $region5
    $region4: #{_lambda_.1} parent=1 // pred_region
      _
    $region5: #{_lambda_.1} parent=1 // pred_fallthru
      _
    // Predicated region
    $region6: #{_lambda_.1} parent=1 // pred_check
      _
    $region7: #{_lambda_.1} parent=1 // pred_check_branch
      %30 = sbr.rel (0) target = $region9
    $region8: #{_lambda_.1} parent=1 // pred_region
      _
    $region9: #{_lambda_.1} parent=1 // pred_fallthru
      _
    // Predicated region
    $region10: #{_lambda_.1} parent=1 // pred_check
      _
    $region11: #{_lambda_.1} parent=1 // pred_check_branch
      %32 = sbr.rel (0) target = $region13
    $region12: #{_lambda_.1} parent=1 // pred_region
      _
    $region13: #{_lambda_.1} parent=1 // pred_fallthru
      _
    // Predicated region
    $region14: #{_lambda_.1} parent=1 // pred_check
      _
    $region15: #{_lambda_.1} parent=1 // pred_check_branch
      %34 = sbr.rel (0) target = $region17
    $region16: #{_lambda_.1} parent=1 // pred_region
      _
    $region17: #{_lambda_.1} parent=1 // pred_fallthru
      _
    // Predicated region
    $region18: #{_lambda_.1} parent=1 // pred_check
      _
    $region19: #{_lambda_.1} parent=1 // pred_check_branch
      %36 = sbr.rel (0) target = $region21
    $region20: #{_lambda_.1} parent=1 // pred_region
      _
    $region21: #{_lambda_.1} parent=1 // pred_fallthru
      _
    // Predicated region
    $region22: #{_lambda_.1} parent=1 // pred_check
      _
    $region23: #{_lambda_.1} parent=1 // pred_check_branch
      %38 = sbr.rel (0) target = $region25
    $region24: #{_lambda_.1} parent=1 // pred_region
      _
    $region25: #{_lambda_.1} parent=1 // pred_fallthru
      _
    // Predicated region
    $region26: #{_lambda_.1} parent=1 // pred_check
      _
    $region27: #{_lambda_.1} parent=1 // pred_check_branch
      %40 = sbr.rel (0) target = $region29
    $region28: #{_lambda_.1} parent=1 // pred_region
      %s42 = ssub.s32 1024, 1024
      %43 = vsyncadd [#allocation5], %s42
      %s44 = sshll.u32 [#allocation4], 4
      %s45 = int_to_ptr.vmem [resolvable:$true] %s44
      %50 = dma.hbm_to_vmem [thread:$0]  %s6, 1024, %s45, [#allocation5], 128, 128, 8
    $region29: #{_lambda_.1} parent=1 // pred_fallthru
      _
    // Predicated region
    $region30: #{_lambda_.1} parent=1 // pred_check
      _
    $region31: #{_lambda_.1} parent=1 // pred_check_branch
      %52 = sbr.rel (0) target = $region33
    $region32: #{_lambda_.1} parent=1 // pred_region
      _
    $region33: #{_lambda_.1} parent=1 // pred_fallthru
      _
    // Predicated region
    $region34: #{_lambda_.1} parent=1 // pred_check
      _
    $region35: #{_lambda_.1} parent=1 // pred_check_branch
      %54 = sbr.rel (0) target = $region37
    $region36: #{_lambda_.1} parent=1 // pred_region
      _
    $region37: #{_lambda_.1} parent=1 // pred_fallthru
      _
    // Predicated region
    $region38: #{_lambda_.1} parent=1 // pred_check
      _
    $region39: #{_lambda_.1} parent=1 // pred_check_branch
      %56 = sbr.rel (0) target = $region41
    $region40: #{_lambda_.1} parent=1 // pred_region
      _
    $region41: #{_lambda_.1} parent=1 // pred_fallthru
      _
    // Predicated region
    $region42: #{_lambda_.1} parent=1 // pred_check
      _
    $region43: #{_lambda_.1} parent=1 // pred_check_branch
      %58 = sbr.rel (0) target = $region45
    $region44: #{_lambda_.1} parent=1 // pred_region
      %s60 = ssub.s32 1024, 1024
      %61 = vsyncadd [#allocation7], %s60
      %s62 = sshll.u32 [#allocation6], 4
      %s63 = int_to_ptr.vmem [resolvable:$true] %s62
      %68 = dma.hbm_to_vmem [thread:$0]  %s10, 1024, %s63, [#allocation7], 128, 128, 8
    $region45: #{_lambda_.1} parent=1 // pred_fallthru
      _
    // Predicated region
    $region46: #{_lambda_.1} parent=1 // pred_check
      _
    $region47: #{_lambda_.1} parent=1 // pred_check_branch
      %70 = sbr.rel (0) target = $region49
    $region48: #{_lambda_.1} parent=1 // pred_region
      _
    $region49: #{_lambda_.1} parent=1 // pred_fallthru
      _
    // Predicated region
    $region50: #{_lambda_.1} parent=1 // pred_check
      _
    $region51: #{_lambda_.1} parent=1 // pred_check_branch
      %72 = sbr.rel (0) target = $region53
    $region52: #{_lambda_.1} parent=1 // pred_region
      _
    $region53: #{_lambda_.1} parent=1 // pred_fallthru
      _
    // Predicated region
    $region54: #{_lambda_.1} parent=1 // pred_check
      _
    $region55: #{_lambda_.1} parent=1 // pred_check_branch
      %74 = sbr.rel (0) target = $region57
    $region56: #{_lambda_.1} parent=1 // pred_region
      _
    $region57: #{_lambda_.1} parent=1 // pred_fallthru
      _
    // Predicated region
    $region58: #{_lambda_.1} parent=1 // pred_check
      _
    $region59: #{_lambda_.1} parent=1 // pred_check_branch
      %76 = sbr.rel (0) target = $region61
    $region60: #{_lambda_.1} parent=1 // pred_region
      _
    $region61: #{_lambda_.1} parent=1 // pred_fallthru
      _
    // Predicated region
    $region62: #{_lambda_.1} parent=1 // pred_check
      _
    $region63: #{_lambda_.1} parent=1 // pred_check_branch
      %78 = sbr.rel (0) target = $region65
    $region64: #{_lambda_.1} parent=1 // pred_region
      _
    $region65: #{_lambda_.1} parent=1 // pred_fallthru
      _
    // Predicated region
    $region66: #{_lambda_.1} parent=1 // pred_check
      _
    $region67: #{_lambda_.1} parent=1 // pred_check_branch
      %80 = sbr.rel (0) target = $region69
    $region68: #{_lambda_.1} parent=1 // pred_region
      _
    $region69: #{_lambda_.1} parent=1 // pred_fallthru
      _
    // Predicated region
    $region70: #{_lambda_.1} parent=1 // pred_check
      _
    $region71: #{_lambda_.1} parent=1 // pred_check_branch
      %82 = sbr.rel (0) target = $region73
    $region72: #{_lambda_.1} parent=1 // pred_region
      _
    $region73: #{_lambda_.1} parent=1 // pred_fallthru
      _
    // Predicated region
    $region74: #{_lambda_.1} parent=1 // pred_check
      _
    $region75: #{_lambda_.1} parent=1 // pred_check_branch
      %84 = sbr.rel (0) target = $region77
    $region76: #{_lambda_.1} parent=1 // pred_region
      %85 = dma.done [#allocation5], 1024
    $region77: #{_lambda_.1} parent=1 // pred_fallthru
      _
    // Predicated region
    $region78: #{_lambda_.1} parent=1 // pred_check
      _
    $region79: #{_lambda_.1} parent=1 // pred_check_branch
      %87 = sbr.rel (0) target = $region81
    $region80: #{_lambda_.1} parent=1 // pred_region
      %88 = dma.done [#allocation7], 1024
    $region81: #{_lambda_.1} parent=1 // pred_fallthru
      _
    %v89 = vld [vmem:[%s0] sm:$0xff]
    %v90 = vld [vmem:[%s0 + $0x8] sm:$0xff]
    %v91 = vld [vmem:[%s2] sm:$0x1]
    %v92 = vld [vmem:[%s3] sm:$0x1]
    %vm93 = vcmask 261120
    %v94 = vsel %vm93, %v89, 0.0
    %95 = vadd.xlane.f32.xlu0 %v94
    %v96 = vpop.xlane.xlu0 %95
    %v97 = vsel %vm93, %v90, 0.0
    %98 = vadd.xlane.f32.xlu0 %v97
    %v99 = vpop.xlane.xlu0 %98
    %v100 = vrcp.pop 32.0
    %v101 = vmul.f32 %v96, %v100
    %v102 = vmul.f32 %v99, %v100
    %v103 = vsub.f32 %v89, %v101
    %v104 = vsub.f32 %v90, %v102
    %v105 = vmul.f32 %v103, %v103
    %v106 = vmul.f32 %v104, %v104
    %v107 = vsel %vm93, %v105, 0.0
    %108 = vadd.xlane.f32.xlu0 %v107
    %v109 = vpop.xlane.xlu0 %108
    %v110 = vsel %vm93, %v106, 0.0
    %111 = vadd.xlane.f32.xlu0 %v110
    %v112 = vpop.xlane.xlu0 %111
    %v113 = vmul.f32 %v109, %v100
    %v114 = vmul.f32 %v112, %v100
    %v115 = vadd.f32 %v113, 1e-05
    %v116 = vadd.f32 %v114, 1e-05
    %v117 = vrsqrt.pop %v115
    %v118 = vrsqrt.pop %v116
    %v119 = vmul.f32 %v103, %v117
    %v120 = vmul.f32 %v104, %v118
    %v122 = vlaneseq
    %v123 = vshrl.u32 %v122, 7
    %v124 = vsub.s32 0, %v123
    %v125 = vrot.slane %v91, %v124
    %v127 = vmul.f32 %v119, %v125
    %v128 = vmul.f32 %v120, %v125
    %v130 = vlaneseq
    %v131 = vshrl.u32 %v130, 7
    %v132 = vsub.s32 0, %v131
    %v133 = vrot.slane %v92, %v132
    %v135 = vadd.f32 %v127, %v133
    %v136 = vadd.f32 %v128, %v133
    %v137 = vld [vmem:[%s4] sm:$0xff]
    %v138 = vld [vmem:[%s4 + $0x8] sm:$0xff]
    %v139 = vld [vmem:[%s4 + $0x10] sm:$0xff]
    %v140 = vld [vmem:[%s4 + $0x18] sm:$0xff]
    %v141 = vld [vmem:[%s5] sm:$0x1]
    %v143 = vlaneseq
    %v144 = vshrl.u32 %v143, 7
    %v145 = vsub.s32 0, %v144
    %v146 = vrot.slane %v141, %v145
    %v149 = vsel %vm93, %v135, 0
    %v152 = vsel %vm93, %v136, 0
    %154 = vmatprep.subr.mxu0 0.0
    %155 = vmatpush1.msra.mxu0 %v137
    %156 = vmatprep.subr.mxu0 0.0
    %157 = vmatpush1.msra.mxu0 %v138
    %158 = vmatprep.subr.mxu0 0.0
    %159 = vmatpush1.msra.mxu0 %v139
    %160 = vmatprep.subr.mxu0 0.0
    %161 = vmatpush1.msra.mxu0 %v140
    %162 = vmatprep.subr.mxu0 0.0
    %163 = vmatpush1.msra.mxu0 0.0
    %164 = vmatprep.subr.mxu0 0.0
    %165 = vmatpush1.msra.mxu0 0.0
    %166 = vmatprep.subr.mxu0 0.0
    %167 = vmatpush1.msra.mxu0 0.0
    %168 = vmatprep.subr.mxu0 0.0
    %169 = vmatpush1.msra.mxu0 0.0
    %170 = vmatprep.subr.mxu0 0.0
    %171 = vmatpush1.msra.mxu0 0.0
    %172 = vmatprep.subr.mxu0 0.0
    %173 = vmatpush1.msra.mxu0 0.0
    %174 = vmatprep.subr.mxu0 0.0
    %175 = vmatpush1.msra.mxu0 0.0
    %176 = vmatprep.subr.mxu0 0.0
    %177 = vmatpush1.msra.mxu0 0.0
    %178 = vmatprep.subr.mxu0 0.0
    %179 = vmatpush1.msra.mxu0 0.0
    %180 = vmatprep.subr.mxu0 0.0
    %181 = vmatpush1.msra.mxu0 0.0
    %182 = vmatprep.subr.mxu0 0.0
    %183 = vmatpush1.msra.mxu0 0.0
    %184 = vmatprep.subr.mxu0 0.0
    %185 = vmatpush1.msra.mxu0 0.0
    %186 = vmatprep.subr.mxu0 0.0
    %187 = vmatpush1.msra.mxu0 0.0
    %188 = vmatprep.subr.mxu0 0.0
    %189 = vmatpush1.msra.mxu0 0.0
    %190 = vmatprep.subr.mxu0 0.0
    %191 = vmatpush1.msra.mxu0 0.0
    %192 = vmatprep.subr.mxu0 0.0
    %193 = vmatpush1.msra.mxu0 0.0
    %194 = vmatprep.subr.mxu0 0.0
    %195 = vmatpush1.msra.mxu0 0.0
    %196 = vmatprep.subr.mxu0 0.0
    %197 = vmatpush1.msra.mxu0 0.0
    %198 = vmatprep.subr.mxu0 0.0
    %199 = vmatpush1.msra.mxu0 0.0
    %200 = vmatprep.subr.mxu0 0.0
    %201 = vmatpush1.msra.mxu0 0.0
    %202 = vmatprep.subr.mxu0 0.0
    %203 = vmatpush1.msra.mxu0 0.0
    %204 = vmatprep.subr.mxu0 0.0
    %205 = vmatpush1.msra.mxu0 0.0
    %206 = vmatprep.subr.mxu0 0.0
    %207 = vmatpush1.msra.mxu0 0.0
    %208 = vmatprep.subr.mxu0 0.0
    %209 = vmatpush1.msra.mxu0 0.0
    %210 = vmatprep.subr.mxu0 0.0
    %211 = vmatpush1.msra.mxu0 0.0
    %212 = vmatprep.subr.mxu0 0.0
    %213 = vmatpush1.msra.mxu0 0.0
    %214 = vmatprep.subr.mxu0 0.0
    %215 = vmatpush1.msra.mxu0 0.0
    %216 = vmatprep.subr.mxu0 0.0
    %217 = vmatpush1.msra.mxu0 0.0
    %218 = vmatprep.mubr.f32.mxu0 0.0
    %219 = vmatmul.mubr.f32.gmra.mrb[0].mxu0 %v149
    %v220 = vpop.f32.mrb[0].mxu0
    %v221 = vadd.f32 %v146, %v220
    %v222 = vpop.f32.mrb[0].mxu0
    %223 = vmatprep.mubr.f32.mxu0 0.0
    %224 = vmatmul.mubr.f32.gmra.mrb[0].mxu0 %v152
    %v225 = vpop.f32.mrb[0].mxu0
    %v226 = vadd.f32 %v146, %v225
    %v227 = vpop.f32.mrb[0].mxu0
    %228 = vdwg.mxu0
    %v229 = vld [vmem:[%s1] sm:$0x1]
    %v230 = vlaneseq
    %v231 = vshrl.u32 %v230, 7
    %v232 = vsub.s32 0, %v231
    %v233 = vrot.slane %v229, %v232
    %235 = vrot.lane.b32.xlu0 %v221, 96
    %v236 = vpop.permute.xlu0 %235
    %vm237 = vcmask 64512
    %v238 = vsel %vm237, %v221, 0
    %v240 = vsel %vm237, %v236, 0
    %242 = vmatprep.subr.mxu0 0.0
    %243 = vmatpush1.xpose.msra.mxu0 %v240
    %244 = vmatprep.subr.mxu0 0.0
    %245 = vmatpush1.xpose.msra.mxu0 0.0
    %246 = vmatprep.subr.mxu0 0.0
    %247 = vmatpush1.xpose.msra.mxu0 0.0
    %248 = vmatprep.subr.mxu0 0.0
    %249 = vmatpush1.xpose.msra.mxu0 0.0
    %250 = vmatprep.subr.mxu0 0.0
    %251 = vmatpush1.xpose.msra.mxu0 0.0
    %252 = vmatprep.subr.mxu0 0.0
    %253 = vmatpush1.xpose.msra.mxu0 0.0
    %254 = vmatprep.subr.mxu0 0.0
    %255 = vmatpush1.xpose.msra.mxu0 0.0
    %256 = vmatprep.subr.mxu0 0.0
    %257 = vmatpush1.xpose.msra.mxu0 0.0
    %258 = vmatprep.subr.mxu0 0.0
    %259 = vmatpush1.xpose.msra.mxu0 0.0
    %260 = vmatprep.subr.mxu0 0.0
    %261 = vmatpush1.xpose.msra.mxu0 0.0
    %262 = vmatprep.subr.mxu0 0.0
    %263 = vmatpush1.xpose.msra.mxu0 0.0
    %264 = vmatprep.subr.mxu0 0.0
    %265 = vmatpush1.xpose.msra.mxu0 0.0
    %266 = vmatprep.subr.mxu0 0.0
    %267 = vmatpush1.xpose.msra.mxu0 0.0
    %268 = vmatprep.subr.mxu0 0.0
    %269 = vmatpush1.xpose.msra.mxu0 0.0
    %270 = vmatprep.subr.mxu0 0.0
    %271 = vmatpush1.xpose.msra.mxu0 0.0
    %272 = vmatprep.subr.mxu0 0.0
    %273 = vmatpush1.xpose.msra.mxu0 0.0
    %274 = vmatprep.subr.mxu0 0.0
    %275 = vmatpush1.xpose.msra.mxu0 0.0
    %276 = vmatprep.subr.mxu0 0.0
    %277 = vmatpush1.xpose.msra.mxu0 0.0
    %278 = vmatprep.subr.mxu0 0.0
    %279 = vmatpush1.xpose.msra.mxu0 0.0
    %280 = vmatprep.subr.mxu0 0.0
    %281 = vmatpush1.xpose.msra.mxu0 0.0
    %282 = vmatprep.subr.mxu0 0.0
    %283 = vmatpush1.xpose.msra.mxu0 0.0
    %284 = vmatprep.subr.mxu0 0.0
    %285 = vmatpush1.xpose.msra.mxu0 0.0
    %286 = vmatprep.subr.mxu0 0.0
    %287 = vmatpush1.xpose.msra.mxu0 0.0
    %288 = vmatprep.subr.mxu0 0.0
    %289 = vmatpush1.xpose.msra.mxu0 0.0
    %290 = vmatprep.subr.mxu0 0.0
    %291 = vmatpush1.xpose.msra.mxu0 0.0
    %292 = vmatprep.subr.mxu0 0.0
    %293 = vmatpush1.xpose.msra.mxu0 0.0
    %294 = vmatprep.subr.mxu0 0.0
    %295 = vmatpush1.xpose.msra.mxu0 0.0
    %296 = vmatprep.subr.mxu0 0.0
    %297 = vmatpush1.xpose.msra.mxu0 0.0
    %298 = vmatprep.subr.mxu0 0.0
    %299 = vmatpush1.xpose.msra.mxu0 0.0
    %300 = vmatprep.subr.mxu0 0.0
    %301 = vmatpush1.xpose.msra.mxu0 0.0
    %302 = vmatprep.subr.mxu0 0.0
    %303 = vmatpush1.xpose.msra.mxu0 0.0
    %304 = vmatprep.subr.mxu0 0.0
    %305 = vmatpush1.xpose.msra.mxu0 0.0
    %306 = vmatprep.mubr.f32.mxu0 0.0
    %307 = vmatmul.mubr.f32.gmra.mrb[0].mxu0 %v238
    %v308 = vpop.f32.mrb[0].mxu0
    %v309 = vadd.f32 %v233, %v308
    %v310 = vpop.f32.mrb[0].mxu0
    %311 = vdwg.mxu0
    %v312 = vsel %vm237, %v309, -inf
    %313 = vmax.xlane.f32.xlu0 %v312
    %v314 = vpop.xlane.xlu0 %313
    %v315 = vsub.f32 %v309, %v314
    %v316 = vmul.f32 %v315, 1.442695
    %v317 = vpow.pop %v316
    %v318 = vsel %vm237, %v317, 0.0
    %319 = vadd.xlane.f32.xlu0 %v318
    %v320 = vpop.xlane.xlu0 %319
    %v321 = vrcp.pop %v320
    %v322 = vmul.f32 %v317, %v321
    %323 = vrot.lane.b32.xlu0 %v221, 64
    %v324 = vpop.permute.xlu0 %323
    %v327 = vsel %vm237, %v322, 0
    %329 = vmatprep.subr.mxu0 0.0
    %330 = vmatpush1.msra.mxu0 %v324
    %331 = vmatprep.subr.mxu0 0.0
    %332 = vmatpush1.msra.mxu0 0.0
    %333 = vmatprep.subr.mxu0 0.0
    %334 = vmatpush1.msra.mxu0 0.0
    %335 = vmatprep.subr.mxu0 0.0
    %336 = vmatpush1.msra.mxu0 0.0
    %337 = vmatprep.subr.mxu0 0.0
    %338 = vmatpush1.msra.mxu0 0.0
    %339 = vmatprep.subr.mxu0 0.0
    %340 = vmatpush1.msra.mxu0 0.0
    %341 = vmatprep.subr.mxu0 0.0
    %342 = vmatpush1.msra.mxu0 0.0
    %343 = vmatprep.subr.mxu0 0.0
    %344 = vmatpush1.msra.mxu0 0.0
    %345 = vmatprep.subr.mxu0 0.0
    %346 = vmatpush1.msra.mxu0 0.0
    %347 = vmatprep.subr.mxu0 0.0
    %348 = vmatpush1.msra.mxu0 0.0
    %349 = vmatprep.subr.mxu0 0.0
    %350 = vmatpush1.msra.mxu0 0.0
    %351 = vmatprep.subr.mxu0 0.0
    %352 = vmatpush1.msra.mxu0 0.0
    %353 = vmatprep.subr.mxu0 0.0
    %354 = vmatpush1.msra.mxu0 0.0
    %355 = vmatprep.subr.mxu0 0.0
    %356 = vmatpush1.msra.mxu0 0.0
    %357 = vmatprep.subr.mxu0 0.0
    %358 = vmatpush1.msra.mxu0 0.0
    %359 = vmatprep.subr.mxu0 0.0
    %360 = vmatpush1.msra.mxu0 0.0
    %361 = vmatprep.subr.mxu0 0.0
    %362 = vmatpush1.msra.mxu0 0.0
    %363 = vmatprep.subr.mxu0 0.0
    %364 = vmatpush1.msra.mxu0 0.0
    %365 = vmatprep.subr.mxu0 0.0
    %366 = vmatpush1.msra.mxu0 0.0
    %367 = vmatprep.subr.mxu0 0.0
    %368 = vmatpush1.msra.mxu0 0.0
    %369 = vmatprep.subr.mxu0 0.0
    %370 = vmatpush1.msra.mxu0 0.0
    %371 = vmatprep.subr.mxu0 0.0
    %372 = vmatpush1.msra.mxu0 0.0
    %373 = vmatprep.subr.mxu0 0.0
    %374 = vmatpush1.msra.mxu0 0.0
    %375 = vmatprep.subr.mxu0 0.0
    %376 = vmatpush1.msra.mxu0 0.0
    %377 = vmatprep.subr.mxu0 0.0
    %378 = vmatpush1.msra.mxu0 0.0
    %379 = vmatprep.subr.mxu0 0.0
    %380 = vmatpush1.msra.mxu0 0.0
    %381 = vmatprep.subr.mxu0 0.0
    %382 = vmatpush1.msra.mxu0 0.0
    %383 = vmatprep.subr.mxu0 0.0
    %384 = vmatpush1.msra.mxu0 0.0
    %385 = vmatprep.subr.mxu0 0.0
    %386 = vmatpush1.msra.mxu0 0.0
    %387 = vmatprep.subr.mxu0 0.0
    %388 = vmatpush1.msra.mxu0 0.0
    %389 = vmatprep.subr.mxu0 0.0
    %390 = vmatpush1.msra.mxu0 0.0
    %391 = vmatprep.subr.mxu0 0.0
    %392 = vmatpush1.msra.mxu0 0.0
    %393 = vmatprep.mubr.f32.mxu0 0.0
    %394 = vmatmul.mubr.f32.gmra.mrb[0].mxu0 %v327
    %v395 = vpop.f32.mrb[0].mxu0
    %v396 = vadd.f32 0.0, %v395
    %v397 = vpop.f32.mrb[0].mxu0
    %398 = vdwg.mxu0
    %399 = vst.msk [vmem:[#allocation2] sm:$0xff] %vm237, %v396
    %400 = vrot.lane.b32.xlu0 %v221, 120
    %v401 = vpop.permute.xlu0 %400
    %402 = vrot.lane.b32.xlu0 %v221, 88
    %v403 = vpop.permute.xlu0 %402
    %v404 = vsel %vm237, %v401, 0
    %v406 = vsel %vm237, %v403, 0
    %408 = vmatprep.subr.mxu0 0.0
    %409 = vmatpush1.xpose.msra.mxu0 %v406
    %410 = vmatprep.subr.mxu0 0.0
    %411 = vmatpush1.xpose.msra.mxu0 0.0
    %412 = vmatprep.subr.mxu0 0.0
    %413 = vmatpush1.xpose.msra.mxu0 0.0
    %414 = vmatprep.subr.mxu0 0.0
    %415 = vmatpush1.xpose.msra.mxu0 0.0
    %416 = vmatprep.subr.mxu0 0.0
    %417 = vmatpush1.xpose.msra.mxu0 0.0
    %418 = vmatprep.subr.mxu0 0.0
    %419 = vmatpush1.xpose.msra.mxu0 0.0
    %420 = vmatprep.subr.mxu0 0.0
    %421 = vmatpush1.xpose.msra.mxu0 0.0
    %422 = vmatprep.subr.mxu0 0.0
    %423 = vmatpush1.xpose.msra.mxu0 0.0
    %424 = vmatprep.subr.mxu0 0.0
    %425 = vmatpush1.xpose.msra.mxu0 0.0
    %426 = vmatprep.subr.mxu0 0.0
    %427 = vmatpush1.xpose.msra.mxu0 0.0
    %428 = vmatprep.subr.mxu0 0.0
    %429 = vmatpush1.xpose.msra.mxu0 0.0
    %430 = vmatprep.subr.mxu0 0.0
    %431 = vmatpush1.xpose.msra.mxu0 0.0
    %432 = vmatprep.subr.mxu0 0.0
    %433 = vmatpush1.xpose.msra.mxu0 0.0
    %434 = vmatprep.subr.mxu0 0.0
    %435 = vmatpush1.xpose.msra.mxu0 0.0
    %436 = vmatprep.subr.mxu0 0.0
    %437 = vmatpush1.xpose.msra.mxu0 0.0
    %438 = vmatprep.subr.mxu0 0.0
    %439 = vmatpush1.xpose.msra.mxu0 0.0
    %440 = vmatprep.subr.mxu0 0.0
    %441 = vmatpush1.xpose.msra.mxu0 0.0
    %442 = vmatprep.subr.mxu0 0.0
    %443 = vmatpush1.xpose.msra.mxu0 0.0
    %444 = vmatprep.subr.mxu0 0.0
    %445 = vmatpush1.xpose.msra.mxu0 0.0
    %446 = vmatprep.subr.mxu0 0.0
    %447 = vmatpush1.xpose.msra.mxu0 0.0
    %448 = vmatprep.subr.mxu0 0.0
    %449 = vmatpush1.xpose.msra.mxu0 0.0
    %450 = vmatprep.subr.mxu0 0.0
    %451 = vmatpush1.xpose.msra.mxu0 0.0
    %452 = vmatprep.subr.mxu0 0.0
    %453 = vmatpush1.xpose.msra.mxu0 0.0
    %454 = vmatprep.subr.mxu0 0.0
    %455 = vmatpush1.xpose.msra.mxu0 0.0
    %456 = vmatprep.subr.mxu0 0.0
    %457 = vmatpush1.xpose.msra.mxu0 0.0
    %458 = vmatprep.subr.mxu0 0.0
    %459 = vmatpush1.xpose.msra.mxu0 0.0
    %460 = vmatprep.subr.mxu0 0.0
    %461 = vmatpush1.xpose.msra.mxu0 0.0
    %462 = vmatprep.subr.mxu0 0.0
    %463 = vmatpush1.xpose.msra.mxu0 0.0
    %464 = vmatprep.subr.mxu0 0.0
    %465 = vmatpush1.xpose.msra.mxu0 0.0
    %466 = vmatprep.subr.mxu0 0.0
    %467 = vmatpush1.xpose.msra.mxu0 0.0
    %468 = vmatprep.subr.mxu0 0.0
    %469 = vmatpush1.xpose.msra.mxu0 0.0
    %470 = vmatprep.subr.mxu0 0.0
    %471 = vmatpush1.xpose.msra.mxu0 0.0
    %472 = vmatprep.mubr.f32.mxu0 0.0
    %473 = vmatmul.mubr.f32.gmra.mrb[0].mxu0 %v404
    %v474 = vpop.f32.mrb[0].mxu0
    %v475 = vadd.f32 %v233, %v474
    %v476 = vpop.f32.mrb[0].mxu0
    %477 = vdwg.mxu0
    %v478 = vsel %vm237, %v475, -inf
    %479 = vmax.xlane.f32.xlu0 %v478
    %v480 = vpop.xlane.xlu0 %479
    %v481 = vsub.f32 %v475, %v480
    %v482 = vmul.f32 %v481, 1.442695
    %v483 = vpow.pop %v482
    %v484 = vsel %vm237, %v483, 0.0
    %485 = vadd.xlane.f32.xlu0 %v484
    %v486 = vpop.xlane.xlu0 %485
    %v487 = vrcp.pop %v486
    %v488 = vmul.f32 %v483, %v487
    %489 = vrot.lane.b32.xlu0 %v221, 56
    %v490 = vpop.permute.xlu0 %489
    %v493 = vsel %vm237, %v488, 0
    %495 = vmatprep.subr.mxu0 0.0
    %496 = vmatpush1.msra.mxu0 %v490
    %497 = vmatprep.subr.mxu0 0.0
    %498 = vmatpush1.msra.mxu0 0.0
    %499 = vmatprep.subr.mxu0 0.0
    %500 = vmatpush1.msra.mxu0 0.0
    %501 = vmatprep.subr.mxu0 0.0
    %502 = vmatpush1.msra.mxu0 0.0
    %503 = vmatprep.subr.mxu0 0.0
    %504 = vmatpush1.msra.mxu0 0.0
    %505 = vmatprep.subr.mxu0 0.0
    %506 = vmatpush1.msra.mxu0 0.0
    %507 = vmatprep.subr.mxu0 0.0
    %508 = vmatpush1.msra.mxu0 0.0
    %509 = vmatprep.subr.mxu0 0.0
    %510 = vmatpush1.msra.mxu0 0.0
    %511 = vmatprep.subr.mxu0 0.0
    %512 = vmatpush1.msra.mxu0 0.0
    %513 = vmatprep.subr.mxu0 0.0
    %514 = vmatpush1.msra.mxu0 0.0
    %515 = vmatprep.subr.mxu0 0.0
    %516 = vmatpush1.msra.mxu0 0.0
    %517 = vmatprep.subr.mxu0 0.0
    %518 = vmatpush1.msra.mxu0 0.0
    %519 = vmatprep.subr.mxu0 0.0
    %520 = vmatpush1.msra.mxu0 0.0
    %521 = vmatprep.subr.mxu0 0.0
    %522 = vmatpush1.msra.mxu0 0.0
    %523 = vmatprep.subr.mxu0 0.0
    %524 = vmatpush1.msra.mxu0 0.0
    %525 = vmatprep.subr.mxu0 0.0
    %526 = vmatpush1.msra.mxu0 0.0
    %527 = vmatprep.subr.mxu0 0.0
    %528 = vmatpush1.msra.mxu0 0.0
    %529 = vmatprep.subr.mxu0 0.0
    %530 = vmatpush1.msra.mxu0 0.0
    %531 = vmatprep.subr.mxu0 0.0
    %532 = vmatpush1.msra.mxu0 0.0
    %533 = vmatprep.subr.mxu0 0.0
    %534 = vmatpush1.msra.mxu0 0.0
    %535 = vmatprep.subr.mxu0 0.0
    %536 = vmatpush1.msra.mxu0 0.0
    %537 = vmatprep.subr.mxu0 0.0
    %538 = vmatpush1.msra.mxu0 0.0
    %539 = vmatprep.subr.mxu0 0.0
    %540 = vmatpush1.msra.mxu0 0.0
    %541 = vmatprep.subr.mxu0 0.0
    %542 = vmatpush1.msra.mxu0 0.0
    %543 = vmatprep.subr.mxu0 0.0
    %544 = vmatpush1.msra.mxu0 0.0
    %545 = vmatprep.subr.mxu0 0.0
    %546 = vmatpush1.msra.mxu0 0.0
    %547 = vmatprep.subr.mxu0 0.0
    %548 = vmatpush1.msra.mxu0 0.0
    %549 = vmatprep.subr.mxu0 0.0
    %550 = vmatpush1.msra.mxu0 0.0
    %551 = vmatprep.subr.mxu0 0.0
    %552 = vmatpush1.msra.mxu0 0.0
    %553 = vmatprep.subr.mxu0 0.0
    %554 = vmatpush1.msra.mxu0 0.0
    %555 = vmatprep.subr.mxu0 0.0
    %556 = vmatpush1.msra.mxu0 0.0
    %557 = vmatprep.subr.mxu0 0.0
    %558 = vmatpush1.msra.mxu0 0.0
    %559 = vmatprep.mubr.f32.mxu0 0.0
    %560 = vmatmul.mubr.f32.gmra.mrb[0].mxu0 %v493
    %v561 = vpop.f32.mrb[0].mxu0
    %v562 = vadd.f32 0.0, %v561
    %v563 = vpop.f32.mrb[0].mxu0
    %564 = vdwg.mxu0
    %566 = vrot.lane.b32.xlu0 %v562, 8
    %v567 = vpop.permute.xlu0 %566
    %vm569 = vcmask 130112
    %570 = vst.msk [vmem:[#allocation2] sm:$0xff] %vm569, %v567
    %571 = vrot.lane.b32.xlu0 %v221, 112
    %v572 = vpop.permute.xlu0 %571
    %573 = vrot.lane.b32.xlu0 %v221, 80
    %v574 = vpop.permute.xlu0 %573
    %v575 = vsel %vm237, %v572, 0
    %v577 = vsel %vm237, %v574, 0
    %579 = vmatprep.subr.mxu0 0.0
    %580 = vmatpush1.xpose.msra.mxu0 %v577
    %581 = vmatprep.subr.mxu0 0.0
    %582 = vmatpush1.xpose.msra.mxu0 0.0
    %583 = vmatprep.subr.mxu0 0.0
    %584 = vmatpush1.xpose.msra.mxu0 0.0
    %585 = vmatprep.subr.mxu0 0.0
    %586 = vmatpush1.xpose.msra.mxu0 0.0
    %587 = vmatprep.subr.mxu0 0.0
    %588 = vmatpush1.xpose.msra.mxu0 0.0
    %589 = vmatprep.subr.mxu0 0.0
    %590 = vmatpush1.xpose.msra.mxu0 0.0
    %591 = vmatprep.subr.mxu0 0.0
    %592 = vmatpush1.xpose.msra.mxu0 0.0
    %593 = vmatprep.subr.mxu0 0.0
    %594 = vmatpush1.xpose.msra.mxu0 0.0
    %595 = vmatprep.subr.mxu0 0.0
    %596 = vmatpush1.xpose.msra.mxu0 0.0
    %597 = vmatprep.subr.mxu0 0.0
    %598 = vmatpush1.xpose.msra.mxu0 0.0
    %599 = vmatprep.subr.mxu0 0.0
    %600 = vmatpush1.xpose.msra.mxu0 0.0
    %601 = vmatprep.subr.mxu0 0.0
    %602 = vmatpush1.xpose.msra.mxu0 0.0
    %603 = vmatprep.subr.mxu0 0.0
    %604 = vmatpush1.xpose.msra.mxu0 0.0
    %605 = vmatprep.subr.mxu0 0.0
    %606 = vmatpush1.xpose.msra.mxu0 0.0
    %607 = vmatprep.subr.mxu0 0.0
    %608 = vmatpush1.xpose.msra.mxu0 0.0
    %609 = vmatprep.subr.mxu0 0.0
    %610 = vmatpush1.xpose.msra.mxu0 0.0
    %611 = vmatprep.subr.mxu0 0.0
    %612 = vmatpush1.xpose.msra.mxu0 0.0
    %613 = vmatprep.subr.mxu0 0.0
    %614 = vmatpush1.xpose.msra.mxu0 0.0
    %615 = vmatprep.subr.mxu0 0.0
    %616 = vmatpush1.xpose.msra.mxu0 0.0
    %617 = vmatprep.subr.mxu0 0.0
    %618 = vmatpush1.xpose.msra.mxu0 0.0
    %619 = vmatprep.subr.mxu0 0.0
    %620 = vmatpush1.xpose.msra.mxu0 0.0
    %621 = vmatprep.subr.mxu0 0.0
    %622 = vmatpush1.xpose.msra.mxu0 0.0
    %623 = vmatprep.subr.mxu0 0.0
    %624 = vmatpush1.xpose.msra.mxu0 0.0
    %625 = vmatprep.subr.mxu0 0.0
    %626 = vmatpush1.xpose.msra.mxu0 0.0
    %627 = vmatprep.subr.mxu0 0.0
    %628 = vmatpush1.xpose.msra.mxu0 0.0
    %629 = vmatprep.subr.mxu0 0.0
    %630 = vmatpush1.xpose.msra.mxu0 0.0
    %631 = vmatprep.subr.mxu0 0.0
    %632 = vmatpush1.xpose.msra.mxu0 0.0
    %633 = vmatprep.subr.mxu0 0.0
    %634 = vmatpush1.xpose.msra.mxu0 0.0
    %635 = vmatprep.subr.mxu0 0.0
    %636 = vmatpush1.xpose.msra.mxu0 0.0
    %637 = vmatprep.subr.mxu0 0.0
    %638 = vmatpush1.xpose.msra.mxu0 0.0
    %639 = vmatprep.subr.mxu0 0.0
    %640 = vmatpush1.xpose.msra.mxu0 0.0
    %641 = vmatprep.subr.mxu0 0.0
    %642 = vmatpush1.xpose.msra.mxu0 0.0
    %643 = vmatprep.mubr.f32.mxu0 0.0
    %644 = vmatmul.mubr.f32.gmra.mrb[0].mxu0 %v575
    %v645 = vpop.f32.mrb[0].mxu0
    %v646 = vadd.f32 %v233, %v645
    %v647 = vpop.f32.mrb[0].mxu0
    %648 = vdwg.mxu0
    %v649 = vsel %vm237, %v646, -inf
    %650 = vmax.xlane.f32.xlu0 %v649
    %v651 = vpop.xlane.xlu0 %650
    %v652 = vsub.f32 %v646, %v651
    %v653 = vmul.f32 %v652, 1.442695
    %v654 = vpow.pop %v653
    %v655 = vsel %vm237, %v654, 0.0
    %656 = vadd.xlane.f32.xlu0 %v655
    %v657 = vpop.xlane.xlu0 %656
    %v658 = vrcp.pop %v657
    %v659 = vmul.f32 %v654, %v658
    %660 = vrot.lane.b32.xlu0 %v221, 48
    %v661 = vpop.permute.xlu0 %660
    %v664 = vsel %vm237, %v659, 0
    %666 = vmatprep.subr.mxu0 0.0
    %667 = vmatpush1.msra.mxu0 %v661
    %668 = vmatprep.subr.mxu0 0.0
    %669 = vmatpush1.msra.mxu0 0.0
    %670 = vmatprep.subr.mxu0 0.0
    %671 = vmatpush1.msra.mxu0 0.0
    %672 = vmatprep.subr.mxu0 0.0
    %673 = vmatpush1.msra.mxu0 0.0
    %674 = vmatprep.subr.mxu0 0.0
    %675 = vmatpush1.msra.mxu0 0.0
    %676 = vmatprep.subr.mxu0 0.0
    %677 = vmatpush1.msra.mxu0 0.0
    %678 = vmatprep.subr.mxu0 0.0
    %679 = vmatpush1.msra.mxu0 0.0
    %680 = vmatprep.subr.mxu0 0.0
    %681 = vmatpush1.msra.mxu0 0.0
    %682 = vmatprep.subr.mxu0 0.0
    %683 = vmatpush1.msra.mxu0 0.0
    %684 = vmatprep.subr.mxu0 0.0
    %685 = vmatpush1.msra.mxu0 0.0
    %686 = vmatprep.subr.mxu0 0.0
    %687 = vmatpush1.msra.mxu0 0.0
    %688 = vmatprep.subr.mxu0 0.0
    %689 = vmatpush1.msra.mxu0 0.0
    %690 = vmatprep.subr.mxu0 0.0
    %691 = vmatpush1.msra.mxu0 0.0
    %692 = vmatprep.subr.mxu0 0.0
    %693 = vmatpush1.msra.mxu0 0.0
    %694 = vmatprep.subr.mxu0 0.0
    %695 = vmatpush1.msra.mxu0 0.0
    %696 = vmatprep.subr.mxu0 0.0
    %697 = vmatpush1.msra.mxu0 0.0
    %698 = vmatprep.subr.mxu0 0.0
    %699 = vmatpush1.msra.mxu0 0.0
    %700 = vmatprep.subr.mxu0 0.0
    %701 = vmatpush1.msra.mxu0 0.0
    %702 = vmatprep.subr.mxu0 0.0
    %703 = vmatpush1.msra.mxu0 0.0
    %704 = vmatprep.subr.mxu0 0.0
    %705 = vmatpush1.msra.mxu0 0.0
    %706 = vmatprep.subr.mxu0 0.0
    %707 = vmatpush1.msra.mxu0 0.0
    %708 = vmatprep.subr.mxu0 0.0
    %709 = vmatpush1.msra.mxu0 0.0
    %710 = vmatprep.subr.mxu0 0.0
    %711 = vmatpush1.msra.mxu0 0.0
    %712 = vmatprep.subr.mxu0 0.0
    %713 = vmatpush1.msra.mxu0 0.0
    %714 = vmatprep.subr.mxu0 0.0
    %715 = vmatpush1.msra.mxu0 0.0
    %716 = vmatprep.subr.mxu0 0.0
    %717 = vmatpush1.msra.mxu0 0.0
    %718 = vmatprep.subr.mxu0 0.0
    %719 = vmatpush1.msra.mxu0 0.0
    %720 = vmatprep.subr.mxu0 0.0
    %721 = vmatpush1.msra.mxu0 0.0
    %722 = vmatprep.subr.mxu0 0.0
    %723 = vmatpush1.msra.mxu0 0.0
    %724 = vmatprep.subr.mxu0 0.0
    %725 = vmatpush1.msra.mxu0 0.0
    %726 = vmatprep.subr.mxu0 0.0
    %727 = vmatpush1.msra.mxu0 0.0
    %728 = vmatprep.subr.mxu0 0.0
    %729 = vmatpush1.msra.mxu0 0.0
    %730 = vmatprep.mubr.f32.mxu0 0.0
    %731 = vmatmul.mubr.f32.gmra.mrb[0].mxu0 %v664
    %v732 = vpop.f32.mrb[0].mxu0
    %v733 = vadd.f32 0.0, %v732
    %v734 = vpop.f32.mrb[0].mxu0
    %735 = vdwg.mxu0
    %737 = vrot.lane.b32.xlu0 %v733, 16
    %v738 = vpop.permute.xlu0 %737
    %vm740 = vcmask 195712
    %741 = vst.msk [vmem:[#allocation2] sm:$0xff] %vm740, %v738
    %742 = vrot.lane.b32.xlu0 %v221, 104
    %v743 = vpop.permute.xlu0 %742
    %744 = vrot.lane.b32.xlu0 %v221, 72
    %v745 = vpop.permute.xlu0 %744
    %v746 = vsel %vm237, %v743, 0
    %v748 = vsel %vm237, %v745, 0
    %750 = vmatprep.subr.mxu0 0.0
    %751 = vmatpush1.xpose.msra.mxu0 %v748
    %752 = vmatprep.subr.mxu0 0.0
    %753 = vmatpush1.xpose.msra.mxu0 0.0
    %754 = vmatprep.subr.mxu0 0.0
    %755 = vmatpush1.xpose.msra.mxu0 0.0
    %756 = vmatprep.subr.mxu0 0.0
    %757 = vmatpush1.xpose.msra.mxu0 0.0
    %758 = vmatprep.subr.mxu0 0.0
    %759 = vmatpush1.xpose.msra.mxu0 0.0
    %760 = vmatprep.subr.mxu0 0.0
    %761 = vmatpush1.xpose.msra.mxu0 0.0
    %762 = vmatprep.subr.mxu0 0.0
    %763 = vmatpush1.xpose.msra.mxu0 0.0
    %764 = vmatprep.subr.mxu0 0.0
    %765 = vmatpush1.xpose.msra.mxu0 0.0
    %766 = vmatprep.subr.mxu0 0.0
    %767 = vmatpush1.xpose.msra.mxu0 0.0
    %768 = vmatprep.subr.mxu0 0.0
    %769 = vmatpush1.xpose.msra.mxu0 0.0
    %770 = vmatprep.subr.mxu0 0.0
    %771 = vmatpush1.xpose.msra.mxu0 0.0
    %772 = vmatprep.subr.mxu0 0.0
    %773 = vmatpush1.xpose.msra.mxu0 0.0
    %774 = vmatprep.subr.mxu0 0.0
    %775 = vmatpush1.xpose.msra.mxu0 0.0
    %776 = vmatprep.subr.mxu0 0.0
    %777 = vmatpush1.xpose.msra.mxu0 0.0
    %778 = vmatprep.subr.mxu0 0.0
    %779 = vmatpush1.xpose.msra.mxu0 0.0
    %780 = vmatprep.subr.mxu0 0.0
    %781 = vmatpush1.xpose.msra.mxu0 0.0
    %782 = vmatprep.subr.mxu0 0.0
    %783 = vmatpush1.xpose.msra.mxu0 0.0
    %784 = vmatprep.subr.mxu0 0.0
    %785 = vmatpush1.xpose.msra.mxu0 0.0
    %786 = vmatprep.subr.mxu0 0.0
    %787 = vmatpush1.xpose.msra.mxu0 0.0
    %788 = vmatprep.subr.mxu0 0.0
    %789 = vmatpush1.xpose.msra.mxu0 0.0
    %790 = vmatprep.subr.mxu0 0.0
    %791 = vmatpush1.xpose.msra.mxu0 0.0
    %792 = vmatprep.subr.mxu0 0.0
    %793 = vmatpush1.xpose.msra.mxu0 0.0
    %794 = vmatprep.subr.mxu0 0.0
    %795 = vmatpush1.xpose.msra.mxu0 0.0
    %796 = vmatprep.subr.mxu0 0.0
    %797 = vmatpush1.xpose.msra.mxu0 0.0
    %798 = vmatprep.subr.mxu0 0.0
    %799 = vmatpush1.xpose.msra.mxu0 0.0
    %800 = vmatprep.subr.mxu0 0.0
    %801 = vmatpush1.xpose.msra.mxu0 0.0
    %802 = vmatprep.subr.mxu0 0.0
    %803 = vmatpush1.xpose.msra.mxu0 0.0
    %804 = vmatprep.subr.mxu0 0.0
    %805 = vmatpush1.xpose.msra.mxu0 0.0
    %806 = vmatprep.subr.mxu0 0.0
    %807 = vmatpush1.xpose.msra.mxu0 0.0
    %808 = vmatprep.subr.mxu0 0.0
    %809 = vmatpush1.xpose.msra.mxu0 0.0
    %810 = vmatprep.subr.mxu0 0.0
    %811 = vmatpush1.xpose.msra.mxu0 0.0
    %812 = vmatprep.subr.mxu0 0.0
    %813 = vmatpush1.xpose.msra.mxu0 0.0
    %814 = vmatprep.mubr.f32.mxu0 0.0
    %815 = vmatmul.mubr.f32.gmra.mrb[0].mxu0 %v746
    %v816 = vpop.f32.mrb[0].mxu0
    %v817 = vadd.f32 %v233, %v816
    %v818 = vpop.f32.mrb[0].mxu0
    %819 = vdwg.mxu0
    %v820 = vsel %vm237, %v817, -inf
    %821 = vmax.xlane.f32.xlu0 %v820
    %v822 = vpop.xlane.xlu0 %821
    %v823 = vsub.f32 %v817, %v822
    %v824 = vmul.f32 %v823, 1.442695
    %v825 = vpow.pop %v824
    %v826 = vsel %vm237, %v825, 0.0
    %827 = vadd.xlane.f32.xlu0 %v826
    %v828 = vpop.xlane.xlu0 %827
    %v829 = vrcp.pop %v828
    %v830 = vmul.f32 %v825, %v829
    %831 = vrot.lane.b32.xlu0 %v221, 40
    %v832 = vpop.permute.xlu0 %831
    %v835 = vsel %vm237, %v830, 0
    %837 = vmatprep.subr.mxu0 0.0
    %838 = vmatpush1.msra.mxu0 %v832
    %839 = vmatprep.subr.mxu0 0.0
    %840 = vmatpush1.msra.mxu0 0.0
    %841 = vmatprep.subr.mxu0 0.0
    %842 = vmatpush1.msra.mxu0 0.0
    %843 = vmatprep.subr.mxu0 0.0
    %844 = vmatpush1.msra.mxu0 0.0
    %845 = vmatprep.subr.mxu0 0.0
    %846 = vmatpush1.msra.mxu0 0.0
    %847 = vmatprep.subr.mxu0 0.0
    %848 = vmatpush1.msra.mxu0 0.0
    %849 = vmatprep.subr.mxu0 0.0
    %850 = vmatpush1.msra.mxu0 0.0
    %851 = vmatprep.subr.mxu0 0.0
    %852 = vmatpush1.msra.mxu0 0.0
    %853 = vmatprep.subr.mxu0 0.0
    %854 = vmatpush1.msra.mxu0 0.0
    %855 = vmatprep.subr.mxu0 0.0
    %856 = vmatpush1.msra.mxu0 0.0
    %857 = vmatprep.subr.mxu0 0.0
    %858 = vmatpush1.msra.mxu0 0.0
    %859 = vmatprep.subr.mxu0 0.0
    %860 = vmatpush1.msra.mxu0 0.0
    %861 = vmatprep.subr.mxu0 0.0
    %862 = vmatpush1.msra.mxu0 0.0
    %863 = vmatprep.subr.mxu0 0.0
    %864 = vmatpush1.msra.mxu0 0.0
    %865 = vmatprep.subr.mxu0 0.0
    %866 = vmatpush1.msra.mxu0 0.0
    %867 = vmatprep.subr.mxu0 0.0
    %868 = vmatpush1.msra.mxu0 0.0
    %869 = vmatprep.subr.mxu0 0.0
    %870 = vmatpush1.msra.mxu0 0.0
    %871 = vmatprep.subr.mxu0 0.0
    %872 = vmatpush1.msra.mxu0 0.0
    %873 = vmatprep.subr.mxu0 0.0
    %874 = vmatpush1.msra.mxu0 0.0
    %875 = vmatprep.subr.mxu0 0.0
    %876 = vmatpush1.msra.mxu0 0.0
    %877 = vmatprep.subr.mxu0 0.0
    %878 = vmatpush1.msra.mxu0 0.0
    %879 = vmatprep.subr.mxu0 0.0
    %880 = vmatpush1.msra.mxu0 0.0
    %881 = vmatprep.subr.mxu0 0.0
    %882 = vmatpush1.msra.mxu0 0.0
    %883 = vmatprep.subr.mxu0 0.0
    %884 = vmatpush1.msra.mxu0 0.0
    %885 = vmatprep.subr.mxu0 0.0
    %886 = vmatpush1.msra.mxu0 0.0
    %887 = vmatprep.subr.mxu0 0.0
    %888 = vmatpush1.msra.mxu0 0.0
    %889 = vmatprep.subr.mxu0 0.0
    %890 = vmatpush1.msra.mxu0 0.0
    %891 = vmatprep.subr.mxu0 0.0
    %892 = vmatpush1.msra.mxu0 0.0
    %893 = vmatprep.subr.mxu0 0.0
    %894 = vmatpush1.msra.mxu0 0.0
    %895 = vmatprep.subr.mxu0 0.0
    %896 = vmatpush1.msra.mxu0 0.0
    %897 = vmatprep.subr.mxu0 0.0
    %898 = vmatpush1.msra.mxu0 0.0
    %899 = vmatprep.subr.mxu0 0.0
    %900 = vmatpush1.msra.mxu0 0.0
    %901 = vmatprep.mubr.f32.mxu0 0.0
    %902 = vmatmul.mubr.f32.gmra.mrb[0].mxu0 %v835
    %v903 = vpop.f32.mrb[0].mxu0
    %v904 = vadd.f32 0.0, %v903
    %v905 = vpop.f32.mrb[0].mxu0
    %906 = vdwg.mxu0
    %908 = vrot.lane.b32.xlu0 %v904, 24
    %v909 = vpop.permute.xlu0 %908
    %vm911 = vcmask 261312
    %912 = vst.msk [vmem:[#allocation2] sm:$0xff] %vm911, %v909
    %v913 = vld [vmem:[%s1 + $0x1] sm:$0x1]
    %v914 = vlaneseq
    %v915 = vshrl.u32 %v914, 7
    %v916 = vsub.s32 0, %v915
    %v917 = vrot.slane %v913, %v916
    %919 = vrot.lane.b32.xlu0 %v226, 96
    %v920 = vpop.permute.xlu0 %919
    %v921 = vsel %vm237, %v226, 0
    %v923 = vsel %vm237, %v920, 0
    %925 = vmatprep.subr.mxu0 0.0
    %926 = vmatpush1.xpose.msra.mxu0 %v923
    %927 = vmatprep.subr.mxu0 0.0
    %928 = vmatpush1.xpose.msra.mxu0 0.0
    %929 = vmatprep.subr.mxu0 0.0
    %930 = vmatpush1.xpose.msra.mxu0 0.0
    %931 = vmatprep.subr.mxu0 0.0
    %932 = vmatpush1.xpose.msra.mxu0 0.0
    %933 = vmatprep.subr.mxu0 0.0
    %934 = vmatpush1.xpose.msra.mxu0 0.0
    %935 = vmatprep.subr.mxu0 0.0
    %936 = vmatpush1.xpose.msra.mxu0 0.0
    %937 = vmatprep.subr.mxu0 0.0
    %938 = vmatpush1.xpose.msra.mxu0 0.0
    %939 = vmatprep.subr.mxu0 0.0
    %940 = vmatpush1.xpose.msra.mxu0 0.0
    %941 = vmatprep.subr.mxu0 0.0
    %942 = vmatpush1.xpose.msra.mxu0 0.0
    %943 = vmatprep.subr.mxu0 0.0
    %944 = vmatpush1.xpose.msra.mxu0 0.0
    %945 = vmatprep.subr.mxu0 0.0
    %946 = vmatpush1.xpose.msra.mxu0 0.0
    %947 = vmatprep.subr.mxu0 0.0
    %948 = vmatpush1.xpose.msra.mxu0 0.0
    %949 = vmatprep.subr.mxu0 0.0
    %950 = vmatpush1.xpose.msra.mxu0 0.0
    %951 = vmatprep.subr.mxu0 0.0
    %952 = vmatpush1.xpose.msra.mxu0 0.0
    %953 = vmatprep.subr.mxu0 0.0
    %954 = vmatpush1.xpose.msra.mxu0 0.0
    %955 = vmatprep.subr.mxu0 0.0
    %956 = vmatpush1.xpose.msra.mxu0 0.0
    %957 = vmatprep.subr.mxu0 0.0
    %958 = vmatpush1.xpose.msra.mxu0 0.0
    %959 = vmatprep.subr.mxu0 0.0
    %960 = vmatpush1.xpose.msra.mxu0 0.0
    %961 = vmatprep.subr.mxu0 0.0
    %962 = vmatpush1.xpose.msra.mxu0 0.0
    %963 = vmatprep.subr.mxu0 0.0
    %964 = vmatpush1.xpose.msra.mxu0 0.0
    %965 = vmatprep.subr.mxu0 0.0
    %966 = vmatpush1.xpose.msra.mxu0 0.0
    %967 = vmatprep.subr.mxu0 0.0
    %968 = vmatpush1.xpose.msra.mxu0 0.0
    %969 = vmatprep.subr.mxu0 0.0
    %970 = vmatpush1.xpose.msra.mxu0 0.0
    %971 = vmatprep.subr.mxu0 0.0
    %972 = vmatpush1.xpose.msra.mxu0 0.0
    %973 = vmatprep.subr.mxu0 0.0
    %974 = vmatpush1.xpose.msra.mxu0 0.0
    %975 = vmatprep.subr.mxu0 0.0
    %976 = vmatpush1.xpose.msra.mxu0 0.0
    %977 = vmatprep.subr.mxu0 0.0
    %978 = vmatpush1.xpose.msra.mxu0 0.0
    %979 = vmatprep.subr.mxu0 0.0
    %980 = vmatpush1.xpose.msra.mxu0 0.0
    %981 = vmatprep.subr.mxu0 0.0
    %982 = vmatpush1.xpose.msra.mxu0 0.0
    %983 = vmatprep.subr.mxu0 0.0
    %984 = vmatpush1.xpose.msra.mxu0 0.0
    %985 = vmatprep.subr.mxu0 0.0
    %986 = vmatpush1.xpose.msra.mxu0 0.0
    %987 = vmatprep.subr.mxu0 0.0
    %988 = vmatpush1.xpose.msra.mxu0 0.0
    %989 = vmatprep.mubr.f32.mxu0 0.0
    %990 = vmatmul.mubr.f32.gmra.mrb[0].mxu0 %v921
    %v991 = vpop.f32.mrb[0].mxu0
    %v992 = vadd.f32 %v917, %v991
    %v993 = vpop.f32.mrb[0].mxu0
    %994 = vdwg.mxu0
    %v995 = vsel %vm237, %v992, -inf
    %996 = vmax.xlane.f32.xlu0 %v995
    %v997 = vpop.xlane.xlu0 %996
    %v998 = vsub.f32 %v992, %v997
    %v999 = vmul.f32 %v998, 1.442695
    %v1000 = vpow.pop %v999
    %v1001 = vsel %vm237, %v1000, 0.0
    %1002 = vadd.xlane.f32.xlu0 %v1001
    %v1003 = vpop.xlane.xlu0 %1002
    %v1004 = vrcp.pop %v1003
    %v1005 = vmul.f32 %v1000, %v1004
    %1006 = vrot.lane.b32.xlu0 %v226, 64
    %v1007 = vpop.permute.xlu0 %1006
    %v1010 = vsel %vm237, %v1005, 0
    %1012 = vmatprep.subr.mxu0 0.0
    %1013 = vmatpush1.msra.mxu0 %v1007
    %1014 = vmatprep.subr.mxu0 0.0
    %1015 = vmatpush1.msra.mxu0 0.0
    %1016 = vmatprep.subr.mxu0 0.0
    %1017 = vmatpush1.msra.mxu0 0.0
    %1018 = vmatprep.subr.mxu0 0.0
    %1019 = vmatpush1.msra.mxu0 0.0
    %1020 = vmatprep.subr.mxu0 0.0
    %1021 = vmatpush1.msra.mxu0 0.0
    %1022 = vmatprep.subr.mxu0 0.0
    %1023 = vmatpush1.msra.mxu0 0.0
    %1024 = vmatprep.subr.mxu0 0.0
    %1025 = vmatpush1.msra.mxu0 0.0
    %1026 = vmatprep.subr.mxu0 0.0
    %1027 = vmatpush1.msra.mxu0 0.0
    %1028 = vmatprep.subr.mxu0 0.0
    %1029 = vmatpush1.msra.mxu0 0.0
    %1030 = vmatprep.subr.mxu0 0.0
    %1031 = vmatpush1.msra.mxu0 0.0
    %1032 = vmatprep.subr.mxu0 0.0
    %1033 = vmatpush1.msra.mxu0 0.0
    %1034 = vmatprep.subr.mxu0 0.0
    %1035 = vmatpush1.msra.mxu0 0.0
    %1036 = vmatprep.subr.mxu0 0.0
    %1037 = vmatpush1.msra.mxu0 0.0
    %1038 = vmatprep.subr.mxu0 0.0
    %1039 = vmatpush1.msra.mxu0 0.0
    %1040 = vmatprep.subr.mxu0 0.0
    %1041 = vmatpush1.msra.mxu0 0.0
    %1042 = vmatprep.subr.mxu0 0.0
    %1043 = vmatpush1.msra.mxu0 0.0
    %1044 = vmatprep.subr.mxu0 0.0
    %1045 = vmatpush1.msra.mxu0 0.0
    %1046 = vmatprep.subr.mxu0 0.0
    %1047 = vmatpush1.msra.mxu0 0.0
    %1048 = vmatprep.subr.mxu0 0.0
    %1049 = vmatpush1.msra.mxu0 0.0
    %1050 = vmatprep.subr.mxu0 0.0
    %1051 = vmatpush1.msra.mxu0 0.0
    %1052 = vmatprep.subr.mxu0 0.0
    %1053 = vmatpush1.msra.mxu0 0.0
    %1054 = vmatprep.subr.mxu0 0.0
    %1055 = vmatpush1.msra.mxu0 0.0
    %1056 = vmatprep.subr.mxu0 0.0
    %1057 = vmatpush1.msra.mxu0 0.0
    %1058 = vmatprep.subr.mxu0 0.0
    %1059 = vmatpush1.msra.mxu0 0.0
    %1060 = vmatprep.subr.mxu0 0.0
    %1061 = vmatpush1.msra.mxu0 0.0
    %1062 = vmatprep.subr.mxu0 0.0
    %1063 = vmatpush1.msra.mxu0 0.0
    %1064 = vmatprep.subr.mxu0 0.0
    %1065 = vmatpush1.msra.mxu0 0.0
    %1066 = vmatprep.subr.mxu0 0.0
    %1067 = vmatpush1.msra.mxu0 0.0
    %1068 = vmatprep.subr.mxu0 0.0
    %1069 = vmatpush1.msra.mxu0 0.0
    %1070 = vmatprep.subr.mxu0 0.0
    %1071 = vmatpush1.msra.mxu0 0.0
    %1072 = vmatprep.subr.mxu0 0.0
    %1073 = vmatpush1.msra.mxu0 0.0
    %1074 = vmatprep.subr.mxu0 0.0
    %1075 = vmatpush1.msra.mxu0 0.0
    %1076 = vmatprep.mubr.f32.mxu0 0.0
    %1077 = vmatmul.mubr.f32.gmra.mrb[0].mxu0 %v1010
    %v1078 = vpop.f32.mrb[0].mxu0
    %v1079 = vadd.f32 0.0, %v1078
    %v1080 = vpop.f32.mrb[0].mxu0
    %1081 = vdwg.mxu0
    %1082 = vst.msk [vmem:[#allocation2 + $0x8] sm:$0xff] %vm237, %v1079
    %1083 = vrot.lane.b32.xlu0 %v226, 120
    %v1084 = vpop.permute.xlu0 %1083
    %1085 = vrot.lane.b32.xlu0 %v226, 88
    %v1086 = vpop.permute.xlu0 %1085
    %v1087 = vsel %vm237, %v1084, 0
    %v1089 = vsel %vm237, %v1086, 0
    %1091 = vmatprep.subr.mxu0 0.0
    %1092 = vmatpush1.xpose.msra.mxu0 %v1089
    %1093 = vmatprep.subr.mxu0 0.0
    %1094 = vmatpush1.xpose.msra.mxu0 0.0
    %1095 = vmatprep.subr.mxu0 0.0
    %1096 = vmatpush1.xpose.msra.mxu0 0.0
    %1097 = vmatprep.subr.mxu0 0.0
    %1098 = vmatpush1.xpose.msra.mxu0 0.0
    %1099 = vmatprep.subr.mxu0 0.0
    %1100 = vmatpush1.xpose.msra.mxu0 0.0
    %1101 = vmatprep.subr.mxu0 0.0
    %1102 = vmatpush1.xpose.msra.mxu0 0.0
    %1103 = vmatprep.subr.mxu0 0.0
    %1104 = vmatpush1.xpose.msra.mxu0 0.0
    %1105 = vmatprep.subr.mxu0 0.0
    %1106 = vmatpush1.xpose.msra.mxu0 0.0
    %1107 = vmatprep.subr.mxu0 0.0
    %1108 = vmatpush1.xpose.msra.mxu0 0.0
    %1109 = vmatprep.subr.mxu0 0.0
    %1110 = vmatpush1.xpose.msra.mxu0 0.0
    %1111 = vmatprep.subr.mxu0 0.0
    %1112 = vmatpush1.xpose.msra.mxu0 0.0
    %1113 = vmatprep.subr.mxu0 0.0
    %1114 = vmatpush1.xpose.msra.mxu0 0.0
    %1115 = vmatprep.subr.mxu0 0.0
    %1116 = vmatpush1.xpose.msra.mxu0 0.0
    %1117 = vmatprep.subr.mxu0 0.0
    %1118 = vmatpush1.xpose.msra.mxu0 0.0
    %1119 = vmatprep.subr.mxu0 0.0
    %1120 = vmatpush1.xpose.msra.mxu0 0.0
    %1121 = vmatprep.subr.mxu0 0.0
    %1122 = vmatpush1.xpose.msra.mxu0 0.0
    %1123 = vmatprep.subr.mxu0 0.0
    %1124 = vmatpush1.xpose.msra.mxu0 0.0
    %1125 = vmatprep.subr.mxu0 0.0
    %1126 = vmatpush1.xpose.msra.mxu0 0.0
    %1127 = vmatprep.subr.mxu0 0.0
    %1128 = vmatpush1.xpose.msra.mxu0 0.0
    %1129 = vmatprep.subr.mxu0 0.0
    %1130 = vmatpush1.xpose.msra.mxu0 0.0
    %1131 = vmatprep.subr.mxu0 0.0
    %1132 = vmatpush1.xpose.msra.mxu0 0.0
    %1133 = vmatprep.subr.mxu0 0.0
    %1134 = vmatpush1.xpose.msra.mxu0 0.0
    %1135 = vmatprep.subr.mxu0 0.0
    %1136 = vmatpush1.xpose.msra.mxu0 0.0
    %1137 = vmatprep.subr.mxu0 0.0
    %1138 = vmatpush1.xpose.msra.mxu0 0.0
    %1139 = vmatprep.subr.mxu0 0.0
    %1140 = vmatpush1.xpose.msra.mxu0 0.0
    %1141 = vmatprep.subr.mxu0 0.0
    %1142 = vmatpush1.xpose.msra.mxu0 0.0
    %1143 = vmatprep.subr.mxu0 0.0
    %1144 = vmatpush1.xpose.msra.mxu0 0.0
    %1145 = vmatprep.subr.mxu0 0.0
    %1146 = vmatpush1.xpose.msra.mxu0 0.0
    %1147 = vmatprep.subr.mxu0 0.0
    %1148 = vmatpush1.xpose.msra.mxu0 0.0
    %1149 = vmatprep.subr.mxu0 0.0
    %1150 = vmatpush1.xpose.msra.mxu0 0.0
    %1151 = vmatprep.subr.mxu0 0.0
    %1152 = vmatpush1.xpose.msra.mxu0 0.0
    %1153 = vmatprep.subr.mxu0 0.0
    %1154 = vmatpush1.xpose.msra.mxu0 0.0
    %1155 = vmatprep.mubr.f32.mxu0 0.0
    %1156 = vmatmul.mubr.f32.gmra.mrb[0].mxu0 %v1087
    %v1157 = vpop.f32.mrb[0].mxu0
    %v1158 = vadd.f32 %v917, %v1157
    %v1159 = vpop.f32.mrb[0].mxu0
    %1160 = vdwg.mxu0
    %v1161 = vsel %vm237, %v1158, -inf
    %1162 = vmax.xlane.f32.xlu0 %v1161
    %v1163 = vpop.xlane.xlu0 %1162
    %v1164 = vsub.f32 %v1158, %v1163
    %v1165 = vmul.f32 %v1164, 1.442695
    %v1166 = vpow.pop %v1165
    %v1167 = vsel %vm237, %v1166, 0.0
    %1168 = vadd.xlane.f32.xlu0 %v1167
    %v1169 = vpop.xlane.xlu0 %1168
    %v1170 = vrcp.pop %v1169
    %v1171 = vmul.f32 %v1166, %v1170
    %1172 = vrot.lane.b32.xlu0 %v226, 56
    %v1173 = vpop.permute.xlu0 %1172
    %v1176 = vsel %vm237, %v1171, 0
    %1178 = vmatprep.subr.mxu0 0.0
    %1179 = vmatpush1.msra.mxu0 %v1173
    %1180 = vmatprep.subr.mxu0 0.0
    %1181 = vmatpush1.msra.mxu0 0.0
    %1182 = vmatprep.subr.mxu0 0.0
    %1183 = vmatpush1.msra.mxu0 0.0
    %1184 = vmatprep.subr.mxu0 0.0
    %1185 = vmatpush1.msra.mxu0 0.0
    %1186 = vmatprep.subr.mxu0 0.0
    %1187 = vmatpush1.msra.mxu0 0.0
    %1188 = vmatprep.subr.mxu0 0.0
    %1189 = vmatpush1.msra.mxu0 0.0
    %1190 = vmatprep.subr.mxu0 0.0
    %1191 = vmatpush1.msra.mxu0 0.0
    %1192 = vmatprep.subr.mxu0 0.0
    %1193 = vmatpush1.msra.mxu0 0.0
    %1194 = vmatprep.subr.mxu0 0.0
    %1195 = vmatpush1.msra.mxu0 0.0
    %1196 = vmatprep.subr.mxu0 0.0
    %1197 = vmatpush1.msra.mxu0 0.0
    %1198 = vmatprep.subr.mxu0 0.0
    %1199 = vmatpush1.msra.mxu0 0.0
    %1200 = vmatprep.subr.mxu0 0.0
    %1201 = vmatpush1.msra.mxu0 0.0
    %1202 = vmatprep.subr.mxu0 0.0
    %1203 = vmatpush1.msra.mxu0 0.0
    %1204 = vmatprep.subr.mxu0 0.0
    %1205 = vmatpush1.msra.mxu0 0.0
    %1206 = vmatprep.subr.mxu0 0.0
    %1207 = vmatpush1.msra.mxu0 0.0
    %1208 = vmatprep.subr.mxu0 0.0
    %1209 = vmatpush1.msra.mxu0 0.0
    %1210 = vmatprep.subr.mxu0 0.0
    %1211 = vmatpush1.msra.mxu0 0.0
    %1212 = vmatprep.subr.mxu0 0.0
    %1213 = vmatpush1.msra.mxu0 0.0
    %1214 = vmatprep.subr.mxu0 0.0
    %1215 = vmatpush1.msra.mxu0 0.0
    %1216 = vmatprep.subr.mxu0 0.0
    %1217 = vmatpush1.msra.mxu0 0.0
    %1218 = vmatprep.subr.mxu0 0.0
    %1219 = vmatpush1.msra.mxu0 0.0
    %1220 = vmatprep.subr.mxu0 0.0
    %1221 = vmatpush1.msra.mxu0 0.0
    %1222 = vmatprep.subr.mxu0 0.0
    %1223 = vmatpush1.msra.mxu0 0.0
    %1224 = vmatprep.subr.mxu0 0.0
    %1225 = vmatpush1.msra.mxu0 0.0
    %1226 = vmatprep.subr.mxu0 0.0
    %1227 = vmatpush1.msra.mxu0 0.0
    %1228 = vmatprep.subr.mxu0 0.0
    %1229 = vmatpush1.msra.mxu0 0.0
    %1230 = vmatprep.subr.mxu0 0.0
    %1231 = vmatpush1.msra.mxu0 0.0
    %1232 = vmatprep.subr.mxu0 0.0
    %1233 = vmatpush1.msra.mxu0 0.0
    %1234 = vmatprep.subr.mxu0 0.0
    %1235 = vmatpush1.msra.mxu0 0.0
    %1236 = vmatprep.subr.mxu0 0.0
    %1237 = vmatpush1.msra.mxu0 0.0
    %1238 = vmatprep.subr.mxu0 0.0
    %1239 = vmatpush1.msra.mxu0 0.0
    %1240 = vmatprep.subr.mxu0 0.0
    %1241 = vmatpush1.msra.mxu0 0.0
    %1242 = vmatprep.mubr.f32.mxu0 0.0
    %1243 = vmatmul.mubr.f32.gmra.mrb[0].mxu0 %v1176
    %v1244 = vpop.f32.mrb[0].mxu0
    %v1245 = vadd.f32 0.0, %v1244
    %v1246 = vpop.f32.mrb[0].mxu0
    %1247 = vdwg.mxu0
    %1249 = vrot.lane.b32.xlu0 %v1245, 8
    %v1250 = vpop.permute.xlu0 %1249
    %1252 = vst.msk [vmem:[#allocation2 + $0x8] sm:$0xff] %vm569, %v1250
    %1253 = vrot.lane.b32.xlu0 %v226, 112
    %v1254 = vpop.permute.xlu0 %1253
    %1255 = vrot.lane.b32.xlu0 %v226, 80
    %v1256 = vpop.permute.xlu0 %1255
    %v1257 = vsel %vm237, %v1254, 0
    %v1259 = vsel %vm237, %v1256, 0
    %1261 = vmatprep.subr.mxu0 0.0
    %1262 = vmatpush1.xpose.msra.mxu0 %v1259
    %1263 = vmatprep.subr.mxu0 0.0
    %1264 = vmatpush1.xpose.msra.mxu0 0.0
    %1265 = vmatprep.subr.mxu0 0.0
    %1266 = vmatpush1.xpose.msra.mxu0 0.0
    %1267 = vmatprep.subr.mxu0 0.0
    %1268 = vmatpush1.xpose.msra.mxu0 0.0
    %1269 = vmatprep.subr.mxu0 0.0
    %1270 = vmatpush1.xpose.msra.mxu0 0.0
    %1271 = vmatprep.subr.mxu0 0.0
    %1272 = vmatpush1.xpose.msra.mxu0 0.0
    %1273 = vmatprep.subr.mxu0 0.0
    %1274 = vmatpush1.xpose.msra.mxu0 0.0
    %1275 = vmatprep.subr.mxu0 0.0
    %1276 = vmatpush1.xpose.msra.mxu0 0.0
    %1277 = vmatprep.subr.mxu0 0.0
    %1278 = vmatpush1.xpose.msra.mxu0 0.0
    %1279 = vmatprep.subr.mxu0 0.0
    %1280 = vmatpush1.xpose.msra.mxu0 0.0
    %1281 = vmatprep.subr.mxu0 0.0
    %1282 = vmatpush1.xpose.msra.mxu0 0.0
    %1283 = vmatprep.subr.mxu0 0.0
    %1284 = vmatpush1.xpose.msra.mxu0 0.0
    %1285 = vmatprep.subr.mxu0 0.0
    %1286 = vmatpush1.xpose.msra.mxu0 0.0
    %1287 = vmatprep.subr.mxu0 0.0
    %1288 = vmatpush1.xpose.msra.mxu0 0.0
    %1289 = vmatprep.subr.mxu0 0.0
    %1290 = vmatpush1.xpose.msra.mxu0 0.0
    %1291 = vmatprep.subr.mxu0 0.0
    %1292 = vmatpush1.xpose.msra.mxu0 0.0
    %1293 = vmatprep.subr.mxu0 0.0
    %1294 = vmatpush1.xpose.msra.mxu0 0.0
    %1295 = vmatprep.subr.mxu0 0.0
    %1296 = vmatpush1.xpose.msra.mxu0 0.0
    %1297 = vmatprep.subr.mxu0 0.0
    %1298 = vmatpush1.xpose.msra.mxu0 0.0
    %1299 = vmatprep.subr.mxu0 0.0
    %1300 = vmatpush1.xpose.msra.mxu0 0.0
    %1301 = vmatprep.subr.mxu0 0.0
    %1302 = vmatpush1.xpose.msra.mxu0 0.0
    %1303 = vmatprep.subr.mxu0 0.0
    %1304 = vmatpush1.xpose.msra.mxu0 0.0
    %1305 = vmatprep.subr.mxu0 0.0
    %1306 = vmatpush1.xpose.msra.mxu0 0.0
    %1307 = vmatprep.subr.mxu0 0.0
    %1308 = vmatpush1.xpose.msra.mxu0 0.0
    %1309 = vmatprep.subr.mxu0 0.0
    %1310 = vmatpush1.xpose.msra.mxu0 0.0
    %1311 = vmatprep.subr.mxu0 0.0
    %1312 = vmatpush1.xpose.msra.mxu0 0.0
    %1313 = vmatprep.subr.mxu0 0.0
    %1314 = vmatpush1.xpose.msra.mxu0 0.0
    %1315 = vmatprep.subr.mxu0 0.0
    %1316 = vmatpush1.xpose.msra.mxu0 0.0
    %1317 = vmatprep.subr.mxu0 0.0
    %1318 = vmatpush1.xpose.msra.mxu0 0.0
    %1319 = vmatprep.subr.mxu0 0.0
    %1320 = vmatpush1.xpose.msra.mxu0 0.0
    %1321 = vmatprep.subr.mxu0 0.0
    %1322 = vmatpush1.xpose.msra.mxu0 0.0
    %1323 = vmatprep.subr.mxu0 0.0
    %1324 = vmatpush1.xpose.msra.mxu0 0.0
    %1325 = vmatprep.mubr.f32.mxu0 0.0
    %1326 = vmatmul.mubr.f32.gmra.mrb[0].mxu0 %v1257
    %v1327 = vpop.f32.mrb[0].mxu0
    %v1328 = vadd.f32 %v917, %v1327
    %v1329 = vpop.f32.mrb[0].mxu0
    %1330 = vdwg.mxu0
    %v1331 = vsel %vm237, %v1328, -inf
    %1332 = vmax.xlane.f32.xlu0 %v1331
    %v1333 = vpop.xlane.xlu0 %1332
    %v1334 = vsub.f32 %v1328, %v1333
    %v1335 = vmul.f32 %v1334, 1.442695
    %v1336 = vpow.pop %v1335
    %v1337 = vsel %vm237, %v1336, 0.0
    %1338 = vadd.xlane.f32.xlu0 %v1337
    %v1339 = vpop.xlane.xlu0 %1338
    %v1340 = vrcp.pop %v1339
    %v1341 = vmul.f32 %v1336, %v1340
    %1342 = vrot.lane.b32.xlu0 %v226, 48
    %v1343 = vpop.permute.xlu0 %1342
    %v1346 = vsel %vm237, %v1341, 0
    %1348 = vmatprep.subr.mxu0 0.0
    %1349 = vmatpush1.msra.mxu0 %v1343
    %1350 = vmatprep.subr.mxu0 0.0
    %1351 = vmatpush1.msra.mxu0 0.0
    %1352 = vmatprep.subr.mxu0 0.0
    %1353 = vmatpush1.msra.mxu0 0.0
    %1354 = vmatprep.subr.mxu0 0.0
    %1355 = vmatpush1.msra.mxu0 0.0
    %1356 = vmatprep.subr.mxu0 0.0
    %1357 = vmatpush1.msra.mxu0 0.0
    %1358 = vmatprep.subr.mxu0 0.0
    %1359 = vmatpush1.msra.mxu0 0.0
    %1360 = vmatprep.subr.mxu0 0.0
    %1361 = vmatpush1.msra.mxu0 0.0
    %1362 = vmatprep.subr.mxu0 0.0
    %1363 = vmatpush1.msra.mxu0 0.0
    %1364 = vmatprep.subr.mxu0 0.0
    %1365 = vmatpush1.msra.mxu0 0.0
    %1366 = vmatprep.subr.mxu0 0.0
    %1367 = vmatpush1.msra.mxu0 0.0
    %1368 = vmatprep.subr.mxu0 0.0
    %1369 = vmatpush1.msra.mxu0 0.0
    %1370 = vmatprep.subr.mxu0 0.0
    %1371 = vmatpush1.msra.mxu0 0.0
    %1372 = vmatprep.subr.mxu0 0.0
    %1373 = vmatpush1.msra.mxu0 0.0
    %1374 = vmatprep.subr.mxu0 0.0
    %1375 = vmatpush1.msra.mxu0 0.0
    %1376 = vmatprep.subr.mxu0 0.0
    %1377 = vmatpush1.msra.mxu0 0.0
    %1378 = vmatprep.subr.mxu0 0.0
    %1379 = vmatpush1.msra.mxu0 0.0
    %1380 = vmatprep.subr.mxu0 0.0
    %1381 = vmatpush1.msra.mxu0 0.0
    %1382 = vmatprep.subr.mxu0 0.0
    %1383 = vmatpush1.msra.mxu0 0.0
    %1384 = vmatprep.subr.mxu0 0.0
    %1385 = vmatpush1.msra.mxu0 0.0
    %1386 = vmatprep.subr.mxu0 0.0
    %1387 = vmatpush1.msra.mxu0 0.0
    %1388 = vmatprep.subr.mxu0 0.0
    %1389 = vmatpush1.msra.mxu0 0.0
    %1390 = vmatprep.subr.mxu0 0.0
    %1391 = vmatpush1.msra.mxu0 0.0
    %1392 = vmatprep.subr.mxu0 0.0
    %1393 = vmatpush1.msra.mxu0 0.0
    %1394 = vmatprep.subr.mxu0 0.0
    %1395 = vmatpush1.msra.mxu0 0.0
    %1396 = vmatprep.subr.mxu0 0.0
    %1397 = vmatpush1.msra.mxu0 0.0
    %1398 = vmatprep.subr.mxu0 0.0
    %1399 = vmatpush1.msra.mxu0 0.0
    %1400 = vmatprep.subr.mxu0 0.0
    %1401 = vmatpush1.msra.mxu0 0.0
    %1402 = vmatprep.subr.mxu0 0.0
    %1403 = vmatpush1.msra.mxu0 0.0
    %1404 = vmatprep.subr.mxu0 0.0
    %1405 = vmatpush1.msra.mxu0 0.0
    %1406 = vmatprep.subr.mxu0 0.0
    %1407 = vmatpush1.msra.mxu0 0.0
    %1408 = vmatprep.subr.mxu0 0.0
    %1409 = vmatpush1.msra.mxu0 0.0
    %1410 = vmatprep.subr.mxu0 0.0
    %1411 = vmatpush1.msra.mxu0 0.0
    %1412 = vmatprep.mubr.f32.mxu0 0.0
    %1413 = vmatmul.mubr.f32.gmra.mrb[0].mxu0 %v1346
    %v1414 = vpop.f32.mrb[0].mxu0
    %v1415 = vadd.f32 0.0, %v1414
    %v1416 = vpop.f32.mrb[0].mxu0
    %1417 = vdwg.mxu0
    %1419 = vrot.lane.b32.xlu0 %v1415, 16
    %v1420 = vpop.permute.xlu0 %1419
    %1422 = vst.msk [vmem:[#allocation2 + $0x8] sm:$0xff] %vm740, %v1420
    %1423 = vrot.lane.b32.xlu0 %v226, 104
    %v1424 = vpop.permute.xlu0 %1423
    %1425 = vrot.lane.b32.xlu0 %v226, 72
    %v1426 = vpop.permute.xlu0 %1425
    %v1427 = vsel %vm237, %v1424, 0
    %v1429 = vsel %vm237, %v1426, 0
    %1431 = vmatprep.subr.mxu0 0.0
    %1432 = vmatpush1.xpose.msra.mxu0 %v1429
    %1433 = vmatprep.subr.mxu0 0.0
    %1434 = vmatpush1.xpose.msra.mxu0 0.0
    %1435 = vmatprep.subr.mxu0 0.0
    %1436 = vmatpush1.xpose.msra.mxu0 0.0
    %1437 = vmatprep.subr.mxu0 0.0
    %1438 = vmatpush1.xpose.msra.mxu0 0.0
    %1439 = vmatprep.subr.mxu0 0.0
    %1440 = vmatpush1.xpose.msra.mxu0 0.0
    %1441 = vmatprep.subr.mxu0 0.0
    %1442 = vmatpush1.xpose.msra.mxu0 0.0
    %1443 = vmatprep.subr.mxu0 0.0
    %1444 = vmatpush1.xpose.msra.mxu0 0.0
    %1445 = vmatprep.subr.mxu0 0.0
    %1446 = vmatpush1.xpose.msra.mxu0 0.0
    %1447 = vmatprep.subr.mxu0 0.0
    %1448 = vmatpush1.xpose.msra.mxu0 0.0
    %1449 = vmatprep.subr.mxu0 0.0
    %1450 = vmatpush1.xpose.msra.mxu0 0.0
    %1451 = vmatprep.subr.mxu0 0.0
    %1452 = vmatpush1.xpose.msra.mxu0 0.0
    %1453 = vmatprep.subr.mxu0 0.0
    %1454 = vmatpush1.xpose.msra.mxu0 0.0
    %1455 = vmatprep.subr.mxu0 0.0
    %1456 = vmatpush1.xpose.msra.mxu0 0.0
    %1457 = vmatprep.subr.mxu0 0.0
    %1458 = vmatpush1.xpose.msra.mxu0 0.0
    %1459 = vmatprep.subr.mxu0 0.0
    %1460 = vmatpush1.xpose.msra.mxu0 0.0
    %1461 = vmatprep.subr.mxu0 0.0
    %1462 = vmatpush1.xpose.msra.mxu0 0.0
    %1463 = vmatprep.subr.mxu0 0.0
    %1464 = vmatpush1.xpose.msra.mxu0 0.0
    %1465 = vmatprep.subr.mxu0 0.0
    %1466 = vmatpush1.xpose.msra.mxu0 0.0
    %1467 = vmatprep.subr.mxu0 0.0
    %1468 = vmatpush1.xpose.msra.mxu0 0.0
    %1469 = vmatprep.subr.mxu0 0.0
    %1470 = vmatpush1.xpose.msra.mxu0 0.0
    %1471 = vmatprep.subr.mxu0 0.0
    %1472 = vmatpush1.xpose.msra.mxu0 0.0
    %1473 = vmatprep.subr.mxu0 0.0
    %1474 = vmatpush1.xpose.msra.mxu0 0.0
    %1475 = vmatprep.subr.mxu0 0.0
    %1476 = vmatpush1.xpose.msra.mxu0 0.0
    %1477 = vmatprep.subr.mxu0 0.0
    %1478 = vmatpush1.xpose.msra.mxu0 0.0
    %1479 = vmatprep.subr.mxu0 0.0
    %1480 = vmatpush1.xpose.msra.mxu0 0.0
    %1481 = vmatprep.subr.mxu0 0.0
    %1482 = vmatpush1.xpose.msra.mxu0 0.0
    %1483 = vmatprep.subr.mxu0 0.0
    %1484 = vmatpush1.xpose.msra.mxu0 0.0
    %1485 = vmatprep.subr.mxu0 0.0
    %1486 = vmatpush1.xpose.msra.mxu0 0.0
    %1487 = vmatprep.subr.mxu0 0.0
    %1488 = vmatpush1.xpose.msra.mxu0 0.0
    %1489 = vmatprep.subr.mxu0 0.0
    %1490 = vmatpush1.xpose.msra.mxu0 0.0
    %1491 = vmatprep.subr.mxu0 0.0
    %1492 = vmatpush1.xpose.msra.mxu0 0.0
    %1493 = vmatprep.subr.mxu0 0.0
    %1494 = vmatpush1.xpose.msra.mxu0 0.0
    %1495 = vmatprep.mubr.f32.mxu0 0.0
    %1496 = vmatmul.mubr.f32.gmra.mrb[0].mxu0 %v1427
    %v1497 = vpop.f32.mrb[0].mxu0
    %v1498 = vadd.f32 %v917, %v1497
    %v1499 = vpop.f32.mrb[0].mxu0
    %1500 = vdwg.mxu0
    %v1501 = vsel %vm237, %v1498, -inf
    %1502 = vmax.xlane.f32.xlu0 %v1501
    %v1503 = vpop.xlane.xlu0 %1502
    %v1504 = vsub.f32 %v1498, %v1503
    %v1505 = vmul.f32 %v1504, 1.442695
    %v1506 = vpow.pop %v1505
    %v1507 = vsel %vm237, %v1506, 0.0
    %1508 = vadd.xlane.f32.xlu0 %v1507
    %v1509 = vpop.xlane.xlu0 %1508
    %v1510 = vrcp.pop %v1509
    %v1511 = vmul.f32 %v1506, %v1510
    %1512 = vrot.lane.b32.xlu0 %v226, 40
    %v1513 = vpop.permute.xlu0 %1512
    %v1516 = vsel %vm237, %v1511, 0
    %1518 = vmatprep.subr.mxu0 0.0
    %1519 = vmatpush1.msra.mxu0 %v1513
    %1520 = vmatprep.subr.mxu0 0.0
    %1521 = vmatpush1.msra.mxu0 0.0
    %1522 = vmatprep.subr.mxu0 0.0
    %1523 = vmatpush1.msra.mxu0 0.0
    %1524 = vmatprep.subr.mxu0 0.0
    %1525 = vmatpush1.msra.mxu0 0.0
    %1526 = vmatprep.subr.mxu0 0.0
    %1527 = vmatpush1.msra.mxu0 0.0
    %1528 = vmatprep.subr.mxu0 0.0
    %1529 = vmatpush1.msra.mxu0 0.0
    %1530 = vmatprep.subr.mxu0 0.0
    %1531 = vmatpush1.msra.mxu0 0.0
    %1532 = vmatprep.subr.mxu0 0.0
    %1533 = vmatpush1.msra.mxu0 0.0
    %1534 = vmatprep.subr.mxu0 0.0
    %1535 = vmatpush1.msra.mxu0 0.0
    %1536 = vmatprep.subr.mxu0 0.0
    %1537 = vmatpush1.msra.mxu0 0.0
    %1538 = vmatprep.subr.mxu0 0.0
    %1539 = vmatpush1.msra.mxu0 0.0
    %1540 = vmatprep.subr.mxu0 0.0
    %1541 = vmatpush1.msra.mxu0 0.0
    %1542 = vmatprep.subr.mxu0 0.0
    %1543 = vmatpush1.msra.mxu0 0.0
    %1544 = vmatprep.subr.mxu0 0.0
    %1545 = vmatpush1.msra.mxu0 0.0
    %1546 = vmatprep.subr.mxu0 0.0
    %1547 = vmatpush1.msra.mxu0 0.0
    %1548 = vmatprep.subr.mxu0 0.0
    %1549 = vmatpush1.msra.mxu0 0.0
    %1550 = vmatprep.subr.mxu0 0.0
    %1551 = vmatpush1.msra.mxu0 0.0
    %1552 = vmatprep.subr.mxu0 0.0
    %1553 = vmatpush1.msra.mxu0 0.0
    %1554 = vmatprep.subr.mxu0 0.0
    %1555 = vmatpush1.msra.mxu0 0.0
    %1556 = vmatprep.subr.mxu0 0.0
    %1557 = vmatpush1.msra.mxu0 0.0
    %1558 = vmatprep.subr.mxu0 0.0
    %1559 = vmatpush1.msra.mxu0 0.0
    %1560 = vmatprep.subr.mxu0 0.0
    %1561 = vmatpush1.msra.mxu0 0.0
    %1562 = vmatprep.subr.mxu0 0.0
    %1563 = vmatpush1.msra.mxu0 0.0
    %1564 = vmatprep.subr.mxu0 0.0
    %1565 = vmatpush1.msra.mxu0 0.0
    %1566 = vmatprep.subr.mxu0 0.0
    %1567 = vmatpush1.msra.mxu0 0.0
    %1568 = vmatprep.subr.mxu0 0.0
    %1569 = vmatpush1.msra.mxu0 0.0
    %1570 = vmatprep.subr.mxu0 0.0
    %1571 = vmatpush1.msra.mxu0 0.0
    %1572 = vmatprep.subr.mxu0 0.0
    %1573 = vmatpush1.msra.mxu0 0.0
    %1574 = vmatprep.subr.mxu0 0.0
    %1575 = vmatpush1.msra.mxu0 0.0
    %1576 = vmatprep.subr.mxu0 0.0
    %1577 = vmatpush1.msra.mxu0 0.0
    %1578 = vmatprep.subr.mxu0 0.0
    %1579 = vmatpush1.msra.mxu0 0.0
    %1580 = vmatprep.subr.mxu0 0.0
    %1581 = vmatpush1.msra.mxu0 0.0
    %1582 = vmatprep.mubr.f32.mxu0 0.0
    %1583 = vmatmul.mubr.f32.gmra.mrb[0].mxu0 %v1516
    %v1584 = vpop.f32.mrb[0].mxu0
    %v1585 = vadd.f32 0.0, %v1584
    %v1586 = vpop.f32.mrb[0].mxu0
    %1587 = vdwg.mxu0
    %1589 = vrot.lane.b32.xlu0 %v1585, 24
    %v1590 = vpop.permute.xlu0 %1589
    %1592 = vst.msk [vmem:[#allocation2 + $0x8] sm:$0xff] %vm911, %v1590
    %v1593 = vld [vmem:[#allocation2] sm:$0xff]
    %v1594 = vld [vmem:[#allocation2 + $0x8] sm:$0xff]
    %v1595 = vld [vmem:[#allocation4] sm:$0xff]
    %v1596 = vld [vmem:[#allocation4 + $0x8] sm:$0xff]
    %v1597 = vld [vmem:[#allocation4 + $0x10] sm:$0xff]
    %v1598 = vld [vmem:[#allocation4 + $0x18] sm:$0xff]
    %v1599 = vld [vmem:[%s7] sm:$0x1]
    %v1601 = vlaneseq
    %v1602 = vshrl.u32 %v1601, 7
    %v1603 = vsub.s32 0, %v1602
    %v1604 = vrot.slane %v1599, %v1603
    %v1607 = vsel %vm93, %v1593, 0
    %v1610 = vsel %vm93, %v1594, 0
    %1612 = vmatprep.subr.mxu0 0.0
    %1613 = vmatpush1.msra.mxu0 %v1595
    %1614 = vmatprep.subr.mxu0 0.0
    %1615 = vmatpush1.msra.mxu0 %v1596
    %1616 = vmatprep.subr.mxu0 0.0
    %1617 = vmatpush1.msra.mxu0 %v1597
    %1618 = vmatprep.subr.mxu0 0.0
    %1619 = vmatpush1.msra.mxu0 %v1598
    %1620 = vmatprep.subr.mxu0 0.0
    %1621 = vmatpush1.msra.mxu0 0.0
    %1622 = vmatprep.subr.mxu0 0.0
    %1623 = vmatpush1.msra.mxu0 0.0
    %1624 = vmatprep.subr.mxu0 0.0
    %1625 = vmatpush1.msra.mxu0 0.0
    %1626 = vmatprep.subr.mxu0 0.0
    %1627 = vmatpush1.msra.mxu0 0.0
    %1628 = vmatprep.subr.mxu0 0.0
    %1629 = vmatpush1.msra.mxu0 0.0
    %1630 = vmatprep.subr.mxu0 0.0
    %1631 = vmatpush1.msra.mxu0 0.0
    %1632 = vmatprep.subr.mxu0 0.0
    %1633 = vmatpush1.msra.mxu0 0.0
    %1634 = vmatprep.subr.mxu0 0.0
    %1635 = vmatpush1.msra.mxu0 0.0
    %1636 = vmatprep.subr.mxu0 0.0
    %1637 = vmatpush1.msra.mxu0 0.0
    %1638 = vmatprep.subr.mxu0 0.0
    %1639 = vmatpush1.msra.mxu0 0.0
    %1640 = vmatprep.subr.mxu0 0.0
    %1641 = vmatpush1.msra.mxu0 0.0
    %1642 = vmatprep.subr.mxu0 0.0
    %1643 = vmatpush1.msra.mxu0 0.0
    %1644 = vmatprep.subr.mxu0 0.0
    %1645 = vmatpush1.msra.mxu0 0.0
    %1646 = vmatprep.subr.mxu0 0.0
    %1647 = vmatpush1.msra.mxu0 0.0
    %1648 = vmatprep.subr.mxu0 0.0
    %1649 = vmatpush1.msra.mxu0 0.0
    %1650 = vmatprep.subr.mxu0 0.0
    %1651 = vmatpush1.msra.mxu0 0.0
    %1652 = vmatprep.subr.mxu0 0.0
    %1653 = vmatpush1.msra.mxu0 0.0
    %1654 = vmatprep.subr.mxu0 0.0
    %1655 = vmatpush1.msra.mxu0 0.0
    %1656 = vmatprep.subr.mxu0 0.0
    %1657 = vmatpush1.msra.mxu0 0.0
    %1658 = vmatprep.subr.mxu0 0.0
    %1659 = vmatpush1.msra.mxu0 0.0
    %1660 = vmatprep.subr.mxu0 0.0
    %1661 = vmatpush1.msra.mxu0 0.0
    %1662 = vmatprep.subr.mxu0 0.0
    %1663 = vmatpush1.msra.mxu0 0.0
    %1664 = vmatprep.subr.mxu0 0.0
    %1665 = vmatpush1.msra.mxu0 0.0
    %1666 = vmatprep.subr.mxu0 0.0
    %1667 = vmatpush1.msra.mxu0 0.0
    %1668 = vmatprep.subr.mxu0 0.0
    %1669 = vmatpush1.msra.mxu0 0.0
    %1670 = vmatprep.subr.mxu0 0.0
    %1671 = vmatpush1.msra.mxu0 0.0
    %1672 = vmatprep.subr.mxu0 0.0
    %1673 = vmatpush1.msra.mxu0 0.0
    %1674 = vmatprep.subr.mxu0 0.0
    %1675 = vmatpush1.msra.mxu0 0.0
    %1676 = vmatprep.mubr.f32.mxu0 0.0
    %1677 = vmatmul.mubr.f32.gmra.mrb[0].mxu0 %v1607
    %v1678 = vpop.f32.mrb[0].mxu0
    %v1679 = vadd.f32 %v1604, %v1678
    %v1680 = vpop.f32.mrb[0].mxu0
    %1681 = vmatprep.mubr.f32.mxu0 0.0
    %1682 = vmatmul.mubr.f32.gmra.mrb[0].mxu0 %v1610
    %v1683 = vpop.f32.mrb[0].mxu0
    %v1684 = vadd.f32 %v1604, %v1683
    %v1685 = vpop.f32.mrb[0].mxu0
    %1686 = vdwg.mxu0
    %v1687 = vadd.f32 %v135, %v1679
    %v1688 = vadd.f32 %v136, %v1684
    %v1689 = vld [vmem:[%s8] sm:$0x1]
    %v1690 = vld [vmem:[%s9] sm:$0x1]
    %v1691 = vsel %vm93, %v1687, 0.0
    %1692 = vadd.xlane.f32.xlu0 %v1691
    %v1693 = vpop.xlane.xlu0 %1692
    %v1694 = vsel %vm93, %v1688, 0.0
    %1695 = vadd.xlane.f32.xlu0 %v1694
    %v1696 = vpop.xlane.xlu0 %1695
    %v1697 = vmul.f32 %v1693, %v100
    %v1698 = vmul.f32 %v1696, %v100
    %v1699 = vsub.f32 %v1687, %v1697
    %v1700 = vsub.f32 %v1688, %v1698
    %v1701 = vmul.f32 %v1699, %v1699
    %v1702 = vmul.f32 %v1700, %v1700
    %v1703 = vsel %vm93, %v1701, 0.0
    %1704 = vadd.xlane.f32.xlu0 %v1703
    %v1705 = vpop.xlane.xlu0 %1704
    %v1706 = vsel %vm93, %v1702, 0.0
    %1707 = vadd.xlane.f32.xlu0 %v1706
    %v1708 = vpop.xlane.xlu0 %1707
    %v1709 = vmul.f32 %v1705, %v100
    %v1710 = vmul.f32 %v1708, %v100
    %v1711 = vadd.f32 %v1709, 1e-05
    %v1712 = vadd.f32 %v1710, 1e-05
    %v1713 = vrsqrt.pop %v1711
    %v1714 = vrsqrt.pop %v1712
    %v1715 = vmul.f32 %v1699, %v1713
    %v1716 = vmul.f32 %v1700, %v1714
    %v1718 = vlaneseq
    %v1719 = vshrl.u32 %v1718, 7
    %v1720 = vsub.s32 0, %v1719
    %v1721 = vrot.slane %v1689, %v1720
    %v1723 = vmul.f32 %v1715, %v1721
    %v1724 = vmul.f32 %v1716, %v1721
    %v1726 = vlaneseq
    %v1727 = vshrl.u32 %v1726, 7
    %v1728 = vsub.s32 0, %v1727
    %v1729 = vrot.slane %v1690, %v1728
    %v1731 = vadd.f32 %v1723, %v1729
    %v1732 = vadd.f32 %v1724, %v1729
    %v1733 = vld [vmem:[#allocation6] sm:$0xff]
    %v1734 = vld [vmem:[#allocation6 + $0x8] sm:$0xff]
    %v1735 = vld [vmem:[#allocation6 + $0x10] sm:$0xff]
    %v1736 = vld [vmem:[#allocation6 + $0x18] sm:$0xff]
    %v1737 = vld [vmem:[%s11] sm:$0x1]
    %v1739 = vlaneseq
    %v1740 = vshrl.u32 %v1739, 7
    %v1741 = vsub.s32 0, %v1740
    %v1742 = vrot.slane %v1737, %v1741
    %v1745 = vsel %vm93, %v1731, 0
    %v1748 = vsel %vm93, %v1732, 0
    %1750 = vmatprep.subr.mxu0 0.0
    %1751 = vmatpush1.msra.mxu0 %v1733
    %1752 = vmatprep.subr.mxu0 0.0
    %1753 = vmatpush1.msra.mxu0 %v1734
    %1754 = vmatprep.subr.mxu0 0.0
    %1755 = vmatpush1.msra.mxu0 %v1735
    %1756 = vmatprep.subr.mxu0 0.0
    %1757 = vmatpush1.msra.mxu0 %v1736
    %1758 = vmatprep.subr.mxu0 0.0
    %1759 = vmatpush1.msra.mxu0 0.0
    %1760 = vmatprep.subr.mxu0 0.0
    %1761 = vmatpush1.msra.mxu0 0.0
    %1762 = vmatprep.subr.mxu0 0.0
    %1763 = vmatpush1.msra.mxu0 0.0
    %1764 = vmatprep.subr.mxu0 0.0
    %1765 = vmatpush1.msra.mxu0 0.0
    %1766 = vmatprep.subr.mxu0 0.0
    %1767 = vmatpush1.msra.mxu0 0.0
    %1768 = vmatprep.subr.mxu0 0.0
    %1769 = vmatpush1.msra.mxu0 0.0
    %1770 = vmatprep.subr.mxu0 0.0
    %1771 = vmatpush1.msra.mxu0 0.0
    %1772 = vmatprep.subr.mxu0 0.0
    %1773 = vmatpush1.msra.mxu0 0.0
    %1774 = vmatprep.subr.mxu0 0.0
    %1775 = vmatpush1.msra.mxu0 0.0
    %1776 = vmatprep.subr.mxu0 0.0
    %1777 = vmatpush1.msra.mxu0 0.0
    %1778 = vmatprep.subr.mxu0 0.0
    %1779 = vmatpush1.msra.mxu0 0.0
    %1780 = vmatprep.subr.mxu0 0.0
    %1781 = vmatpush1.msra.mxu0 0.0
    %1782 = vmatprep.subr.mxu0 0.0
    %1783 = vmatpush1.msra.mxu0 0.0
    %1784 = vmatprep.subr.mxu0 0.0
    %1785 = vmatpush1.msra.mxu0 0.0
    %1786 = vmatprep.subr.mxu0 0.0
    %1787 = vmatpush1.msra.mxu0 0.0
    %1788 = vmatprep.subr.mxu0 0.0
    %1789 = vmatpush1.msra.mxu0 0.0
    %1790 = vmatprep.subr.mxu0 0.0
    %1791 = vmatpush1.msra.mxu0 0.0
    %1792 = vmatprep.subr.mxu0 0.0
    %1793 = vmatpush1.msra.mxu0 0.0
    %1794 = vmatprep.subr.mxu0 0.0
    %1795 = vmatpush1.msra.mxu0 0.0
    %1796 = vmatprep.subr.mxu0 0.0
    %1797 = vmatpush1.msra.mxu0 0.0
    %1798 = vmatprep.subr.mxu0 0.0
    %1799 = vmatpush1.msra.mxu0 0.0
    %1800 = vmatprep.subr.mxu0 0.0
    %1801 = vmatpush1.msra.mxu0 0.0
    %1802 = vmatprep.subr.mxu0 0.0
    %1803 = vmatpush1.msra.mxu0 0.0
    %1804 = vmatprep.subr.mxu0 0.0
    %1805 = vmatpush1.msra.mxu0 0.0
    %1806 = vmatprep.subr.mxu0 0.0
    %1807 = vmatpush1.msra.mxu0 0.0
    %1808 = vmatprep.subr.mxu0 0.0
    %1809 = vmatpush1.msra.mxu0 0.0
    %1810 = vmatprep.subr.mxu0 0.0
    %1811 = vmatpush1.msra.mxu0 0.0
    %1812 = vmatprep.subr.mxu0 0.0
    %1813 = vmatpush1.msra.mxu0 0.0
    %1814 = vmatprep.mubr.f32.mxu0 0.0
    %1815 = vmatmul.mubr.f32.gmra.mrb[0].mxu0 %v1745
    %v1816 = vpop.f32.mrb[0].mxu0
    %v1817 = vadd.f32 %v1742, %v1816
    %v1818 = vpop.f32.mrb[0].mxu0
    %1819 = vmatprep.mubr.f32.mxu0 0.0
    %1820 = vmatmul.mubr.f32.gmra.mrb[0].mxu0 %v1748
    %v1821 = vpop.f32.mrb[0].mxu0
    %v1822 = vadd.f32 %v1742, %v1821
    %v1823 = vpop.f32.mrb[0].mxu0
    %1824 = vdwg.mxu0
    %v1825 = vmul.f32 %v1817, 0.5
    %v1826 = vmul.f32 %v1822, 0.5
    %v1827 = vmul.f32 %v1817, 0.044715
    %v1828 = vmul.f32 %v1822, 0.044715
    %v1829 = vmul.f32 %v1827, %v1817
    %v1830 = vmul.f32 %v1828, %v1822
    %v1831 = vmul.f32 %v1829, %v1817
    %v1832 = vmul.f32 %v1830, %v1822
    %v1833 = vadd.f32 %v1817, %v1831
    %v1834 = vadd.f32 %v1822, %v1832
    %v1835 = vmul.f32 %v1833, 0.7978846
    %v1836 = vmul.f32 %v1834, 0.7978846
    %v1837 = vtanh.pop %v1835
    %v1838 = vtanh.pop %v1836
    %v1839 = vadd.f32 %v1837, 1.0
    %v1840 = vadd.f32 %v1838, 1.0
    %v1841 = vmul.f32 %v1825, %v1839
    %v1842 = vmul.f32 %v1826, %v1840
    %v1843 = vld [vmem:[%s12] sm:$0xff]
    %v1844 = vld [vmem:[%s12 + $0x8] sm:$0xff]
    %v1845 = vld [vmem:[%s12 + $0x10] sm:$0xff]
    %v1846 = vld [vmem:[%s12 + $0x18] sm:$0xff]
    %v1847 = vld [vmem:[%s12 + $0x20] sm:$0xff]
    %v1848 = vld [vmem:[%s12 + $0x28] sm:$0xff]
    %v1849 = vld [vmem:[%s12 + $0x30] sm:$0xff]
    %v1850 = vld [vmem:[%s12 + $0x38] sm:$0xff]
    %v1851 = vld [vmem:[%s13] sm:$0x1]
    %v1853 = vlaneseq
    %v1854 = vshrl.u32 %v1853, 7
    %v1855 = vsub.s32 0, %v1854
    %v1856 = vrot.slane %v1851, %v1855
    %vm1858 = vcmask 523264
    %v1860 = vsel %vm1858, %v1841, 0
    %v1863 = vsel %vm1858, %v1842, 0
    %1865 = vmatprep.subr.mxu0 0.0
    %1866 = vmatpush1.msra.mxu0 %v1843
    %1867 = vmatprep.subr.mxu0 0.0
    %1868 = vmatpush1.msra.mxu0 %v1844
    %1869 = vmatprep.subr.mxu0 0.0
    %1870 = vmatpush1.msra.mxu0 %v1845
    %1871 = vmatprep.subr.mxu0 0.0
    %1872 = vmatpush1.msra.mxu0 %v1846
    %1873 = vmatprep.subr.mxu0 0.0
    %1874 = vmatpush1.msra.mxu0 %v1847
    %1875 = vmatprep.subr.mxu0 0.0
    %1876 = vmatpush1.msra.mxu0 %v1848
    %1877 = vmatprep.subr.mxu0 0.0
    %1878 = vmatpush1.msra.mxu0 %v1849
    %1879 = vmatprep.subr.mxu0 0.0
    %1880 = vmatpush1.msra.mxu0 %v1850
    %1881 = vmatprep.subr.mxu0 0.0
    %1882 = vmatpush1.msra.mxu0 0.0
    %1883 = vmatprep.subr.mxu0 0.0
    %1884 = vmatpush1.msra.mxu0 0.0
    %1885 = vmatprep.subr.mxu0 0.0
    %1886 = vmatpush1.msra.mxu0 0.0
    %1887 = vmatprep.subr.mxu0 0.0
    %1888 = vmatpush1.msra.mxu0 0.0
    %1889 = vmatprep.subr.mxu0 0.0
    %1890 = vmatpush1.msra.mxu0 0.0
    %1891 = vmatprep.subr.mxu0 0.0
    %1892 = vmatpush1.msra.mxu0 0.0
    %1893 = vmatprep.subr.mxu0 0.0
    %1894 = vmatpush1.msra.mxu0 0.0
    %1895 = vmatprep.subr.mxu0 0.0
    %1896 = vmatpush1.msra.mxu0 0.0
    %1897 = vmatprep.subr.mxu0 0.0
    %1898 = vmatpush1.msra.mxu0 0.0
    %1899 = vmatprep.subr.mxu0 0.0
    %1900 = vmatpush1.msra.mxu0 0.0
    %1901 = vmatprep.subr.mxu0 0.0
    %1902 = vmatpush1.msra.mxu0 0.0
    %1903 = vmatprep.subr.mxu0 0.0
    %1904 = vmatpush1.msra.mxu0 0.0
    %1905 = vmatprep.subr.mxu0 0.0
    %1906 = vmatpush1.msra.mxu0 0.0
    %1907 = vmatprep.subr.mxu0 0.0
    %1908 = vmatpush1.msra.mxu0 0.0
    %1909 = vmatprep.subr.mxu0 0.0
    %1910 = vmatpush1.msra.mxu0 0.0
    %1911 = vmatprep.subr.mxu0 0.0
    %1912 = vmatpush1.msra.mxu0 0.0
    %1913 = vmatprep.subr.mxu0 0.0
    %1914 = vmatpush1.msra.mxu0 0.0
    %1915 = vmatprep.subr.mxu0 0.0
    %1916 = vmatpush1.msra.mxu0 0.0
    %1917 = vmatprep.subr.mxu0 0.0
    %1918 = vmatpush1.msra.mxu0 0.0
    %1919 = vmatprep.subr.mxu0 0.0
    %1920 = vmatpush1.msra.mxu0 0.0
    %1921 = vmatprep.subr.mxu0 0.0
    %1922 = vmatpush1.msra.mxu0 0.0
    %1923 = vmatprep.subr.mxu0 0.0
    %1924 = vmatpush1.msra.mxu0 0.0
    %1925 = vmatprep.subr.mxu0 0.0
    %1926 = vmatpush1.msra.mxu0 0.0
    %1927 = vmatprep.subr.mxu0 0.0
    %1928 = vmatpush1.msra.mxu0 0.0
    %1929 = vmatprep.mubr.f32.mxu0 0.0
    %1930 = vmatmul.mubr.f32.gmra.mrb[0].mxu0 %v1860
    %v1931 = vpop.f32.mrb[0].mxu0
    %v1932 = vadd.f32 %v1856, %v1931
    %v1933 = vpop.f32.mrb[0].mxu0
    %1934 = vmatprep.mubr.f32.mxu0 0.0
    %1935 = vmatmul.mubr.f32.gmra.mrb[0].mxu0 %v1863
    %v1936 = vpop.f32.mrb[0].mxu0
    %v1937 = vadd.f32 %v1856, %v1936
    %v1938 = vpop.f32.mrb[0].mxu0
    %1939 = vdwg.mxu0
    %v1940 = vadd.f32 %v1731, %v1932
    %v1941 = vadd.f32 %v1732, %v1937
    %v1942 = vld [vmem:[%s14] sm:$0x1]
    %v1943 = vld [vmem:[%s15] sm:$0x1]
    %v1944 = vsel %vm93, %v1940, 0.0
    %1945 = vadd.xlane.f32.xlu0 %v1944
    %v1946 = vpop.xlane.xlu0 %1945
    %v1947 = vsel %vm93, %v1941, 0.0
    %1948 = vadd.xlane.f32.xlu0 %v1947
    %v1949 = vpop.xlane.xlu0 %1948
    %v1950 = vmul.f32 %v1946, %v100
    %v1951 = vmul.f32 %v1949, %v100
    %v1952 = vsub.f32 %v1940, %v1950
    %v1953 = vsub.f32 %v1941, %v1951
    %v1954 = vmul.f32 %v1952, %v1952
    %v1955 = vmul.f32 %v1953, %v1953
    %v1956 = vsel %vm93, %v1954, 0.0
    %1957 = vadd.xlane.f32.xlu0 %v1956
    %v1958 = vpop.xlane.xlu0 %1957
    %v1959 = vsel %vm93, %v1955, 0.0
    %1960 = vadd.xlane.f32.xlu0 %v1959
    %v1961 = vpop.xlane.xlu0 %1960
    %v1962 = vmul.f32 %v1958, %v100
    %v1963 = vmul.f32 %v1961, %v100
    %v1964 = vadd.f32 %v1962, 1e-05
    %v1965 = vadd.f32 %v1963, 1e-05
    %v1966 = vrsqrt.pop %v1964
    %v1967 = vrsqrt.pop %v1965
    %v1968 = vmul.f32 %v1952, %v1966
    %v1969 = vmul.f32 %v1953, %v1967
    %v1971 = vlaneseq
    %v1972 = vshrl.u32 %v1971, 7
    %v1973 = vsub.s32 0, %v1972
    %v1974 = vrot.slane %v1942, %v1973
    %v1976 = vmul.f32 %v1968, %v1974
    %v1977 = vmul.f32 %v1969, %v1974
    %v1979 = vlaneseq
    %v1980 = vshrl.u32 %v1979, 7
    %v1981 = vsub.s32 0, %v1980
    %v1982 = vrot.slane %v1943, %v1981
    %v1984 = vadd.f32 %v1976, %v1982
    %v1985 = vadd.f32 %v1977, %v1982
    %s1986 = scalar_lea.vmem %s4, 32
    %v1987 = vld [vmem:[%s1986] sm:$0xff]
    %v1988 = vld [vmem:[%s1986 + $0x8] sm:$0xff]
    %v1989 = vld [vmem:[%s1986 + $0x10] sm:$0xff]
    %v1990 = vld [vmem:[%s1986 + $0x18] sm:$0xff]
    %s1991 = scalar_lea.vmem %s5, 1
    %v1992 = vld [vmem:[%s1991] sm:$0x1]
    %v1994 = vlaneseq
    %v1995 = vshrl.u32 %v1994, 7
    %v1996 = vsub.s32 0, %v1995
    %v1997 = vrot.slane %v1992, %v1996
    %v2000 = vsel %vm93, %v1984, 0
    %v2003 = vsel %vm93, %v1985, 0
    %2005 = vmatprep.subr.mxu0 0.0
    %2006 = vmatpush1.msra.mxu0 %v1987
    %2007 = vmatprep.subr.mxu0 0.0
    %2008 = vmatpush1.msra.mxu0 %v1988
    %2009 = vmatprep.subr.mxu0 0.0
    %2010 = vmatpush1.msra.mxu0 %v1989
    %2011 = vmatprep.subr.mxu0 0.0
    %2012 = vmatpush1.msra.mxu0 %v1990
    %2013 = vmatprep.subr.mxu0 0.0
    %2014 = vmatpush1.msra.mxu0 0.0
    %2015 = vmatprep.subr.mxu0 0.0
    %2016 = vmatpush1.msra.mxu0 0.0
    %2017 = vmatprep.subr.mxu0 0.0
    %2018 = vmatpush1.msra.mxu0 0.0
    %2019 = vmatprep.subr.mxu0 0.0
    %2020 = vmatpush1.msra.mxu0 0.0
    %2021 = vmatprep.subr.mxu0 0.0
    %2022 = vmatpush1.msra.mxu0 0.0
    %2023 = vmatprep.subr.mxu0 0.0
    %2024 = vmatpush1.msra.mxu0 0.0
    %2025 = vmatprep.subr.mxu0 0.0
    %2026 = vmatpush1.msra.mxu0 0.0
    %2027 = vmatprep.subr.mxu0 0.0
    %2028 = vmatpush1.msra.mxu0 0.0
    %2029 = vmatprep.subr.mxu0 0.0
    %2030 = vmatpush1.msra.mxu0 0.0
    %2031 = vmatprep.subr.mxu0 0.0
    %2032 = vmatpush1.msra.mxu0 0.0
    %2033 = vmatprep.subr.mxu0 0.0
    %2034 = vmatpush1.msra.mxu0 0.0
    %2035 = vmatprep.subr.mxu0 0.0
    %2036 = vmatpush1.msra.mxu0 0.0
    %2037 = vmatprep.subr.mxu0 0.0
    %2038 = vmatpush1.msra.mxu0 0.0
    %2039 = vmatprep.subr.mxu0 0.0
    %2040 = vmatpush1.msra.mxu0 0.0
    %2041 = vmatprep.subr.mxu0 0.0
    %2042 = vmatpush1.msra.mxu0 0.0
    %2043 = vmatprep.subr.mxu0 0.0
    %2044 = vmatpush1.msra.mxu0 0.0
    %2045 = vmatprep.subr.mxu0 0.0
    %2046 = vmatpush1.msra.mxu0 0.0
    %2047 = vmatprep.subr.mxu0 0.0
    %2048 = vmatpush1.msra.mxu0 0.0
    %2049 = vmatprep.subr.mxu0 0.0
    %2050 = vmatpush1.msra.mxu0 0.0
    %2051 = vmatprep.subr.mxu0 0.0
    %2052 = vmatpush1.msra.mxu0 0.0
    %2053 = vmatprep.subr.mxu0 0.0
    %2054 = vmatpush1.msra.mxu0 0.0
    %2055 = vmatprep.subr.mxu0 0.0
    %2056 = vmatpush1.msra.mxu0 0.0
    %2057 = vmatprep.subr.mxu0 0.0
    %2058 = vmatpush1.msra.mxu0 0.0
    %2059 = vmatprep.subr.mxu0 0.0
    %2060 = vmatpush1.msra.mxu0 0.0
    %2061 = vmatprep.subr.mxu0 0.0
    %2062 = vmatpush1.msra.mxu0 0.0
    %2063 = vmatprep.subr.mxu0 0.0
    %2064 = vmatpush1.msra.mxu0 0.0
    %2065 = vmatprep.subr.mxu0 0.0
    %2066 = vmatpush1.msra.mxu0 0.0
    %2067 = vmatprep.subr.mxu0 0.0
    %2068 = vmatpush1.msra.mxu0 0.0
    %2069 = vmatprep.mubr.f32.mxu0 0.0
    %2070 = vmatmul.mubr.f32.gmra.mrb[0].mxu0 %v2000
    %v2071 = vpop.f32.mrb[0].mxu0
    %v2072 = vadd.f32 %v1997, %v2071
    %v2073 = vpop.f32.mrb[0].mxu0
    %2074 = vmatprep.mubr.f32.mxu0 0.0
    %2075 = vmatmul.mubr.f32.gmra.mrb[0].mxu0 %v2003
    %v2076 = vpop.f32.mrb[0].mxu0
    %v2077 = vadd.f32 %v1997, %v2076
    %v2078 = vpop.f32.mrb[0].mxu0
    %2079 = vdwg.mxu0
    %v2080 = vld [vmem:[%s1] sm:$0x1]
    %v2081 = vlaneseq
    %v2082 = vshrl.u32 %v2081, 7
    %v2083 = vsub.s32 0, %v2082
    %v2084 = vrot.slane %v2080, %v2083
    %2086 = vrot.lane.b32.xlu0 %v2072, 96
    %v2087 = vpop.permute.xlu0 %2086
    %v2088 = vsel %vm237, %v2072, 0
    %v2090 = vsel %vm237, %v2087, 0
    %2092 = vmatprep.subr.mxu0 0.0
    %2093 = vmatpush1.xpose.msra.mxu0 %v2090
    %2094 = vmatprep.subr.mxu0 0.0
    %2095 = vmatpush1.xpose.msra.mxu0 0.0
    %2096 = vmatprep.subr.mxu0 0.0
    %2097 = vmatpush1.xpose.msra.mxu0 0.0
    %2098 = vmatprep.subr.mxu0 0.0
    %2099 = vmatpush1.xpose.msra.mxu0 0.0
    %2100 = vmatprep.subr.mxu0 0.0
    %2101 = vmatpush1.xpose.msra.mxu0 0.0
    %2102 = vmatprep.subr.mxu0 0.0
    %2103 = vmatpush1.xpose.msra.mxu0 0.0
    %2104 = vmatprep.subr.mxu0 0.0
    %2105 = vmatpush1.xpose.msra.mxu0 0.0
    %2106 = vmatprep.subr.mxu0 0.0
    %2107 = vmatpush1.xpose.msra.mxu0 0.0
    %2108 = vmatprep.subr.mxu0 0.0
    %2109 = vmatpush1.xpose.msra.mxu0 0.0
    %2110 = vmatprep.subr.mxu0 0.0
    %2111 = vmatpush1.xpose.msra.mxu0 0.0
    %2112 = vmatprep.subr.mxu0 0.0
    %2113 = vmatpush1.xpose.msra.mxu0 0.0
    %2114 = vmatprep.subr.mxu0 0.0
    %2115 = vmatpush1.xpose.msra.mxu0 0.0
    %2116 = vmatprep.subr.mxu0 0.0
    %2117 = vmatpush1.xpose.msra.mxu0 0.0
    %2118 = vmatprep.subr.mxu0 0.0
    %2119 = vmatpush1.xpose.msra.mxu0 0.0
    %2120 = vmatprep.subr.mxu0 0.0
    %2121 = vmatpush1.xpose.msra.mxu0 0.0
    %2122 = vmatprep.subr.mxu0 0.0
    %2123 = vmatpush1.xpose.msra.mxu0 0.0
    %2124 = vmatprep.subr.mxu0 0.0
    %2125 = vmatpush1.xpose.msra.mxu0 0.0
    %2126 = vmatprep.subr.mxu0 0.0
    %2127 = vmatpush1.xpose.msra.mxu0 0.0
    %2128 = vmatprep.subr.mxu0 0.0
    %2129 = vmatpush1.xpose.msra.mxu0 0.0
    %2130 = vmatprep.subr.mxu0 0.0
    %2131 = vmatpush1.xpose.msra.mxu0 0.0
    %2132 = vmatprep.subr.mxu0 0.0
    %2133 = vmatpush1.xpose.msra.mxu0 0.0
    %2134 = vmatprep.subr.mxu0 0.0
    %2135 = vmatpush1.xpose.msra.mxu0 0.0
    %2136 = vmatprep.subr.mxu0 0.0
    %2137 = vmatpush1.xpose.msra.mxu0 0.0
    %2138 = vmatprep.subr.mxu0 0.0
    %2139 = vmatpush1.xpose.msra.mxu0 0.0
    %2140 = vmatprep.subr.mxu0 0.0
    %2141 = vmatpush1.xpose.msra.mxu0 0.0
    %2142 = vmatprep.subr.mxu0 0.0
    %2143 = vmatpush1.xpose.msra.mxu0 0.0
    %2144 = vmatprep.subr.mxu0 0.0
    %2145 = vmatpush1.xpose.msra.mxu0 0.0
    %2146 = vmatprep.subr.mxu0 0.0
    %2147 = vmatpush1.xpose.msra.mxu0 0.0
    %2148 = vmatprep.subr.mxu0 0.0
    %2149 = vmatpush1.xpose.msra.mxu0 0.0
    %2150 = vmatprep.subr.mxu0 0.0
    %2151 = vmatpush1.xpose.msra.mxu0 0.0
    %2152 = vmatprep.subr.mxu0 0.0
    %2153 = vmatpush1.xpose.msra.mxu0 0.0
    %2154 = vmatprep.subr.mxu0 0.0
    %2155 = vmatpush1.xpose.msra.mxu0 0.0
    %2156 = vmatprep.mubr.f32.mxu0 0.0
    %2157 = vmatmul.mubr.f32.gmra.mrb[0].mxu0 %v2088
    %v2158 = vpop.f32.mrb[0].mxu0
    %v2159 = vadd.f32 %v2084, %v2158
    %v2160 = vpop.f32.mrb[0].mxu0
    %2161 = vdwg.mxu0
    %v2162 = vsel %vm237, %v2159, -inf
    %2163 = vmax.xlane.f32.xlu0 %v2162
    %v2164 = vpop.xlane.xlu0 %2163
    %v2165 = vsub.f32 %v2159, %v2164
    %v2166 = vmul.f32 %v2165, 1.442695
    %v2167 = vpow.pop %v2166
    %v2168 = vsel %vm237, %v2167, 0.0
    %2169 = vadd.xlane.f32.xlu0 %v2168
    %v2170 = vpop.xlane.xlu0 %2169
    %v2171 = vrcp.pop %v2170
    %v2172 = vmul.f32 %v2167, %v2171
    %2173 = vrot.lane.b32.xlu0 %v2072, 64
    %v2174 = vpop.permute.xlu0 %2173
    %v2177 = vsel %vm237, %v2172, 0
    %2179 = vmatprep.subr.mxu0 0.0
    %2180 = vmatpush1.msra.mxu0 %v2174
    %2181 = vmatprep.subr.mxu0 0.0
    %2182 = vmatpush1.msra.mxu0 0.0
    %2183 = vmatprep.subr.mxu0 0.0
    %2184 = vmatpush1.msra.mxu0 0.0
    %2185 = vmatprep.subr.mxu0 0.0
    %2186 = vmatpush1.msra.mxu0 0.0
    %2187 = vmatprep.subr.mxu0 0.0
    %2188 = vmatpush1.msra.mxu0 0.0
    %2189 = vmatprep.subr.mxu0 0.0
    %2190 = vmatpush1.msra.mxu0 0.0
    %2191 = vmatprep.subr.mxu0 0.0
    %2192 = vmatpush1.msra.mxu0 0.0
    %2193 = vmatprep.subr.mxu0 0.0
    %2194 = vmatpush1.msra.mxu0 0.0
    %2195 = vmatprep.subr.mxu0 0.0
    %2196 = vmatpush1.msra.mxu0 0.0
    %2197 = vmatprep.subr.mxu0 0.0
    %2198 = vmatpush1.msra.mxu0 0.0
    %2199 = vmatprep.subr.mxu0 0.0
    %2200 = vmatpush1.msra.mxu0 0.0
    %2201 = vmatprep.subr.mxu0 0.0
    %2202 = vmatpush1.msra.mxu0 0.0
    %2203 = vmatprep.subr.mxu0 0.0
    %2204 = vmatpush1.msra.mxu0 0.0
    %2205 = vmatprep.subr.mxu0 0.0
    %2206 = vmatpush1.msra.mxu0 0.0
    %2207 = vmatprep.subr.mxu0 0.0
    %2208 = vmatpush1.msra.mxu0 0.0
    %2209 = vmatprep.subr.mxu0 0.0
    %2210 = vmatpush1.msra.mxu0 0.0
    %2211 = vmatprep.subr.mxu0 0.0
    %2212 = vmatpush1.msra.mxu0 0.0
    %2213 = vmatprep.subr.mxu0 0.0
    %2214 = vmatpush1.msra.mxu0 0.0
    %2215 = vmatprep.subr.mxu0 0.0
    %2216 = vmatpush1.msra.mxu0 0.0
    %2217 = vmatprep.subr.mxu0 0.0
    %2218 = vmatpush1.msra.mxu0 0.0
    %2219 = vmatprep.subr.mxu0 0.0
    %2220 = vmatpush1.msra.mxu0 0.0
    %2221 = vmatprep.subr.mxu0 0.0
    %2222 = vmatpush1.msra.mxu0 0.0
    %2223 = vmatprep.subr.mxu0 0.0
    %2224 = vmatpush1.msra.mxu0 0.0
    %2225 = vmatprep.subr.mxu0 0.0
    %2226 = vmatpush1.msra.mxu0 0.0
    %2227 = vmatprep.subr.mxu0 0.0
    %2228 = vmatpush1.msra.mxu0 0.0
    %2229 = vmatprep.subr.mxu0 0.0
    %2230 = vmatpush1.msra.mxu0 0.0
    %2231 = vmatprep.subr.mxu0 0.0
    %2232 = vmatpush1.msra.mxu0 0.0
    %2233 = vmatprep.subr.mxu0 0.0
    %2234 = vmatpush1.msra.mxu0 0.0
    %2235 = vmatprep.subr.mxu0 0.0
    %2236 = vmatpush1.msra.mxu0 0.0
    %2237 = vmatprep.subr.mxu0 0.0
    %2238 = vmatpush1.msra.mxu0 0.0
    %2239 = vmatprep.subr.mxu0 0.0
    %2240 = vmatpush1.msra.mxu0 0.0
    %2241 = vmatprep.subr.mxu0 0.0
    %2242 = vmatpush1.msra.mxu0 0.0
    %2243 = vmatprep.mubr.f32.mxu0 0.0
    %2244 = vmatmul.mubr.f32.gmra.mrb[0].mxu0 %v2177
    %v2245 = vpop.f32.mrb[0].mxu0
    %v2246 = vadd.f32 0.0, %v2245
    %v2247 = vpop.f32.mrb[0].mxu0
    %2248 = vdwg.mxu0
    %2249 = vst.msk [vmem:[#allocation2] sm:$0xff] %vm237, %v2246
    %2250 = vrot.lane.b32.xlu0 %v2072, 120
    %v2251 = vpop.permute.xlu0 %2250
    %2252 = vrot.lane.b32.xlu0 %v2072, 88
    %v2253 = vpop.permute.xlu0 %2252
    %v2254 = vsel %vm237, %v2251, 0
    %v2256 = vsel %vm237, %v2253, 0
    %2258 = vmatprep.subr.mxu0 0.0
    %2259 = vmatpush1.xpose.msra.mxu0 %v2256
    %2260 = vmatprep.subr.mxu0 0.0
    %2261 = vmatpush1.xpose.msra.mxu0 0.0
    %2262 = vmatprep.subr.mxu0 0.0
    %2263 = vmatpush1.xpose.msra.mxu0 0.0
    %2264 = vmatprep.subr.mxu0 0.0
    %2265 = vmatpush1.xpose.msra.mxu0 0.0
    %2266 = vmatprep.subr.mxu0 0.0
    %2267 = vmatpush1.xpose.msra.mxu0 0.0
    %2268 = vmatprep.subr.mxu0 0.0
    %2269 = vmatpush1.xpose.msra.mxu0 0.0
    %2270 = vmatprep.subr.mxu0 0.0
    %2271 = vmatpush1.xpose.msra.mxu0 0.0
    %2272 = vmatprep.subr.mxu0 0.0
    %2273 = vmatpush1.xpose.msra.mxu0 0.0
    %2274 = vmatprep.subr.mxu0 0.0
    %2275 = vmatpush1.xpose.msra.mxu0 0.0
    %2276 = vmatprep.subr.mxu0 0.0
    %2277 = vmatpush1.xpose.msra.mxu0 0.0
    %2278 = vmatprep.subr.mxu0 0.0
    %2279 = vmatpush1.xpose.msra.mxu0 0.0
    %2280 = vmatprep.subr.mxu0 0.0
    %2281 = vmatpush1.xpose.msra.mxu0 0.0
    %2282 = vmatprep.subr.mxu0 0.0
    %2283 = vmatpush1.xpose.msra.mxu0 0.0
    %2284 = vmatprep.subr.mxu0 0.0
    %2285 = vmatpush1.xpose.msra.mxu0 0.0
    %2286 = vmatprep.subr.mxu0 0.0
    %2287 = vmatpush1.xpose.msra.mxu0 0.0
    %2288 = vmatprep.subr.mxu0 0.0
    %2289 = vmatpush1.xpose.msra.mxu0 0.0
    %2290 = vmatprep.subr.mxu0 0.0
    %2291 = vmatpush1.xpose.msra.mxu0 0.0
    %2292 = vmatprep.subr.mxu0 0.0
    %2293 = vmatpush1.xpose.msra.mxu0 0.0
    %2294 = vmatprep.subr.mxu0 0.0
    %2295 = vmatpush1.xpose.msra.mxu0 0.0
    %2296 = vmatprep.subr.mxu0 0.0
    %2297 = vmatpush1.xpose.msra.mxu0 0.0
    %2298 = vmatprep.subr.mxu0 0.0
    %2299 = vmatpush1.xpose.msra.mxu0 0.0
    %2300 = vmatprep.subr.mxu0 0.0
    %2301 = vmatpush1.xpose.msra.mxu0 0.0
    %2302 = vmatprep.subr.mxu0 0.0
    %2303 = vmatpush1.xpose.msra.mxu0 0.0
    %2304 = vmatprep.subr.mxu0 0.0
    %2305 = vmatpush1.xpose.msra.mxu0 0.0
    %2306 = vmatprep.subr.mxu0 0.0
    %2307 = vmatpush1.xpose.msra.mxu0 0.0
    %2308 = vmatprep.subr.mxu0 0.0
    %2309 = vmatpush1.xpose.msra.mxu0 0.0
    %2310 = vmatprep.subr.mxu0 0.0
    %2311 = vmatpush1.xpose.msra.mxu0 0.0
    %2312 = vmatprep.subr.mxu0 0.0
    %2313 = vmatpush1.xpose.msra.mxu0 0.0
    %2314 = vmatprep.subr.mxu0 0.0
    %2315 = vmatpush1.xpose.msra.mxu0 0.0
    %2316 = vmatprep.subr.mxu0 0.0
    %2317 = vmatpush1.xpose.msra.mxu0 0.0
    %2318 = vmatprep.subr.mxu0 0.0
    %2319 = vmatpush1.xpose.msra.mxu0 0.0
    %2320 = vmatprep.subr.mxu0 0.0
    %2321 = vmatpush1.xpose.msra.mxu0 0.0
    %2322 = vmatprep.mubr.f32.mxu0 0.0
    %2323 = vmatmul.mubr.f32.gmra.mrb[0].mxu0 %v2254
    %v2324 = vpop.f32.mrb[0].mxu0
    %v2325 = vadd.f32 %v2084, %v2324
    %v2326 = vpop.f32.mrb[0].mxu0
    %2327 = vdwg.mxu0
    %v2328 = vsel %vm237, %v2325, -inf
    %2329 = vmax.xlane.f32.xlu0 %v2328
    %v2330 = vpop.xlane.xlu0 %2329
    %v2331 = vsub.f32 %v2325, %v2330
    %v2332 = vmul.f32 %v2331, 1.442695
    %v2333 = vpow.pop %v2332
    %v2334 = vsel %vm237, %v2333, 0.0
    %2335 = vadd.xlane.f32.xlu0 %v2334
    %v2336 = vpop.xlane.xlu0 %2335
    %v2337 = vrcp.pop %v2336
    %v2338 = vmul.f32 %v2333, %v2337
    %2339 = vrot.lane.b32.xlu0 %v2072, 56
    %v2340 = vpop.permute.xlu0 %2339
    %v2343 = vsel %vm237, %v2338, 0
    %2345 = vmatprep.subr.mxu0 0.0
    %2346 = vmatpush1.msra.mxu0 %v2340
    %2347 = vmatprep.subr.mxu0 0.0
    %2348 = vmatpush1.msra.mxu0 0.0
    %2349 = vmatprep.subr.mxu0 0.0
    %2350 = vmatpush1.msra.mxu0 0.0
    %2351 = vmatprep.subr.mxu0 0.0
    %2352 = vmatpush1.msra.mxu0 0.0
    %2353 = vmatprep.subr.mxu0 0.0
    %2354 = vmatpush1.msra.mxu0 0.0
    %2355 = vmatprep.subr.mxu0 0.0
    %2356 = vmatpush1.msra.mxu0 0.0
    %2357 = vmatprep.subr.mxu0 0.0
    %2358 = vmatpush1.msra.mxu0 0.0
    %2359 = vmatprep.subr.mxu0 0.0
    %2360 = vmatpush1.msra.mxu0 0.0
    %2361 = vmatprep.subr.mxu0 0.0
    %2362 = vmatpush1.msra.mxu0 0.0
    %2363 = vmatprep.subr.mxu0 0.0
    %2364 = vmatpush1.msra.mxu0 0.0
    %2365 = vmatprep.subr.mxu0 0.0
    %2366 = vmatpush1.msra.mxu0 0.0
    %2367 = vmatprep.subr.mxu0 0.0
    %2368 = vmatpush1.msra.mxu0 0.0
    %2369 = vmatprep.subr.mxu0 0.0
    %2370 = vmatpush1.msra.mxu0 0.0
    %2371 = vmatprep.subr.mxu0 0.0
    %2372 = vmatpush1.msra.mxu0 0.0
    %2373 = vmatprep.subr.mxu0 0.0
    %2374 = vmatpush1.msra.mxu0 0.0
    %2375 = vmatprep.subr.mxu0 0.0
    %2376 = vmatpush1.msra.mxu0 0.0
    %2377 = vmatprep.subr.mxu0 0.0
    %2378 = vmatpush1.msra.mxu0 0.0
    %2379 = vmatprep.subr.mxu0 0.0
    %2380 = vmatpush1.msra.mxu0 0.0
    %2381 = vmatprep.subr.mxu0 0.0
    %2382 = vmatpush1.msra.mxu0 0.0
    %2383 = vmatprep.subr.mxu0 0.0
    %2384 = vmatpush1.msra.mxu0 0.0
    %2385 = vmatprep.subr.mxu0 0.0
    %2386 = vmatpush1.msra.mxu0 0.0
    %2387 = vmatprep.subr.mxu0 0.0
    %2388 = vmatpush1.msra.mxu0 0.0
    %2389 = vmatprep.subr.mxu0 0.0
    %2390 = vmatpush1.msra.mxu0 0.0
    %2391 = vmatprep.subr.mxu0 0.0
    %2392 = vmatpush1.msra.mxu0 0.0
    %2393 = vmatprep.subr.mxu0 0.0
    %2394 = vmatpush1.msra.mxu0 0.0
    %2395 = vmatprep.subr.mxu0 0.0
    %2396 = vmatpush1.msra.mxu0 0.0
    %2397 = vmatprep.subr.mxu0 0.0
    %2398 = vmatpush1.msra.mxu0 0.0
    %2399 = vmatprep.subr.mxu0 0.0
    %2400 = vmatpush1.msra.mxu0 0.0
    %2401 = vmatprep.subr.mxu0 0.0
    %2402 = vmatpush1.msra.mxu0 0.0
    %2403 = vmatprep.subr.mxu0 0.0
    %2404 = vmatpush1.msra.mxu0 0.0
    %2405 = vmatprep.subr.mxu0 0.0
    %2406 = vmatpush1.msra.mxu0 0.0
    %2407 = vmatprep.subr.mxu0 0.0
    %2408 = vmatpush1.msra.mxu0 0.0
    %2409 = vmatprep.mubr.f32.mxu0 0.0
    %2410 = vmatmul.mubr.f32.gmra.mrb[0].mxu0 %v2343
    %v2411 = vpop.f32.mrb[0].mxu0
    %v2412 = vadd.f32 0.0, %v2411
    %v2413 = vpop.f32.mrb[0].mxu0
    %2414 = vdwg.mxu0
    %2416 = vrot.lane.b32.xlu0 %v2412, 8
    %v2417 = vpop.permute.xlu0 %2416
    %2419 = vst.msk [vmem:[#allocation2] sm:$0xff] %vm569, %v2417
    %2420 = vrot.lane.b32.xlu0 %v2072, 112
    %v2421 = vpop.permute.xlu0 %2420
    %2422 = vrot.lane.b32.xlu0 %v2072, 80
    %v2423 = vpop.permute.xlu0 %2422
    %v2424 = vsel %vm237, %v2421, 0
    %v2426 = vsel %vm237, %v2423, 0
    %2428 = vmatprep.subr.mxu0 0.0
    %2429 = vmatpush1.xpose.msra.mxu0 %v2426
    %2430 = vmatprep.subr.mxu0 0.0
    %2431 = vmatpush1.xpose.msra.mxu0 0.0
    %2432 = vmatprep.subr.mxu0 0.0
    %2433 = vmatpush1.xpose.msra.mxu0 0.0
    %2434 = vmatprep.subr.mxu0 0.0
    %2435 = vmatpush1.xpose.msra.mxu0 0.0
    %2436 = vmatprep.subr.mxu0 0.0
    %2437 = vmatpush1.xpose.msra.mxu0 0.0
    %2438 = vmatprep.subr.mxu0 0.0
    %2439 = vmatpush1.xpose.msra.mxu0 0.0
    %2440 = vmatprep.subr.mxu0 0.0
    %2441 = vmatpush1.xpose.msra.mxu0 0.0
    %2442 = vmatprep.subr.mxu0 0.0
    %2443 = vmatpush1.xpose.msra.mxu0 0.0
    %2444 = vmatprep.subr.mxu0 0.0
    %2445 = vmatpush1.xpose.msra.mxu0 0.0
    %2446 = vmatprep.subr.mxu0 0.0
    %2447 = vmatpush1.xpose.msra.mxu0 0.0
    %2448 = vmatprep.subr.mxu0 0.0
    %2449 = vmatpush1.xpose.msra.mxu0 0.0
    %2450 = vmatprep.subr.mxu0 0.0
    %2451 = vmatpush1.xpose.msra.mxu0 0.0
    %2452 = vmatprep.subr.mxu0 0.0
    %2453 = vmatpush1.xpose.msra.mxu0 0.0
    %2454 = vmatprep.subr.mxu0 0.0
    %2455 = vmatpush1.xpose.msra.mxu0 0.0
    %2456 = vmatprep.subr.mxu0 0.0
    %2457 = vmatpush1.xpose.msra.mxu0 0.0
    %2458 = vmatprep.subr.mxu0 0.0
    %2459 = vmatpush1.xpose.msra.mxu0 0.0
    %2460 = vmatprep.subr.mxu0 0.0
    %2461 = vmatpush1.xpose.msra.mxu0 0.0
    %2462 = vmatprep.subr.mxu0 0.0
    %2463 = vmatpush1.xpose.msra.mxu0 0.0
    %2464 = vmatprep.subr.mxu0 0.0
    %2465 = vmatpush1.xpose.msra.mxu0 0.0
    %2466 = vmatprep.subr.mxu0 0.0
    %2467 = vmatpush1.xpose.msra.mxu0 0.0
    %2468 = vmatprep.subr.mxu0 0.0
    %2469 = vmatpush1.xpose.msra.mxu0 0.0
    %2470 = vmatprep.subr.mxu0 0.0
    %2471 = vmatpush1.xpose.msra.mxu0 0.0
    %2472 = vmatprep.subr.mxu0 0.0
    %2473 = vmatpush1.xpose.msra.mxu0 0.0
    %2474 = vmatprep.subr.mxu0 0.0
    %2475 = vmatpush1.xpose.msra.mxu0 0.0
    %2476 = vmatprep.subr.mxu0 0.0
    %2477 = vmatpush1.xpose.msra.mxu0 0.0
    %2478 = vmatprep.subr.mxu0 0.0
    %2479 = vmatpush1.xpose.msra.mxu0 0.0
    %2480 = vmatprep.subr.mxu0 0.0
    %2481 = vmatpush1.xpose.msra.mxu0 0.0
    %2482 = vmatprep.subr.mxu0 0.0
    %2483 = vmatpush1.xpose.msra.mxu0 0.0
    %2484 = vmatprep.subr.mxu0 0.0
    %2485 = vmatpush1.xpose.msra.mxu0 0.0
    %2486 = vmatprep.subr.mxu0 0.0
    %2487 = vmatpush1.xpose.msra.mxu0 0.0
    %2488 = vmatprep.subr.mxu0 0.0
    %2489 = vmatpush1.xpose.msra.mxu0 0.0
    %2490 = vmatprep.subr.mxu0 0.0
    %2491 = vmatpush1.xpose.msra.mxu0 0.0
    %2492 = vmatprep.mubr.f32.mxu0 0.0
    %2493 = vmatmul.mubr.f32.gmra.mrb[0].mxu0 %v2424
    %v2494 = vpop.f32.mrb[0].mxu0
    %v2495 = vadd.f32 %v2084, %v2494
    %v2496 = vpop.f32.mrb[0].mxu0
    %2497 = vdwg.mxu0
    %v2498 = vsel %vm237, %v2495, -inf
    %2499 = vmax.xlane.f32.xlu0 %v2498
    %v2500 = vpop.xlane.xlu0 %2499
    %v2501 = vsub.f32 %v2495, %v2500
    %v2502 = vmul.f32 %v2501, 1.442695
    %v2503 = vpow.pop %v2502
    %v2504 = vsel %vm237, %v2503, 0.0
    %2505 = vadd.xlane.f32.xlu0 %v2504
    %v2506 = vpop.xlane.xlu0 %2505
    %v2507 = vrcp.pop %v2506
    %v2508 = vmul.f32 %v2503, %v2507
    %2509 = vrot.lane.b32.xlu0 %v2072, 48
    %v2510 = vpop.permute.xlu0 %2509
    %v2513 = vsel %vm237, %v2508, 0
    %2515 = vmatprep.subr.mxu0 0.0
    %2516 = vmatpush1.msra.mxu0 %v2510
    %2517 = vmatprep.subr.mxu0 0.0
    %2518 = vmatpush1.msra.mxu0 0.0
    %2519 = vmatprep.subr.mxu0 0.0
    %2520 = vmatpush1.msra.mxu0 0.0
    %2521 = vmatprep.subr.mxu0 0.0
    %2522 = vmatpush1.msra.mxu0 0.0
    %2523 = vmatprep.subr.mxu0 0.0
    %2524 = vmatpush1.msra.mxu0 0.0
    %2525 = vmatprep.subr.mxu0 0.0
    %2526 = vmatpush1.msra.mxu0 0.0
    %2527 = vmatprep.subr.mxu0 0.0
    %2528 = vmatpush1.msra.mxu0 0.0
    %2529 = vmatprep.subr.mxu0 0.0
    %2530 = vmatpush1.msra.mxu0 0.0
    %2531 = vmatprep.subr.mxu0 0.0
    %2532 = vmatpush1.msra.mxu0 0.0
    %2533 = vmatprep.subr.mxu0 0.0
    %2534 = vmatpush1.msra.mxu0 0.0
    %2535 = vmatprep.subr.mxu0 0.0
    %2536 = vmatpush1.msra.mxu0 0.0
    %2537 = vmatprep.subr.mxu0 0.0
    %2538 = vmatpush1.msra.mxu0 0.0
    %2539 = vmatprep.subr.mxu0 0.0
    %2540 = vmatpush1.msra.mxu0 0.0
    %2541 = vmatprep.subr.mxu0 0.0
    %2542 = vmatpush1.msra.mxu0 0.0
    %2543 = vmatprep.subr.mxu0 0.0
    %2544 = vmatpush1.msra.mxu0 0.0
    %2545 = vmatprep.subr.mxu0 0.0
    %2546 = vmatpush1.msra.mxu0 0.0
    %2547 = vmatprep.subr.mxu0 0.0
    %2548 = vmatpush1.msra.mxu0 0.0
    %2549 = vmatprep.subr.mxu0 0.0
    %2550 = vmatpush1.msra.mxu0 0.0
    %2551 = vmatprep.subr.mxu0 0.0
    %2552 = vmatpush1.msra.mxu0 0.0
    %2553 = vmatprep.subr.mxu0 0.0
    %2554 = vmatpush1.msra.mxu0 0.0
    %2555 = vmatprep.subr.mxu0 0.0
    %2556 = vmatpush1.msra.mxu0 0.0
    %2557 = vmatprep.subr.mxu0 0.0
    %2558 = vmatpush1.msra.mxu0 0.0
    %2559 = vmatprep.subr.mxu0 0.0
    %2560 = vmatpush1.msra.mxu0 0.0
    %2561 = vmatprep.subr.mxu0 0.0
    %2562 = vmatpush1.msra.mxu0 0.0
    %2563 = vmatprep.subr.mxu0 0.0
    %2564 = vmatpush1.msra.mxu0 0.0
    %2565 = vmatprep.subr.mxu0 0.0
    %2566 = vmatpush1.msra.mxu0 0.0
    %2567 = vmatprep.subr.mxu0 0.0
    %2568 = vmatpush1.msra.mxu0 0.0
    %2569 = vmatprep.subr.mxu0 0.0
    %2570 = vmatpush1.msra.mxu0 0.0
    %2571 = vmatprep.subr.mxu0 0.0
    %2572 = vmatpush1.msra.mxu0 0.0
    %2573 = vmatprep.subr.mxu0 0.0
    %2574 = vmatpush1.msra.mxu0 0.0
    %2575 = vmatprep.subr.mxu0 0.0
    %2576 = vmatpush1.msra.mxu0 0.0
    %2577 = vmatprep.subr.mxu0 0.0
    %2578 = vmatpush1.msra.mxu0 0.0
    %2579 = vmatprep.mubr.f32.mxu0 0.0
    %2580 = vmatmul.mubr.f32.gmra.mrb[0].mxu0 %v2513
    %v2581 = vpop.f32.mrb[0].mxu0
    %v2582 = vadd.f32 0.0, %v2581
    %v2583 = vpop.f32.mrb[0].mxu0
    %2584 = vdwg.mxu0
    %2586 = vrot.lane.b32.xlu0 %v2582, 16
    %v2587 = vpop.permute.xlu0 %2586
    %2589 = vst.msk [vmem:[#allocation2] sm:$0xff] %vm740, %v2587
    %2590 = vrot.lane.b32.xlu0 %v2072, 104
    %v2591 = vpop.permute.xlu0 %2590
    %2592 = vrot.lane.b32.xlu0 %v2072, 72
    %v2593 = vpop.permute.xlu0 %2592
    %v2594 = vsel %vm237, %v2591, 0
    %v2596 = vsel %vm237, %v2593, 0
    %2598 = vmatprep.subr.mxu0 0.0
    %2599 = vmatpush1.xpose.msra.mxu0 %v2596
    %2600 = vmatprep.subr.mxu0 0.0
    %2601 = vmatpush1.xpose.msra.mxu0 0.0
    %2602 = vmatprep.subr.mxu0 0.0
    %2603 = vmatpush1.xpose.msra.mxu0 0.0
    %2604 = vmatprep.subr.mxu0 0.0
    %2605 = vmatpush1.xpose.msra.mxu0 0.0
    %2606 = vmatprep.subr.mxu0 0.0
    %2607 = vmatpush1.xpose.msra.mxu0 0.0
    %2608 = vmatprep.subr.mxu0 0.0
    %2609 = vmatpush1.xpose.msra.mxu0 0.0
    %2610 = vmatprep.subr.mxu0 0.0
    %2611 = vmatpush1.xpose.msra.mxu0 0.0
    %2612 = vmatprep.subr.mxu0 0.0
    %2613 = vmatpush1.xpose.msra.mxu0 0.0
    %2614 = vmatprep.subr.mxu0 0.0
    %2615 = vmatpush1.xpose.msra.mxu0 0.0
    %2616 = vmatprep.subr.mxu0 0.0
    %2617 = vmatpush1.xpose.msra.mxu0 0.0
    %2618 = vmatprep.subr.mxu0 0.0
    %2619 = vmatpush1.xpose.msra.mxu0 0.0
    %2620 = vmatprep.subr.mxu0 0.0
    %2621 = vmatpush1.xpose.msra.mxu0 0.0
    %2622 = vmatprep.subr.mxu0 0.0
    %2623 = vmatpush1.xpose.msra.mxu0 0.0
    %2624 = vmatprep.subr.mxu0 0.0
    %2625 = vmatpush1.xpose.msra.mxu0 0.0
    %2626 = vmatprep.subr.mxu0 0.0
    %2627 = vmatpush1.xpose.msra.mxu0 0.0
    %2628 = vmatprep.subr.mxu0 0.0
    %2629 = vmatpush1.xpose.msra.mxu0 0.0
    %2630 = vmatprep.subr.mxu0 0.0
    %2631 = vmatpush1.xpose.msra.mxu0 0.0
    %2632 = vmatprep.subr.mxu0 0.0
    %2633 = vmatpush1.xpose.msra.mxu0 0.0
    %2634 = vmatprep.subr.mxu0 0.0
    %2635 = vmatpush1.xpose.msra.mxu0 0.0
    %2636 = vmatprep.subr.mxu0 0.0
    %2637 = vmatpush1.xpose.msra.mxu0 0.0
    %2638 = vmatprep.subr.mxu0 0.0
    %2639 = vmatpush1.xpose.msra.mxu0 0.0
    %2640 = vmatprep.subr.mxu0 0.0
    %2641 = vmatpush1.xpose.msra.mxu0 0.0
    %2642 = vmatprep.subr.mxu0 0.0
    %2643 = vmatpush1.xpose.msra.mxu0 0.0
    %2644 = vmatprep.subr.mxu0 0.0
    %2645 = vmatpush1.xpose.msra.mxu0 0.0
    %2646 = vmatprep.subr.mxu0 0.0
    %2647 = vmatpush1.xpose.msra.mxu0 0.0
    %2648 = vmatprep.subr.mxu0 0.0
    %2649 = vmatpush1.xpose.msra.mxu0 0.0
    %2650 = vmatprep.subr.mxu0 0.0
    %2651 = vmatpush1.xpose.msra.mxu0 0.0
    %2652 = vmatprep.subr.mxu0 0.0
    %2653 = vmatpush1.xpose.msra.mxu0 0.0
    %2654 = vmatprep.subr.mxu0 0.0
    %2655 = vmatpush1.xpose.msra.mxu0 0.0
    %2656 = vmatprep.subr.mxu0 0.0
    %2657 = vmatpush1.xpose.msra.mxu0 0.0
    %2658 = vmatprep.subr.mxu0 0.0
    %2659 = vmatpush1.xpose.msra.mxu0 0.0
    %2660 = vmatprep.subr.mxu0 0.0
    %2661 = vmatpush1.xpose.msra.mxu0 0.0
    %2662 = vmatprep.mubr.f32.mxu0 0.0
    %2663 = vmatmul.mubr.f32.gmra.mrb[0].mxu0 %v2594
    %v2664 = vpop.f32.mrb[0].mxu0
    %v2665 = vadd.f32 %v2084, %v2664
    %v2666 = vpop.f32.mrb[0].mxu0
    %2667 = vdwg.mxu0
    %v2668 = vsel %vm237, %v2665, -inf
    %2669 = vmax.xlane.f32.xlu0 %v2668
    %v2670 = vpop.xlane.xlu0 %2669
    %v2671 = vsub.f32 %v2665, %v2670
    %v2672 = vmul.f32 %v2671, 1.442695
    %v2673 = vpow.pop %v2672
    %v2674 = vsel %vm237, %v2673, 0.0
    %2675 = vadd.xlane.f32.xlu0 %v2674
    %v2676 = vpop.xlane.xlu0 %2675
    %v2677 = vrcp.pop %v2676
    %v2678 = vmul.f32 %v2673, %v2677
    %2679 = vrot.lane.b32.xlu0 %v2072, 40
    %v2680 = vpop.permute.xlu0 %2679
    %v2683 = vsel %vm237, %v2678, 0
    %2685 = vmatprep.subr.mxu0 0.0
    %2686 = vmatpush1.msra.mxu0 %v2680
    %2687 = vmatprep.subr.mxu0 0.0
    %2688 = vmatpush1.msra.mxu0 0.0
    %2689 = vmatprep.subr.mxu0 0.0
    %2690 = vmatpush1.msra.mxu0 0.0
    %2691 = vmatprep.subr.mxu0 0.0
    %2692 = vmatpush1.msra.mxu0 0.0
    %2693 = vmatprep.subr.mxu0 0.0
    %2694 = vmatpush1.msra.mxu0 0.0
    %2695 = vmatprep.subr.mxu0 0.0
    %2696 = vmatpush1.msra.mxu0 0.0
    %2697 = vmatprep.subr.mxu0 0.0
    %2698 = vmatpush1.msra.mxu0 0.0
    %2699 = vmatprep.subr.mxu0 0.0
    %2700 = vmatpush1.msra.mxu0 0.0
    %2701 = vmatprep.subr.mxu0 0.0
    %2702 = vmatpush1.msra.mxu0 0.0
    %2703 = vmatprep.subr.mxu0 0.0
    %2704 = vmatpush1.msra.mxu0 0.0
    %2705 = vmatprep.subr.mxu0 0.0
    %2706 = vmatpush1.msra.mxu0 0.0
    %2707 = vmatprep.subr.mxu0 0.0
    %2708 = vmatpush1.msra.mxu0 0.0
    %2709 = vmatprep.subr.mxu0 0.0
    %2710 = vmatpush1.msra.mxu0 0.0
    %2711 = vmatprep.subr.mxu0 0.0
    %2712 = vmatpush1.msra.mxu0 0.0
    %2713 = vmatprep.subr.mxu0 0.0
    %2714 = vmatpush1.msra.mxu0 0.0
    %2715 = vmatprep.subr.mxu0 0.0
    %2716 = vmatpush1.msra.mxu0 0.0
    %2717 = vmatprep.subr.mxu0 0.0
    %2718 = vmatpush1.msra.mxu0 0.0
    %2719 = vmatprep.subr.mxu0 0.0
    %2720 = vmatpush1.msra.mxu0 0.0
    %2721 = vmatprep.subr.mxu0 0.0
    %2722 = vmatpush1.msra.mxu0 0.0
    %2723 = vmatprep.subr.mxu0 0.0
    %2724 = vmatpush1.msra.mxu0 0.0
    %2725 = vmatprep.subr.mxu0 0.0
    %2726 = vmatpush1.msra.mxu0 0.0
    %2727 = vmatprep.subr.mxu0 0.0
    %2728 = vmatpush1.msra.mxu0 0.0
    %2729 = vmatprep.subr.mxu0 0.0
    %2730 = vmatpush1.msra.mxu0 0.0
    %2731 = vmatprep.subr.mxu0 0.0
    %2732 = vmatpush1.msra.mxu0 0.0
    %2733 = vmatprep.subr.mxu0 0.0
    %2734 = vmatpush1.msra.mxu0 0.0
    %2735 = vmatprep.subr.mxu0 0.0
    %2736 = vmatpush1.msra.mxu0 0.0
    %2737 = vmatprep.subr.mxu0 0.0
    %2738 = vmatpush1.msra.mxu0 0.0
    %2739 = vmatprep.subr.mxu0 0.0
    %2740 = vmatpush1.msra.mxu0 0.0
    %2741 = vmatprep.subr.mxu0 0.0
    %2742 = vmatpush1.msra.mxu0 0.0
    %2743 = vmatprep.subr.mxu0 0.0
    %2744 = vmatpush1.msra.mxu0 0.0
    %2745 = vmatprep.subr.mxu0 0.0
    %2746 = vmatpush1.msra.mxu0 0.0
    %2747 = vmatprep.subr.mxu0 0.0
    %2748 = vmatpush1.msra.mxu0 0.0
    %2749 = vmatprep.mubr.f32.mxu0 0.0
    %2750 = vmatmul.mubr.f32.gmra.mrb[0].mxu0 %v2683
    %v2751 = vpop.f32.mrb[0].mxu0
    %v2752 = vadd.f32 0.0, %v2751
    %v2753 = vpop.f32.mrb[0].mxu0
    %2754 = vdwg.mxu0
    %2756 = vrot.lane.b32.xlu0 %v2752, 24
    %v2757 = vpop.permute.xlu0 %2756
    %2759 = vst.msk [vmem:[#allocation2] sm:$0xff] %vm911, %v2757
    %v2760 = vld [vmem:[%s1 + $0x1] sm:$0x1]
    %v2761 = vlaneseq
    %v2762 = vshrl.u32 %v2761, 7
    %v2763 = vsub.s32 0, %v2762
    %v2764 = vrot.slane %v2760, %v2763
    %2766 = vrot.lane.b32.xlu0 %v2077, 96
    %v2767 = vpop.permute.xlu0 %2766
    %v2768 = vsel %vm237, %v2077, 0
    %v2770 = vsel %vm237, %v2767, 0
    %2772 = vmatprep.subr.mxu0 0.0
    %2773 = vmatpush1.xpose.msra.mxu0 %v2770
    %2774 = vmatprep.subr.mxu0 0.0
    %2775 = vmatpush1.xpose.msra.mxu0 0.0
    %2776 = vmatprep.subr.mxu0 0.0
    %2777 = vmatpush1.xpose.msra.mxu0 0.0
    %2778 = vmatprep.subr.mxu0 0.0
    %2779 = vmatpush1.xpose.msra.mxu0 0.0
    %2780 = vmatprep.subr.mxu0 0.0
    %2781 = vmatpush1.xpose.msra.mxu0 0.0
    %2782 = vmatprep.subr.mxu0 0.0
    %2783 = vmatpush1.xpose.msra.mxu0 0.0
    %2784 = vmatprep.subr.mxu0 0.0
    %2785 = vmatpush1.xpose.msra.mxu0 0.0
    %2786 = vmatprep.subr.mxu0 0.0
    %2787 = vmatpush1.xpose.msra.mxu0 0.0
    %2788 = vmatprep.subr.mxu0 0.0
    %2789 = vmatpush1.xpose.msra.mxu0 0.0
    %2790 = vmatprep.subr.mxu0 0.0
    %2791 = vmatpush1.xpose.msra.mxu0 0.0
    %2792 = vmatprep.subr.mxu0 0.0
    %2793 = vmatpush1.xpose.msra.mxu0 0.0
    %2794 = vmatprep.subr.mxu0 0.0
    %2795 = vmatpush1.xpose.msra.mxu0 0.0
    %2796 = vmatprep.subr.mxu0 0.0
    %2797 = vmatpush1.xpose.msra.mxu0 0.0
    %2798 = vmatprep.subr.mxu0 0.0
    %2799 = vmatpush1.xpose.msra.mxu0 0.0
    %2800 = vmatprep.subr.mxu0 0.0
    %2801 = vmatpush1.xpose.msra.mxu0 0.0
    %2802 = vmatprep.subr.mxu0 0.0
    %2803 = vmatpush1.xpose.msra.mxu0 0.0
    %2804 = vmatprep.subr.mxu0 0.0
    %2805 = vmatpush1.xpose.msra.mxu0 0.0
    %2806 = vmatprep.subr.mxu0 0.0
    %2807 = vmatpush1.xpose.msra.mxu0 0.0
    %2808 = vmatprep.subr.mxu0 0.0
    %2809 = vmatpush1.xpose.msra.mxu0 0.0
    %2810 = vmatprep.subr.mxu0 0.0
    %2811 = vmatpush1.xpose.msra.mxu0 0.0
    %2812 = vmatprep.subr.mxu0 0.0
    %2813 = vmatpush1.xpose.msra.mxu0 0.0
    %2814 = vmatprep.subr.mxu0 0.0
    %2815 = vmatpush1.xpose.msra.mxu0 0.0
    %2816 = vmatprep.subr.mxu0 0.0
    %2817 = vmatpush1.xpose.msra.mxu0 0.0
    %2818 = vmatprep.subr.mxu0 0.0
    %2819 = vmatpush1.xpose.msra.mxu0 0.0
    %2820 = vmatprep.subr.mxu0 0.0
    %2821 = vmatpush1.xpose.msra.mxu0 0.0
    %2822 = vmatprep.subr.mxu0 0.0
    %2823 = vmatpush1.xpose.msra.mxu0 0.0
    %2824 = vmatprep.subr.mxu0 0.0
    %2825 = vmatpush1.xpose.msra.mxu0 0.0
    %2826 = vmatprep.subr.mxu0 0.0
    %2827 = vmatpush1.xpose.msra.mxu0 0.0
    %2828 = vmatprep.subr.mxu0 0.0
    %2829 = vmatpush1.xpose.msra.mxu0 0.0
    %2830 = vmatprep.subr.mxu0 0.0
    %2831 = vmatpush1.xpose.msra.mxu0 0.0
    %2832 = vmatprep.subr.mxu0 0.0
    %2833 = vmatpush1.xpose.msra.mxu0 0.0
    %2834 = vmatprep.subr.mxu0 0.0
    %2835 = vmatpush1.xpose.msra.mxu0 0.0
    %2836 = vmatprep.mubr.f32.mxu0 0.0
    %2837 = vmatmul.mubr.f32.gmra.mrb[0].mxu0 %v2768
    %v2838 = vpop.f32.mrb[0].mxu0
    %v2839 = vadd.f32 %v2764, %v2838
    %v2840 = vpop.f32.mrb[0].mxu0
    %2841 = vdwg.mxu0
    %v2842 = vsel %vm237, %v2839, -inf
    %2843 = vmax.xlane.f32.xlu0 %v2842
    %v2844 = vpop.xlane.xlu0 %2843
    %v2845 = vsub.f32 %v2839, %v2844
    %v2846 = vmul.f32 %v2845, 1.442695
    %v2847 = vpow.pop %v2846
    %v2848 = vsel %vm237, %v2847, 0.0
    %2849 = vadd.xlane.f32.xlu0 %v2848
    %v2850 = vpop.xlane.xlu0 %2849
    %v2851 = vrcp.pop %v2850
    %v2852 = vmul.f32 %v2847, %v2851
    %2853 = vrot.lane.b32.xlu0 %v2077, 64
    %v2854 = vpop.permute.xlu0 %2853
    %v2857 = vsel %vm237, %v2852, 0
    %2859 = vmatprep.subr.mxu0 0.0
    %2860 = vmatpush1.msra.mxu0 %v2854
    %2861 = vmatprep.subr.mxu0 0.0
    %2862 = vmatpush1.msra.mxu0 0.0
    %2863 = vmatprep.subr.mxu0 0.0
    %2864 = vmatpush1.msra.mxu0 0.0
    %2865 = vmatprep.subr.mxu0 0.0
    %2866 = vmatpush1.msra.mxu0 0.0
    %2867 = vmatprep.subr.mxu0 0.0
    %2868 = vmatpush1.msra.mxu0 0.0
    %2869 = vmatprep.subr.mxu0 0.0
    %2870 = vmatpush1.msra.mxu0 0.0
    %2871 = vmatprep.subr.mxu0 0.0
    %2872 = vmatpush1.msra.mxu0 0.0
    %2873 = vmatprep.subr.mxu0 0.0
    %2874 = vmatpush1.msra.mxu0 0.0
    %2875 = vmatprep.subr.mxu0 0.0
    %2876 = vmatpush1.msra.mxu0 0.0
    %2877 = vmatprep.subr.mxu0 0.0
    %2878 = vmatpush1.msra.mxu0 0.0
    %2879 = vmatprep.subr.mxu0 0.0
    %2880 = vmatpush1.msra.mxu0 0.0
    %2881 = vmatprep.subr.mxu0 0.0
    %2882 = vmatpush1.msra.mxu0 0.0
    %2883 = vmatprep.subr.mxu0 0.0
    %2884 = vmatpush1.msra.mxu0 0.0
    %2885 = vmatprep.subr.mxu0 0.0
    %2886 = vmatpush1.msra.mxu0 0.0
    %2887 = vmatprep.subr.mxu0 0.0
    %2888 = vmatpush1.msra.mxu0 0.0
    %2889 = vmatprep.subr.mxu0 0.0
    %2890 = vmatpush1.msra.mxu0 0.0
    %2891 = vmatprep.subr.mxu0 0.0
    %2892 = vmatpush1.msra.mxu0 0.0
    %2893 = vmatprep.subr.mxu0 0.0
    %2894 = vmatpush1.msra.mxu0 0.0
    %2895 = vmatprep.subr.mxu0 0.0
    %2896 = vmatpush1.msra.mxu0 0.0
    %2897 = vmatprep.subr.mxu0 0.0
    %2898 = vmatpush1.msra.mxu0 0.0
    %2899 = vmatprep.subr.mxu0 0.0
    %2900 = vmatpush1.msra.mxu0 0.0
    %2901 = vmatprep.subr.mxu0 0.0
    %2902 = vmatpush1.msra.mxu0 0.0
    %2903 = vmatprep.subr.mxu0 0.0
    %2904 = vmatpush1.msra.mxu0 0.0
    %2905 = vmatprep.subr.mxu0 0.0
    %2906 = vmatpush1.msra.mxu0 0.0
    %2907 = vmatprep.subr.mxu0 0.0
    %2908 = vmatpush1.msra.mxu0 0.0
    %2909 = vmatprep.subr.mxu0 0.0
    %2910 = vmatpush1.msra.mxu0 0.0
    %2911 = vmatprep.subr.mxu0 0.0
    %2912 = vmatpush1.msra.mxu0 0.0
    %2913 = vmatprep.subr.mxu0 0.0
    %2914 = vmatpush1.msra.mxu0 0.0
    %2915 = vmatprep.subr.mxu0 0.0
    %2916 = vmatpush1.msra.mxu0 0.0
    %2917 = vmatprep.subr.mxu0 0.0
    %2918 = vmatpush1.msra.mxu0 0.0
    %2919 = vmatprep.subr.mxu0 0.0
    %2920 = vmatpush1.msra.mxu0 0.0
    %2921 = vmatprep.subr.mxu0 0.0
    %2922 = vmatpush1.msra.mxu0 0.0
    %2923 = vmatprep.mubr.f32.mxu0 0.0
    %2924 = vmatmul.mubr.f32.gmra.mrb[0].mxu0 %v2857
    %v2925 = vpop.f32.mrb[0].mxu0
    %v2926 = vadd.f32 0.0, %v2925
    %v2927 = vpop.f32.mrb[0].mxu0
    %2928 = vdwg.mxu0
    %2929 = vst.msk [vmem:[#allocation2 + $0x8] sm:$0xff] %vm237, %v2926
    %2930 = vrot.lane.b32.xlu0 %v2077, 120
    %v2931 = vpop.permute.xlu0 %2930
    %2932 = vrot.lane.b32.xlu0 %v2077, 88
    %v2933 = vpop.permute.xlu0 %2932
    %v2934 = vsel %vm237, %v2931, 0
    %v2936 = vsel %vm237, %v2933, 0
    %2938 = vmatprep.subr.mxu0 0.0
    %2939 = vmatpush1.xpose.msra.mxu0 %v2936
    %2940 = vmatprep.subr.mxu0 0.0
    %2941 = vmatpush1.xpose.msra.mxu0 0.0
    %2942 = vmatprep.subr.mxu0 0.0
    %2943 = vmatpush1.xpose.msra.mxu0 0.0
    %2944 = vmatprep.subr.mxu0 0.0
    %2945 = vmatpush1.xpose.msra.mxu0 0.0
    %2946 = vmatprep.subr.mxu0 0.0
    %2947 = vmatpush1.xpose.msra.mxu0 0.0
    %2948 = vmatprep.subr.mxu0 0.0
    %2949 = vmatpush1.xpose.msra.mxu0 0.0
    %2950 = vmatprep.subr.mxu0 0.0
    %2951 = vmatpush1.xpose.msra.mxu0 0.0
    %2952 = vmatprep.subr.mxu0 0.0
    %2953 = vmatpush1.xpose.msra.mxu0 0.0
    %2954 = vmatprep.subr.mxu0 0.0
    %2955 = vmatpush1.xpose.msra.mxu0 0.0
    %2956 = vmatprep.subr.mxu0 0.0
    %2957 = vmatpush1.xpose.msra.mxu0 0.0
    %2958 = vmatprep.subr.mxu0 0.0
    %2959 = vmatpush1.xpose.msra.mxu0 0.0
    %2960 = vmatprep.subr.mxu0 0.0
    %2961 = vmatpush1.xpose.msra.mxu0 0.0
    %2962 = vmatprep.subr.mxu0 0.0
    %2963 = vmatpush1.xpose.msra.mxu0 0.0
    %2964 = vmatprep.subr.mxu0 0.0
    %2965 = vmatpush1.xpose.msra.mxu0 0.0
    %2966 = vmatprep.subr.mxu0 0.0
    %2967 = vmatpush1.xpose.msra.mxu0 0.0
    %2968 = vmatprep.subr.mxu0 0.0
    %2969 = vmatpush1.xpose.msra.mxu0 0.0
    %2970 = vmatprep.subr.mxu0 0.0
    %2971 = vmatpush1.xpose.msra.mxu0 0.0
    %2972 = vmatprep.subr.mxu0 0.0
    %2973 = vmatpush1.xpose.msra.mxu0 0.0
    %2974 = vmatprep.subr.mxu0 0.0
    %2975 = vmatpush1.xpose.msra.mxu0 0.0
    %2976 = vmatprep.subr.mxu0 0.0
    %2977 = vmatpush1.xpose.msra.mxu0 0.0
    %2978 = vmatprep.subr.mxu0 0.0
    %2979 = vmatpush1.xpose.msra.mxu0 0.0
    %2980 = vmatprep.subr.mxu0 0.0
    %2981 = vmatpush1.xpose.msra.mxu0 0.0
    %2982 = vmatprep.subr.mxu0 0.0
    %2983 = vmatpush1.xpose.msra.mxu0 0.0
    %2984 = vmatprep.subr.mxu0 0.0
    %2985 = vmatpush1.xpose.msra.mxu0 0.0
    %2986 = vmatprep.subr.mxu0 0.0
    %2987 = vmatpush1.xpose.msra.mxu0 0.0
    %2988 = vmatprep.subr.mxu0 0.0
    %2989 = vmatpush1.xpose.msra.mxu0 0.0
    %2990 = vmatprep.subr.mxu0 0.0
    %2991 = vmatpush1.xpose.msra.mxu0 0.0
    %2992 = vmatprep.subr.mxu0 0.0
    %2993 = vmatpush1.xpose.msra.mxu0 0.0
    %2994 = vmatprep.subr.mxu0 0.0
    %2995 = vmatpush1.xpose.msra.mxu0 0.0
    %2996 = vmatprep.subr.mxu0 0.0
    %2997 = vmatpush1.xpose.msra.mxu0 0.0
    %2998 = vmatprep.subr.mxu0 0.0
    %2999 = vmatpush1.xpose.msra.mxu0 0.0
    %3000 = vmatprep.subr.mxu0 0.0
    %3001 = vmatpush1.xpose.msra.mxu0 0.0
    %3002 = vmatprep.mubr.f32.mxu0 0.0
    %3003 = vmatmul.mubr.f32.gmra.mrb[0].mxu0 %v2934
    %v3004 = vpop.f32.mrb[0].mxu0
    %v3005 = vadd.f32 %v2764, %v3004
    %v3006 = vpop.f32.mrb[0].mxu0
    %3007 = vdwg.mxu0
    %v3008 = vsel %vm237, %v3005, -inf
    %3009 = vmax.xlane.f32.xlu0 %v3008
    %v3010 = vpop.xlane.xlu0 %3009
    %v3011 = vsub.f32 %v3005, %v3010
    %v3012 = vmul.f32 %v3011, 1.442695
    %v3013 = vpow.pop %v3012
    %v3014 = vsel %vm237, %v3013, 0.0
    %3015 = vadd.xlane.f32.xlu0 %v3014
    %v3016 = vpop.xlane.xlu0 %3015
    %v3017 = vrcp.pop %v3016
    %v3018 = vmul.f32 %v3013, %v3017
    %3019 = vrot.lane.b32.xlu0 %v2077, 56
    %v3020 = vpop.permute.xlu0 %3019
    %v3023 = vsel %vm237, %v3018, 0
    %3025 = vmatprep.subr.mxu0 0.0
    %3026 = vmatpush1.msra.mxu0 %v3020
    %3027 = vmatprep.subr.mxu0 0.0
    %3028 = vmatpush1.msra.mxu0 0.0
    %3029 = vmatprep.subr.mxu0 0.0
    %3030 = vmatpush1.msra.mxu0 0.0
    %3031 = vmatprep.subr.mxu0 0.0
    %3032 = vmatpush1.msra.mxu0 0.0
    %3033 = vmatprep.subr.mxu0 0.0
    %3034 = vmatpush1.msra.mxu0 0.0
    %3035 = vmatprep.subr.mxu0 0.0
    %3036 = vmatpush1.msra.mxu0 0.0
    %3037 = vmatprep.subr.mxu0 0.0
    %3038 = vmatpush1.msra.mxu0 0.0
    %3039 = vmatprep.subr.mxu0 0.0
    %3040 = vmatpush1.msra.mxu0 0.0
    %3041 = vmatprep.subr.mxu0 0.0
    %3042 = vmatpush1.msra.mxu0 0.0
    %3043 = vmatprep.subr.mxu0 0.0
    %3044 = vmatpush1.msra.mxu0 0.0
    %3045 = vmatprep.subr.mxu0 0.0
    %3046 = vmatpush1.msra.mxu0 0.0
    %3047 = vmatprep.subr.mxu0 0.0
    %3048 = vmatpush1.msra.mxu0 0.0
    %3049 = vmatprep.subr.mxu0 0.0
    %3050 = vmatpush1.msra.mxu0 0.0
    %3051 = vmatprep.subr.mxu0 0.0
    %3052 = vmatpush1.msra.mxu0 0.0
    %3053 = vmatprep.subr.mxu0 0.0
    %3054 = vmatpush1.msra.mxu0 0.0
    %3055 = vmatprep.subr.mxu0 0.0
    %3056 = vmatpush1.msra.mxu0 0.0
    %3057 = vmatprep.subr.mxu0 0.0
    %3058 = vmatpush1.msra.mxu0 0.0
    %3059 = vmatprep.subr.mxu0 0.0
    %3060 = vmatpush1.msra.mxu0 0.0
    %3061 = vmatprep.subr.mxu0 0.0
    %3062 = vmatpush1.msra.mxu0 0.0
    %3063 = vmatprep.subr.mxu0 0.0
    %3064 = vmatpush1.msra.mxu0 0.0
    %3065 = vmatprep.subr.mxu0 0.0
    %3066 = vmatpush1.msra.mxu0 0.0
    %3067 = vmatprep.subr.mxu0 0.0
    %3068 = vmatpush1.msra.mxu0 0.0
    %3069 = vmatprep.subr.mxu0 0.0
    %3070 = vmatpush1.msra.mxu0 0.0
    %3071 = vmatprep.subr.mxu0 0.0
    %3072 = vmatpush1.msra.mxu0 0.0
    %3073 = vmatprep.subr.mxu0 0.0
    %3074 = vmatpush1.msra.mxu0 0.0
    %3075 = vmatprep.subr.mxu0 0.0
    %3076 = vmatpush1.msra.mxu0 0.0
    %3077 = vmatprep.subr.mxu0 0.0
    %3078 = vmatpush1.msra.mxu0 0.0
    %3079 = vmatprep.subr.mxu0 0.0
    %3080 = vmatpush1.msra.mxu0 0.0
    %3081 = vmatprep.subr.mxu0 0.0
    %3082 = vmatpush1.msra.mxu0 0.0
    %3083 = vmatprep.subr.mxu0 0.0
    %3084 = vmatpush1.msra.mxu0 0.0
    %3085 = vmatprep.subr.mxu0 0.0
    %3086 = vmatpush1.msra.mxu0 0.0
    %3087 = vmatprep.subr.mxu0 0.0
    %3088 = vmatpush1.msra.mxu0 0.0
    %3089 = vmatprep.mubr.f32.mxu0 0.0
    %3090 = vmatmul.mubr.f32.gmra.mrb[0].mxu0 %v3023
    %v3091 = vpop.f32.mrb[0].mxu0
    %v3092 = vadd.f32 0.0, %v3091
    %v3093 = vpop.f32.mrb[0].mxu0
    %3094 = vdwg.mxu0
    %3096 = vrot.lane.b32.xlu0 %v3092, 8
    %v3097 = vpop.permute.xlu0 %3096
    %3099 = vst.msk [vmem:[#allocation2 + $0x8] sm:$0xff] %vm569, %v3097
    %3100 = vrot.lane.b32.xlu0 %v2077, 112
    %v3101 = vpop.permute.xlu0 %3100
    %3102 = vrot.lane.b32.xlu0 %v2077, 80
    %v3103 = vpop.permute.xlu0 %3102
    %v3104 = vsel %vm237, %v3101, 0
    %v3106 = vsel %vm237, %v3103, 0
    %3108 = vmatprep.subr.mxu0 0.0
    %3109 = vmatpush1.xpose.msra.mxu0 %v3106
    %3110 = vmatprep.subr.mxu0 0.0
    %3111 = vmatpush1.xpose.msra.mxu0 0.0
    %3112 = vmatprep.subr.mxu0 0.0
    %3113 = vmatpush1.xpose.msra.mxu0 0.0
    %3114 = vmatprep.subr.mxu0 0.0
    %3115 = vmatpush1.xpose.msra.mxu0 0.0
    %3116 = vmatprep.subr.mxu0 0.0
    %3117 = vmatpush1.xpose.msra.mxu0 0.0
    %3118 = vmatprep.subr.mxu0 0.0
    %3119 = vmatpush1.xpose.msra.mxu0 0.0
    %3120 = vmatprep.subr.mxu0 0.0
    %3121 = vmatpush1.xpose.msra.mxu0 0.0
    %3122 = vmatprep.subr.mxu0 0.0
    %3123 = vmatpush1.xpose.msra.mxu0 0.0
    %3124 = vmatprep.subr.mxu0 0.0
    %3125 = vmatpush1.xpose.msra.mxu0 0.0
    %3126 = vmatprep.subr.mxu0 0.0
    %3127 = vmatpush1.xpose.msra.mxu0 0.0
    %3128 = vmatprep.subr.mxu0 0.0
    %3129 = vmatpush1.xpose.msra.mxu0 0.0
    %3130 = vmatprep.subr.mxu0 0.0
    %3131 = vmatpush1.xpose.msra.mxu0 0.0
    %3132 = vmatprep.subr.mxu0 0.0
    %3133 = vmatpush1.xpose.msra.mxu0 0.0
    %3134 = vmatprep.subr.mxu0 0.0
    %3135 = vmatpush1.xpose.msra.mxu0 0.0
    %3136 = vmatprep.subr.mxu0 0.0
    %3137 = vmatpush1.xpose.msra.mxu0 0.0
    %3138 = vmatprep.subr.mxu0 0.0
    %3139 = vmatpush1.xpose.msra.mxu0 0.0
    %3140 = vmatprep.subr.mxu0 0.0
    %3141 = vmatpush1.xpose.msra.mxu0 0.0
    %3142 = vmatprep.subr.mxu0 0.0
    %3143 = vmatpush1.xpose.msra.mxu0 0.0
    %3144 = vmatprep.subr.mxu0 0.0
    %3145 = vmatpush1.xpose.msra.mxu0 0.0
    %3146 = vmatprep.subr.mxu0 0.0
    %3147 = vmatpush1.xpose.msra.mxu0 0.0
    %3148 = vmatprep.subr.mxu0 0.0
    %3149 = vmatpush1.xpose.msra.mxu0 0.0
    %3150 = vmatprep.subr.mxu0 0.0
    %3151 = vmatpush1.xpose.msra.mxu0 0.0
    %3152 = vmatprep.subr.mxu0 0.0
    %3153 = vmatpush1.xpose.msra.mxu0 0.0
    %3154 = vmatprep.subr.mxu0 0.0
    %3155 = vmatpush1.xpose.msra.mxu0 0.0
    %3156 = vmatprep.subr.mxu0 0.0
    %3157 = vmatpush1.xpose.msra.mxu0 0.0
    %3158 = vmatprep.subr.mxu0 0.0
    %3159 = vmatpush1.xpose.msra.mxu0 0.0
    %3160 = vmatprep.subr.mxu0 0.0
    %3161 = vmatpush1.xpose.msra.mxu0 0.0
    %3162 = vmatprep.subr.mxu0 0.0
    %3163 = vmatpush1.xpose.msra.mxu0 0.0
    %3164 = vmatprep.subr.mxu0 0.0
    %3165 = vmatpush1.xpose.msra.mxu0 0.0
    %3166 = vmatprep.subr.mxu0 0.0
    %3167 = vmatpush1.xpose.msra.mxu0 0.0
    %3168 = vmatprep.subr.mxu0 0.0
    %3169 = vmatpush1.xpose.msra.mxu0 0.0
    %3170 = vmatprep.subr.mxu0 0.0
    %3171 = vmatpush1.xpose.msra.mxu0 0.0
    %3172 = vmatprep.mubr.f32.mxu0 0.0
    %3173 = vmatmul.mubr.f32.gmra.mrb[0].mxu0 %v3104
    %v3174 = vpop.f32.mrb[0].mxu0
    %v3175 = vadd.f32 %v2764, %v3174
    %v3176 = vpop.f32.mrb[0].mxu0
    %3177 = vdwg.mxu0
    %v3178 = vsel %vm237, %v3175, -inf
    %3179 = vmax.xlane.f32.xlu0 %v3178
    %v3180 = vpop.xlane.xlu0 %3179
    %v3181 = vsub.f32 %v3175, %v3180
    %v3182 = vmul.f32 %v3181, 1.442695
    %v3183 = vpow.pop %v3182
    %v3184 = vsel %vm237, %v3183, 0.0
    %3185 = vadd.xlane.f32.xlu0 %v3184
    %v3186 = vpop.xlane.xlu0 %3185
    %v3187 = vrcp.pop %v3186
    %v3188 = vmul.f32 %v3183, %v3187
    %3189 = vrot.lane.b32.xlu0 %v2077, 48
    %v3190 = vpop.permute.xlu0 %3189
    %v3193 = vsel %vm237, %v3188, 0
    %3195 = vmatprep.subr.mxu0 0.0
    %3196 = vmatpush1.msra.mxu0 %v3190
    %3197 = vmatprep.subr.mxu0 0.0
    %3198 = vmatpush1.msra.mxu0 0.0
    %3199 = vmatprep.subr.mxu0 0.0
    %3200 = vmatpush1.msra.mxu0 0.0
    %3201 = vmatprep.subr.mxu0 0.0
    %3202 = vmatpush1.msra.mxu0 0.0
    %3203 = vmatprep.subr.mxu0 0.0
    %3204 = vmatpush1.msra.mxu0 0.0
    %3205 = vmatprep.subr.mxu0 0.0
    %3206 = vmatpush1.msra.mxu0 0.0
    %3207 = vmatprep.subr.mxu0 0.0
    %3208 = vmatpush1.msra.mxu0 0.0
    %3209 = vmatprep.subr.mxu0 0.0
    %3210 = vmatpush1.msra.mxu0 0.0
    %3211 = vmatprep.subr.mxu0 0.0
    %3212 = vmatpush1.msra.mxu0 0.0
    %3213 = vmatprep.subr.mxu0 0.0
    %3214 = vmatpush1.msra.mxu0 0.0
    %3215 = vmatprep.subr.mxu0 0.0
    %3216 = vmatpush1.msra.mxu0 0.0
    %3217 = vmatprep.subr.mxu0 0.0
    %3218 = vmatpush1.msra.mxu0 0.0
    %3219 = vmatprep.subr.mxu0 0.0
    %3220 = vmatpush1.msra.mxu0 0.0
    %3221 = vmatprep.subr.mxu0 0.0
    %3222 = vmatpush1.msra.mxu0 0.0
    %3223 = vmatprep.subr.mxu0 0.0
    %3224 = vmatpush1.msra.mxu0 0.0
    %3225 = vmatprep.subr.mxu0 0.0
    %3226 = vmatpush1.msra.mxu0 0.0
    %3227 = vmatprep.subr.mxu0 0.0
    %3228 = vmatpush1.msra.mxu0 0.0
    %3229 = vmatprep.subr.mxu0 0.0
    %3230 = vmatpush1.msra.mxu0 0.0
    %3231 = vmatprep.subr.mxu0 0.0
    %3232 = vmatpush1.msra.mxu0 0.0
    %3233 = vmatprep.subr.mxu0 0.0
    %3234 = vmatpush1.msra.mxu0 0.0
    %3235 = vmatprep.subr.mxu0 0.0
    %3236 = vmatpush1.msra.mxu0 0.0
    %3237 = vmatprep.subr.mxu0 0.0
    %3238 = vmatpush1.msra.mxu0 0.0
    %3239 = vmatprep.subr.mxu0 0.0
    %3240 = vmatpush1.msra.mxu0 0.0
    %3241 = vmatprep.subr.mxu0 0.0
    %3242 = vmatpush1.msra.mxu0 0.0
    %3243 = vmatprep.subr.mxu0 0.0
    %3244 = vmatpush1.msra.mxu0 0.0
    %3245 = vmatprep.subr.mxu0 0.0
    %3246 = vmatpush1.msra.mxu0 0.0
    %3247 = vmatprep.subr.mxu0 0.0
    %3248 = vmatpush1.msra.mxu0 0.0
    %3249 = vmatprep.subr.mxu0 0.0
    %3250 = vmatpush1.msra.mxu0 0.0
    %3251 = vmatprep.subr.mxu0 0.0
    %3252 = vmatpush1.msra.mxu0 0.0
    %3253 = vmatprep.subr.mxu0 0.0
    %3254 = vmatpush1.msra.mxu0 0.0
    %3255 = vmatprep.subr.mxu0 0.0
    %3256 = vmatpush1.msra.mxu0 0.0
    %3257 = vmatprep.subr.mxu0 0.0
    %3258 = vmatpush1.msra.mxu0 0.0
    %3259 = vmatprep.mubr.f32.mxu0 0.0
    %3260 = vmatmul.mubr.f32.gmra.mrb[0].mxu0 %v3193
    %v3261 = vpop.f32.mrb[0].mxu0
    %v3262 = vadd.f32 0.0, %v3261
    %v3263 = vpop.f32.mrb[0].mxu0
    %3264 = vdwg.mxu0
    %3266 = vrot.lane.b32.xlu0 %v3262, 16
    %v3267 = vpop.permute.xlu0 %3266
    %3269 = vst.msk [vmem:[#allocation2 + $0x8] sm:$0xff] %vm740, %v3267
    %3270 = vrot.lane.b32.xlu0 %v2077, 104
    %v3271 = vpop.permute.xlu0 %3270
    %3272 = vrot.lane.b32.xlu0 %v2077, 72
    %v3273 = vpop.permute.xlu0 %3272
    %v3274 = vsel %vm237, %v3271, 0
    %v3276 = vsel %vm237, %v3273, 0
    %3278 = vmatprep.subr.mxu0 0.0
    %3279 = vmatpush1.xpose.msra.mxu0 %v3276
    %3280 = vmatprep.subr.mxu0 0.0
    %3281 = vmatpush1.xpose.msra.mxu0 0.0
    %3282 = vmatprep.subr.mxu0 0.0
    %3283 = vmatpush1.xpose.msra.mxu0 0.0
    %3284 = vmatprep.subr.mxu0 0.0
    %3285 = vmatpush1.xpose.msra.mxu0 0.0
    %3286 = vmatprep.subr.mxu0 0.0
    %3287 = vmatpush1.xpose.msra.mxu0 0.0
    %3288 = vmatprep.subr.mxu0 0.0
    %3289 = vmatpush1.xpose.msra.mxu0 0.0
    %3290 = vmatprep.subr.mxu0 0.0
    %3291 = vmatpush1.xpose.msra.mxu0 0.0
    %3292 = vmatprep.subr.mxu0 0.0
    %3293 = vmatpush1.xpose.msra.mxu0 0.0
    %3294 = vmatprep.subr.mxu0 0.0
    %3295 = vmatpush1.xpose.msra.mxu0 0.0
    %3296 = vmatprep.subr.mxu0 0.0
    %3297 = vmatpush1.xpose.msra.mxu0 0.0
    %3298 = vmatprep.subr.mxu0 0.0
    %3299 = vmatpush1.xpose.msra.mxu0 0.0
    %3300 = vmatprep.subr.mxu0 0.0
    %3301 = vmatpush1.xpose.msra.mxu0 0.0
    %3302 = vmatprep.subr.mxu0 0.0
    %3303 = vmatpush1.xpose.msra.mxu0 0.0
    %3304 = vmatprep.subr.mxu0 0.0
    %3305 = vmatpush1.xpose.msra.mxu0 0.0
    %3306 = vmatprep.subr.mxu0 0.0
    %3307 = vmatpush1.xpose.msra.mxu0 0.0
    %3308 = vmatprep.subr.mxu0 0.0
    %3309 = vmatpush1.xpose.msra.mxu0 0.0
    %3310 = vmatprep.subr.mxu0 0.0
    %3311 = vmatpush1.xpose.msra.mxu0 0.0
    %3312 = vmatprep.subr.mxu0 0.0
    %3313 = vmatpush1.xpose.msra.mxu0 0.0
    %3314 = vmatprep.subr.mxu0 0.0
    %3315 = vmatpush1.xpose.msra.mxu0 0.0
    %3316 = vmatprep.subr.mxu0 0.0
    %3317 = vmatpush1.xpose.msra.mxu0 0.0
    %3318 = vmatprep.subr.mxu0 0.0
    %3319 = vmatpush1.xpose.msra.mxu0 0.0
    %3320 = vmatprep.subr.mxu0 0.0
    %3321 = vmatpush1.xpose.msra.mxu0 0.0
    %3322 = vmatprep.subr.mxu0 0.0
    %3323 = vmatpush1.xpose.msra.mxu0 0.0
    %3324 = vmatprep.subr.mxu0 0.0
    %3325 = vmatpush1.xpose.msra.mxu0 0.0
    %3326 = vmatprep.subr.mxu0 0.0
    %3327 = vmatpush1.xpose.msra.mxu0 0.0
    %3328 = vmatprep.subr.mxu0 0.0
    %3329 = vmatpush1.xpose.msra.mxu0 0.0
    %3330 = vmatprep.subr.mxu0 0.0
    %3331 = vmatpush1.xpose.msra.mxu0 0.0
    %3332 = vmatprep.subr.mxu0 0.0
    %3333 = vmatpush1.xpose.msra.mxu0 0.0
    %3334 = vmatprep.subr.mxu0 0.0
    %3335 = vmatpush1.xpose.msra.mxu0 0.0
    %3336 = vmatprep.subr.mxu0 0.0
    %3337 = vmatpush1.xpose.msra.mxu0 0.0
    %3338 = vmatprep.subr.mxu0 0.0
    %3339 = vmatpush1.xpose.msra.mxu0 0.0
    %3340 = vmatprep.subr.mxu0 0.0
    %3341 = vmatpush1.xpose.msra.mxu0 0.0
    %3342 = vmatprep.mubr.f32.mxu0 0.0
    %3343 = vmatmul.mubr.f32.gmra.mrb[0].mxu0 %v3274
    %v3344 = vpop.f32.mrb[0].mxu0
    %v3345 = vadd.f32 %v2764, %v3344
    %v3346 = vpop.f32.mrb[0].mxu0
    %3347 = vdwg.mxu0
    %v3348 = vsel %vm237, %v3345, -inf
    %3349 = vmax.xlane.f32.xlu0 %v3348
    %v3350 = vpop.xlane.xlu0 %3349
    %v3351 = vsub.f32 %v3345, %v3350
    %v3352 = vmul.f32 %v3351, 1.442695
    %v3353 = vpow.pop %v3352
    %v3354 = vsel %vm237, %v3353, 0.0
    %3355 = vadd.xlane.f32.xlu0 %v3354
    %v3356 = vpop.xlane.xlu0 %3355
    %v3357 = vrcp.pop %v3356
    %v3358 = vmul.f32 %v3353, %v3357
    %3359 = vrot.lane.b32.xlu0 %v2077, 40
    %v3360 = vpop.permute.xlu0 %3359
    %v3363 = vsel %vm237, %v3358, 0
    %3365 = vmatprep.subr.mxu0 0.0
    %3366 = vmatpush1.msra.mxu0 %v3360
    %3367 = vmatprep.subr.mxu0 0.0
    %3368 = vmatpush1.msra.mxu0 0.0
    %3369 = vmatprep.subr.mxu0 0.0
    %3370 = vmatpush1.msra.mxu0 0.0
    %3371 = vmatprep.subr.mxu0 0.0
    %3372 = vmatpush1.msra.mxu0 0.0
    %3373 = vmatprep.subr.mxu0 0.0
    %3374 = vmatpush1.msra.mxu0 0.0
    %3375 = vmatprep.subr.mxu0 0.0
    %3376 = vmatpush1.msra.mxu0 0.0
    %3377 = vmatprep.subr.mxu0 0.0
    %3378 = vmatpush1.msra.mxu0 0.0
    %3379 = vmatprep.subr.mxu0 0.0
    %3380 = vmatpush1.msra.mxu0 0.0
    %3381 = vmatprep.subr.mxu0 0.0
    %3382 = vmatpush1.msra.mxu0 0.0
    %3383 = vmatprep.subr.mxu0 0.0
    %3384 = vmatpush1.msra.mxu0 0.0
    %3385 = vmatprep.subr.mxu0 0.0
    %3386 = vmatpush1.msra.mxu0 0.0
    %3387 = vmatprep.subr.mxu0 0.0
    %3388 = vmatpush1.msra.mxu0 0.0
    %3389 = vmatprep.subr.mxu0 0.0
    %3390 = vmatpush1.msra.mxu0 0.0
    %3391 = vmatprep.subr.mxu0 0.0
    %3392 = vmatpush1.msra.mxu0 0.0
    %3393 = vmatprep.subr.mxu0 0.0
    %3394 = vmatpush1.msra.mxu0 0.0
    %3395 = vmatprep.subr.mxu0 0.0
    %3396 = vmatpush1.msra.mxu0 0.0
    %3397 = vmatprep.subr.mxu0 0.0
    %3398 = vmatpush1.msra.mxu0 0.0
    %3399 = vmatprep.subr.mxu0 0.0
    %3400 = vmatpush1.msra.mxu0 0.0
    %3401 = vmatprep.subr.mxu0 0.0
    %3402 = vmatpush1.msra.mxu0 0.0
    %3403 = vmatprep.subr.mxu0 0.0
    %3404 = vmatpush1.msra.mxu0 0.0
    %3405 = vmatprep.subr.mxu0 0.0
    %3406 = vmatpush1.msra.mxu0 0.0
    %3407 = vmatprep.subr.mxu0 0.0
    %3408 = vmatpush1.msra.mxu0 0.0
    %3409 = vmatprep.subr.mxu0 0.0
    %3410 = vmatpush1.msra.mxu0 0.0
    %3411 = vmatprep.subr.mxu0 0.0
    %3412 = vmatpush1.msra.mxu0 0.0
    %3413 = vmatprep.subr.mxu0 0.0
    %3414 = vmatpush1.msra.mxu0 0.0
    %3415 = vmatprep.subr.mxu0 0.0
    %3416 = vmatpush1.msra.mxu0 0.0
    %3417 = vmatprep.subr.mxu0 0.0
    %3418 = vmatpush1.msra.mxu0 0.0
    %3419 = vmatprep.subr.mxu0 0.0
    %3420 = vmatpush1.msra.mxu0 0.0
    %3421 = vmatprep.subr.mxu0 0.0
    %3422 = vmatpush1.msra.mxu0 0.0
    %3423 = vmatprep.subr.mxu0 0.0
    %3424 = vmatpush1.msra.mxu0 0.0
    %3425 = vmatprep.subr.mxu0 0.0
    %3426 = vmatpush1.msra.mxu0 0.0
    %3427 = vmatprep.subr.mxu0 0.0
    %3428 = vmatpush1.msra.mxu0 0.0
    %3429 = vmatprep.mubr.f32.mxu0 0.0
    %3430 = vmatmul.mubr.f32.gmra.mrb[0].mxu0 %v3363
    %v3431 = vpop.f32.mrb[0].mxu0
    %v3432 = vadd.f32 0.0, %v3431
    %v3433 = vpop.f32.mrb[0].mxu0
    %3434 = vdwg.mxu0
    %3436 = vrot.lane.b32.xlu0 %v3432, 24
    %v3437 = vpop.permute.xlu0 %3436
    %3439 = vst.msk [vmem:[#allocation2 + $0x8] sm:$0xff] %vm911, %v3437
    %v3440 = vld [vmem:[#allocation2] sm:$0xff]
    %v3441 = vld [vmem:[#allocation2 + $0x8] sm:$0xff]
    %s3442 = scalar_lea.vmem [#allocation4], 32
    %v3443 = vld [vmem:[%s3442] sm:$0xff]
    %v3444 = vld [vmem:[%s3442 + $0x8] sm:$0xff]
    %v3445 = vld [vmem:[%s3442 + $0x10] sm:$0xff]
    %v3446 = vld [vmem:[%s3442 + $0x18] sm:$0xff]
    %s3447 = scalar_lea.vmem %s7, 1
    %v3448 = vld [vmem:[%s3447] sm:$0x1]
    %v3450 = vlaneseq
    %v3451 = vshrl.u32 %v3450, 7
    %v3452 = vsub.s32 0, %v3451
    %v3453 = vrot.slane %v3448, %v3452
    %v3456 = vsel %vm93, %v3440, 0
    %v3459 = vsel %vm93, %v3441, 0
    %3461 = vmatprep.subr.mxu0 0.0
    %3462 = vmatpush1.msra.mxu0 %v3443
    %3463 = vmatprep.subr.mxu0 0.0
    %3464 = vmatpush1.msra.mxu0 %v3444
    %3465 = vmatprep.subr.mxu0 0.0
    %3466 = vmatpush1.msra.mxu0 %v3445
    %3467 = vmatprep.subr.mxu0 0.0
    %3468 = vmatpush1.msra.mxu0 %v3446
    %3469 = vmatprep.subr.mxu0 0.0
    %3470 = vmatpush1.msra.mxu0 0.0
    %3471 = vmatprep.subr.mxu0 0.0
    %3472 = vmatpush1.msra.mxu0 0.0
    %3473 = vmatprep.subr.mxu0 0.0
    %3474 = vmatpush1.msra.mxu0 0.0
    %3475 = vmatprep.subr.mxu0 0.0
    %3476 = vmatpush1.msra.mxu0 0.0
    %3477 = vmatprep.subr.mxu0 0.0
    %3478 = vmatpush1.msra.mxu0 0.0
    %3479 = vmatprep.subr.mxu0 0.0
    %3480 = vmatpush1.msra.mxu0 0.0
    %3481 = vmatprep.subr.mxu0 0.0
    %3482 = vmatpush1.msra.mxu0 0.0
    %3483 = vmatprep.subr.mxu0 0.0
    %3484 = vmatpush1.msra.mxu0 0.0
    %3485 = vmatprep.subr.mxu0 0.0
    %3486 = vmatpush1.msra.mxu0 0.0
    %3487 = vmatprep.subr.mxu0 0.0
    %3488 = vmatpush1.msra.mxu0 0.0
    %3489 = vmatprep.subr.mxu0 0.0
    %3490 = vmatpush1.msra.mxu0 0.0
    %3491 = vmatprep.subr.mxu0 0.0
    %3492 = vmatpush1.msra.mxu0 0.0
    %3493 = vmatprep.subr.mxu0 0.0
    %3494 = vmatpush1.msra.mxu0 0.0
    %3495 = vmatprep.subr.mxu0 0.0
    %3496 = vmatpush1.msra.mxu0 0.0
    %3497 = vmatprep.subr.mxu0 0.0
    %3498 = vmatpush1.msra.mxu0 0.0
    %3499 = vmatprep.subr.mxu0 0.0
    %3500 = vmatpush1.msra.mxu0 0.0
    %3501 = vmatprep.subr.mxu0 0.0
    %3502 = vmatpush1.msra.mxu0 0.0
    %3503 = vmatprep.subr.mxu0 0.0
    %3504 = vmatpush1.msra.mxu0 0.0
    %3505 = vmatprep.subr.mxu0 0.0
    %3506 = vmatpush1.msra.mxu0 0.0
    %3507 = vmatprep.subr.mxu0 0.0
    %3508 = vmatpush1.msra.mxu0 0.0
    %3509 = vmatprep.subr.mxu0 0.0
    %3510 = vmatpush1.msra.mxu0 0.0
    %3511 = vmatprep.subr.mxu0 0.0
    %3512 = vmatpush1.msra.mxu0 0.0
    %3513 = vmatprep.subr.mxu0 0.0
    %3514 = vmatpush1.msra.mxu0 0.0
    %3515 = vmatprep.subr.mxu0 0.0
    %3516 = vmatpush1.msra.mxu0 0.0
    %3517 = vmatprep.subr.mxu0 0.0
    %3518 = vmatpush1.msra.mxu0 0.0
    %3519 = vmatprep.subr.mxu0 0.0
    %3520 = vmatpush1.msra.mxu0 0.0
    %3521 = vmatprep.subr.mxu0 0.0
    %3522 = vmatpush1.msra.mxu0 0.0
    %3523 = vmatprep.subr.mxu0 0.0
    %3524 = vmatpush1.msra.mxu0 0.0
    %3525 = vmatprep.mubr.f32.mxu0 0.0
    %3526 = vmatmul.mubr.f32.gmra.mrb[0].mxu0 %v3456
    %v3527 = vpop.f32.mrb[0].mxu0
    %v3528 = vadd.f32 %v3453, %v3527
    %v3529 = vpop.f32.mrb[0].mxu0
    %3530 = vmatprep.mubr.f32.mxu0 0.0
    %3531 = vmatmul.mubr.f32.gmra.mrb[0].mxu0 %v3459
    %v3532 = vpop.f32.mrb[0].mxu0
    %v3533 = vadd.f32 %v3453, %v3532
    %v3534 = vpop.f32.mrb[0].mxu0
    %3535 = vdwg.mxu0
    %v3536 = vadd.f32 %v1984, %v3528
    %v3537 = vadd.f32 %v1985, %v3533
    %s3538 = scalar_lea.vmem %s8, 1
    %v3539 = vld [vmem:[%s3538] sm:$0x1]
    %s3540 = scalar_lea.vmem %s9, 1
    %v3541 = vld [vmem:[%s3540] sm:$0x1]
    %v3542 = vsel %vm93, %v3536, 0.0
    %3543 = vadd.xlane.f32.xlu0 %v3542
    %v3544 = vpop.xlane.xlu0 %3543
    %v3545 = vsel %vm93, %v3537, 0.0
    %3546 = vadd.xlane.f32.xlu0 %v3545
    %v3547 = vpop.xlane.xlu0 %3546
    %v3548 = vmul.f32 %v3544, %v100
    %v3549 = vmul.f32 %v3547, %v100
    %v3550 = vsub.f32 %v3536, %v3548
    %v3551 = vsub.f32 %v3537, %v3549
    %v3552 = vmul.f32 %v3550, %v3550
    %v3553 = vmul.f32 %v3551, %v3551
    %v3554 = vsel %vm93, %v3552, 0.0
    %3555 = vadd.xlane.f32.xlu0 %v3554
    %v3556 = vpop.xlane.xlu0 %3555
    %v3557 = vsel %vm93, %v3553, 0.0
    %3558 = vadd.xlane.f32.xlu0 %v3557
    %v3559 = vpop.xlane.xlu0 %3558
    %v3560 = vmul.f32 %v3556, %v100
    %v3561 = vmul.f32 %v3559, %v100
    %v3562 = vadd.f32 %v3560, 1e-05
    %v3563 = vadd.f32 %v3561, 1e-05
    %v3564 = vrsqrt.pop %v3562
    %v3565 = vrsqrt.pop %v3563
    %v3566 = vmul.f32 %v3550, %v3564
    %v3567 = vmul.f32 %v3551, %v3565
    %v3569 = vlaneseq
    %v3570 = vshrl.u32 %v3569, 7
    %v3571 = vsub.s32 0, %v3570
    %v3572 = vrot.slane %v3539, %v3571
    %v3574 = vmul.f32 %v3566, %v3572
    %v3575 = vmul.f32 %v3567, %v3572
    %v3577 = vlaneseq
    %v3578 = vshrl.u32 %v3577, 7
    %v3579 = vsub.s32 0, %v3578
    %v3580 = vrot.slane %v3541, %v3579
    %v3582 = vadd.f32 %v3574, %v3580
    %v3583 = vadd.f32 %v3575, %v3580
    %s3584 = scalar_lea.vmem [#allocation6], 32
    %v3585 = vld [vmem:[%s3584] sm:$0xff]
    %v3586 = vld [vmem:[%s3584 + $0x8] sm:$0xff]
    %v3587 = vld [vmem:[%s3584 + $0x10] sm:$0xff]
    %v3588 = vld [vmem:[%s3584 + $0x18] sm:$0xff]
    %s3589 = scalar_lea.vmem %s11, 1
    %v3590 = vld [vmem:[%s3589] sm:$0x1]
    %v3592 = vlaneseq
    %v3593 = vshrl.u32 %v3592, 7
    %v3594 = vsub.s32 0, %v3593
    %v3595 = vrot.slane %v3590, %v3594
    %v3598 = vsel %vm93, %v3582, 0
    %v3601 = vsel %vm93, %v3583, 0
    %3603 = vmatprep.subr.mxu0 0.0
    %3604 = vmatpush1.msra.mxu0 %v3585
    %3605 = vmatprep.subr.mxu0 0.0
    %3606 = vmatpush1.msra.mxu0 %v3586
    %3607 = vmatprep.subr.mxu0 0.0
    %3608 = vmatpush1.msra.mxu0 %v3587
    %3609 = vmatprep.subr.mxu0 0.0
    %3610 = vmatpush1.msra.mxu0 %v3588
    %3611 = vmatprep.subr.mxu0 0.0
    %3612 = vmatpush1.msra.mxu0 0.0
    %3613 = vmatprep.subr.mxu0 0.0
    %3614 = vmatpush1.msra.mxu0 0.0
    %3615 = vmatprep.subr.mxu0 0.0
    %3616 = vmatpush1.msra.mxu0 0.0
    %3617 = vmatprep.subr.mxu0 0.0
    %3618 = vmatpush1.msra.mxu0 0.0
    %3619 = vmatprep.subr.mxu0 0.0
    %3620 = vmatpush1.msra.mxu0 0.0
    %3621 = vmatprep.subr.mxu0 0.0
    %3622 = vmatpush1.msra.mxu0 0.0
    %3623 = vmatprep.subr.mxu0 0.0
    %3624 = vmatpush1.msra.mxu0 0.0
    %3625 = vmatprep.subr.mxu0 0.0
    %3626 = vmatpush1.msra.mxu0 0.0
    %3627 = vmatprep.subr.mxu0 0.0
    %3628 = vmatpush1.msra.mxu0 0.0
    %3629 = vmatprep.subr.mxu0 0.0
    %3630 = vmatpush1.msra.mxu0 0.0
    %3631 = vmatprep.subr.mxu0 0.0
    %3632 = vmatpush1.msra.mxu0 0.0
    %3633 = vmatprep.subr.mxu0 0.0
    %3634 = vmatpush1.msra.mxu0 0.0
    %3635 = vmatprep.subr.mxu0 0.0
    %3636 = vmatpush1.msra.mxu0 0.0
    %3637 = vmatprep.subr.mxu0 0.0
    %3638 = vmatpush1.msra.mxu0 0.0
    %3639 = vmatprep.subr.mxu0 0.0
    %3640 = vmatpush1.msra.mxu0 0.0
    %3641 = vmatprep.subr.mxu0 0.0
    %3642 = vmatpush1.msra.mxu0 0.0
    %3643 = vmatprep.subr.mxu0 0.0
    %3644 = vmatpush1.msra.mxu0 0.0
    %3645 = vmatprep.subr.mxu0 0.0
    %3646 = vmatpush1.msra.mxu0 0.0
    %3647 = vmatprep.subr.mxu0 0.0
    %3648 = vmatpush1.msra.mxu0 0.0
    %3649 = vmatprep.subr.mxu0 0.0
    %3650 = vmatpush1.msra.mxu0 0.0
    %3651 = vmatprep.subr.mxu0 0.0
    %3652 = vmatpush1.msra.mxu0 0.0
    %3653 = vmatprep.subr.mxu0 0.0
    %3654 = vmatpush1.msra.mxu0 0.0
    %3655 = vmatprep.subr.mxu0 0.0
    %3656 = vmatpush1.msra.mxu0 0.0
    %3657 = vmatprep.subr.mxu0 0.0
    %3658 = vmatpush1.msra.mxu0 0.0
    %3659 = vmatprep.subr.mxu0 0.0
    %3660 = vmatpush1.msra.mxu0 0.0
    %3661 = vmatprep.subr.mxu0 0.0
    %3662 = vmatpush1.msra.mxu0 0.0
    %3663 = vmatprep.subr.mxu0 0.0
    %3664 = vmatpush1.msra.mxu0 0.0
    %3665 = vmatprep.subr.mxu0 0.0
    %3666 = vmatpush1.msra.mxu0 0.0
    %3667 = vmatprep.mubr.f32.mxu0 0.0
    %3668 = vmatmul.mubr.f32.gmra.mrb[0].mxu0 %v3598
    %v3669 = vpop.f32.mrb[0].mxu0
    %v3670 = vadd.f32 %v3595, %v3669
    %v3671 = vpop.f32.mrb[0].mxu0
    %3672 = vmatprep.mubr.f32.mxu0 0.0
    %3673 = vmatmul.mubr.f32.gmra.mrb[0].mxu0 %v3601
    %v3674 = vpop.f32.mrb[0].mxu0
    %v3675 = vadd.f32 %v3595, %v3674
    %v3676 = vpop.f32.mrb[0].mxu0
    %3677 = vdwg.mxu0
    %v3678 = vmul.f32 %v3670, 0.5
    %v3679 = vmul.f32 %v3675, 0.5
    %v3680 = vmul.f32 %v3670, 0.044715
    %v3681 = vmul.f32 %v3675, 0.044715
    %v3682 = vmul.f32 %v3680, %v3670
    %v3683 = vmul.f32 %v3681, %v3675
    %v3684 = vmul.f32 %v3682, %v3670
    %v3685 = vmul.f32 %v3683, %v3675
    %v3686 = vadd.f32 %v3670, %v3684
    %v3687 = vadd.f32 %v3675, %v3685
    %v3688 = vmul.f32 %v3686, 0.7978846
    %v3689 = vmul.f32 %v3687, 0.7978846
    %v3690 = vtanh.pop %v3688
    %v3691 = vtanh.pop %v3689
    %v3692 = vadd.f32 %v3690, 1.0
    %v3693 = vadd.f32 %v3691, 1.0
    %v3694 = vmul.f32 %v3678, %v3692
    %v3695 = vmul.f32 %v3679, %v3693
    %s3696 = scalar_lea.vmem %s12, 64
    %v3697 = vld [vmem:[%s3696] sm:$0xff]
    %v3698 = vld [vmem:[%s3696 + $0x8] sm:$0xff]
    %v3699 = vld [vmem:[%s3696 + $0x10] sm:$0xff]
    %v3700 = vld [vmem:[%s3696 + $0x18] sm:$0xff]
    %v3701 = vld [vmem:[%s3696 + $0x20] sm:$0xff]
    %v3702 = vld [vmem:[%s3696 + $0x28] sm:$0xff]
    %v3703 = vld [vmem:[%s3696 + $0x30] sm:$0xff]
    %v3704 = vld [vmem:[%s3696 + $0x38] sm:$0xff]
    %s3705 = scalar_lea.vmem %s13, 1
    %v3706 = vld [vmem:[%s3705] sm:$0x1]
    %v3708 = vlaneseq
    %v3709 = vshrl.u32 %v3708, 7
    %v3710 = vsub.s32 0, %v3709
    %v3711 = vrot.slane %v3706, %v3710
    %v3714 = vsel %vm1858, %v3694, 0
    %v3717 = vsel %vm1858, %v3695, 0
    %3719 = vmatprep.subr.mxu0 0.0
    %3720 = vmatpush1.msra.mxu0 %v3697
    %3721 = vmatprep.subr.mxu0 0.0
    %3722 = vmatpush1.msra.mxu0 %v3698
    %3723 = vmatprep.subr.mxu0 0.0
    %3724 = vmatpush1.msra.mxu0 %v3699
    %3725 = vmatprep.subr.mxu0 0.0
    %3726 = vmatpush1.msra.mxu0 %v3700
    %3727 = vmatprep.subr.mxu0 0.0
    %3728 = vmatpush1.msra.mxu0 %v3701
    %3729 = vmatprep.subr.mxu0 0.0
    %3730 = vmatpush1.msra.mxu0 %v3702
    %3731 = vmatprep.subr.mxu0 0.0
    %3732 = vmatpush1.msra.mxu0 %v3703
    %3733 = vmatprep.subr.mxu0 0.0
    %3734 = vmatpush1.msra.mxu0 %v3704
    %3735 = vmatprep.subr.mxu0 0.0
    %3736 = vmatpush1.msra.mxu0 0.0
    %3737 = vmatprep.subr.mxu0 0.0
    %3738 = vmatpush1.msra.mxu0 0.0
    %3739 = vmatprep.subr.mxu0 0.0
    %3740 = vmatpush1.msra.mxu0 0.0
    %3741 = vmatprep.subr.mxu0 0.0
    %3742 = vmatpush1.msra.mxu0 0.0
    %3743 = vmatprep.subr.mxu0 0.0
    %3744 = vmatpush1.msra.mxu0 0.0
    %3745 = vmatprep.subr.mxu0 0.0
    %3746 = vmatpush1.msra.mxu0 0.0
    %3747 = vmatprep.subr.mxu0 0.0
    %3748 = vmatpush1.msra.mxu0 0.0
    %3749 = vmatprep.subr.mxu0 0.0
    %3750 = vmatpush1.msra.mxu0 0.0
    %3751 = vmatprep.subr.mxu0 0.0
    %3752 = vmatpush1.msra.mxu0 0.0
    %3753 = vmatprep.subr.mxu0 0.0
    %3754 = vmatpush1.msra.mxu0 0.0
    %3755 = vmatprep.subr.mxu0 0.0
    %3756 = vmatpush1.msra.mxu0 0.0
    %3757 = vmatprep.subr.mxu0 0.0
    %3758 = vmatpush1.msra.mxu0 0.0
    %3759 = vmatprep.subr.mxu0 0.0
    %3760 = vmatpush1.msra.mxu0 0.0
    %3761 = vmatprep.subr.mxu0 0.0
    %3762 = vmatpush1.msra.mxu0 0.0
    %3763 = vmatprep.subr.mxu0 0.0
    %3764 = vmatpush1.msra.mxu0 0.0
    %3765 = vmatprep.subr.mxu0 0.0
    %3766 = vmatpush1.msra.mxu0 0.0
    %3767 = vmatprep.subr.mxu0 0.0
    %3768 = vmatpush1.msra.mxu0 0.0
    %3769 = vmatprep.subr.mxu0 0.0
    %3770 = vmatpush1.msra.mxu0 0.0
    %3771 = vmatprep.subr.mxu0 0.0
    %3772 = vmatpush1.msra.mxu0 0.0
    %3773 = vmatprep.subr.mxu0 0.0
    %3774 = vmatpush1.msra.mxu0 0.0
    %3775 = vmatprep.subr.mxu0 0.0
    %3776 = vmatpush1.msra.mxu0 0.0
    %3777 = vmatprep.subr.mxu0 0.0
    %3778 = vmatpush1.msra.mxu0 0.0
    %3779 = vmatprep.subr.mxu0 0.0
    %3780 = vmatpush1.msra.mxu0 0.0
    %3781 = vmatprep.subr.mxu0 0.0
    %3782 = vmatpush1.msra.mxu0 0.0
    %3783 = vmatprep.mubr.f32.mxu0 0.0
    %3784 = vmatmul.mubr.f32.gmra.mrb[0].mxu0 %v3714
    %v3785 = vpop.f32.mrb[0].mxu0
    %v3786 = vadd.f32 %v3711, %v3785
    %v3787 = vpop.f32.mrb[0].mxu0
    %3788 = vmatprep.mubr.f32.mxu0 0.0
    %3789 = vmatmul.mubr.f32.gmra.mrb[0].mxu0 %v3717
    %v3790 = vpop.f32.mrb[0].mxu0
    %v3791 = vadd.f32 %v3711, %v3790
    %v3792 = vpop.f32.mrb[0].mxu0
    %3793 = vdwg.mxu0
    %v3794 = vadd.f32 %v3582, %v3786
    %v3795 = vadd.f32 %v3583, %v3791
    %s3796 = scalar_lea.vmem %s14, 1
    %v3797 = vld [vmem:[%s3796] sm:$0x1]
    %s3798 = scalar_lea.vmem %s15, 1
    %v3799 = vld [vmem:[%s3798] sm:$0x1]
    %v3800 = vsel %vm93, %v3794, 0.0
    %3801 = vadd.xlane.f32.xlu0 %v3800
    %v3802 = vpop.xlane.xlu0 %3801
    %v3803 = vsel %vm93, %v3795, 0.0
    %3804 = vadd.xlane.f32.xlu0 %v3803
    %v3805 = vpop.xlane.xlu0 %3804
    %v3806 = vmul.f32 %v3802, %v100
    %v3807 = vmul.f32 %v3805, %v100
    %v3808 = vsub.f32 %v3794, %v3806
    %v3809 = vsub.f32 %v3795, %v3807
    %v3810 = vmul.f32 %v3808, %v3808
    %v3811 = vmul.f32 %v3809, %v3809
    %v3812 = vsel %vm93, %v3810, 0.0
    %3813 = vadd.xlane.f32.xlu0 %v3812
    %v3814 = vpop.xlane.xlu0 %3813
    %v3815 = vsel %vm93, %v3811, 0.0
    %3816 = vadd.xlane.f32.xlu0 %v3815
    %v3817 = vpop.xlane.xlu0 %3816
    %v3818 = vmul.f32 %v3814, %v100
    %v3819 = vmul.f32 %v3817, %v100
    %v3820 = vadd.f32 %v3818, 1e-05
    %v3821 = vadd.f32 %v3819, 1e-05
    %v3822 = vrsqrt.pop %v3820
    %v3823 = vrsqrt.pop %v3821
    %v3824 = vmul.f32 %v3808, %v3822
    %v3825 = vmul.f32 %v3809, %v3823
    %v3827 = vlaneseq
    %v3828 = vshrl.u32 %v3827, 7
    %v3829 = vsub.s32 0, %v3828
    %v3830 = vrot.slane %v3797, %v3829
    %v3832 = vmul.f32 %v3824, %v3830
    %v3833 = vmul.f32 %v3825, %v3830
    %v3835 = vlaneseq
    %v3836 = vshrl.u32 %v3835, 7
    %v3837 = vsub.s32 0, %v3836
    %v3838 = vrot.slane %v3799, %v3837
    %v3840 = vadd.f32 %v3832, %v3838
    %v3841 = vadd.f32 %v3833, %v3838
    %v3842 = vld [vmem:[%s16] sm:$0x1]
    %v3843 = vld [vmem:[#allocation3] sm:$0x1]
    %v3844 = vmul.f32 %v3840, %v3842
    %vm3845 = vcmask 253952
    %v3846 = vsel %vm3845, %v3844, 0.0
    %3847 = vadd.xlane.f32.xlu0 %v3846
    %v3848 = vpop.xlane.xlu0 %3847
    %v3849 = vadd.f32 %v3848, %v3843
    %3851 = vset.pattern.permute.xlu0 0
    %3852 = vperm.xlu0 %3851, %v3849
    %v3853 = vpop.permute.xlu0 %3852
    %3855 = vst [vmem:[%s18] sm:$0x1] %v3853
    %v3856 = vmul.f32 %v3841, %v3842
    %v3857 = vsel %vm3845, %v3856, 0.0
    %3858 = vadd.xlane.f32.xlu0 %v3857
    %v3859 = vpop.xlane.xlu0 %3858
    %v3860 = vadd.f32 %v3859, %v3843
    %3862 = vset.pattern.permute.xlu0 0
    %3863 = vperm.xlu0 %3862, %v3860
    %v3864 = vpop.permute.xlu0 %3863
    %3866 = vst [vmem:[%s18 + $0x1] sm:$0x1] %v3864
    // Predicated region
    $region82: #{_lambda_.1} parent=1 // pred_check
      _
    $region83: #{_lambda_.1} parent=1 // pred_check_branch
      %3868 = sbr.rel (0) target = $region85
    $region84: #{_lambda_.1} parent=1 // pred_region
      _
    $region85: #{_lambda_.1} parent=1 // pred_fallthru
      _
    // Predicated region
    $region86: #{_lambda_.1} parent=1 // pred_check
      _
    $region87: #{_lambda_.1} parent=1 // pred_check_branch
      %3870 = sbr.rel (0) target = $region89
    $region88: #{_lambda_.1} parent=1 // pred_region
      _
    $region89: #{_lambda_.1} parent=1 // pred_fallthru
      _
    %3871 = vsyncpa [#allocation5], 1
    %3872 = vsyncpa [#allocation7], 1

</llo_original>
